<compile_context>
chip_gen: v5e
topology: v5e:2x2
jax: 0.10.0
libtpu: 0.0.40
codegen_flags: <defaults>
</compile_context>

<pallas_src>
import jax
import jax.numpy as jnp
from jax.experimental import pallas as pl
from jax.experimental.pallas import tpu as pltpu

# ----------------------------- configuration -------------------------------
VOCAB = 64
PAD_IDX = 0
HIDDEN = 32
NUM_LAYERS = 4          # GNMT default is 8; small value for the synthetic test


# ----------------------------- Pallas kernels ------------------------------
def _lstm_step_kernel(xg_ref, m_ref, whh_ref, o_ref, h_scr, c_scr):
    """One LSTM time step per grid iteration (PyTorch gate order i, f, g, o).

    Grid is (D, T): d = direction (0 = forward, 1 = backward in time, handled
    entirely by the index_maps), t = step. The input projection (x @ W_ih + b)
    is precomputed, so only the small h_prev @ W_hh matmul runs per step.
    """
    t = pl.program_id(1)

    @pl.when(t == 0)
    def _():
        h_scr[...] = jnp.zeros_like(h_scr)
        c_scr[...] = jnp.zeros_like(c_scr)

    hdim = h_scr.shape[-1]
    h_prev = h_scr[...]                # (B, H) f32
    c_prev = c_scr[...]                # (B, H) f32

    # bf16 operands on the MXU, f32 accumulation; gate math stays f32 (VPU/EUP).
    gates = xg_ref[...] + jnp.dot(h_prev.astype(jnp.bfloat16), whh_ref[...],
                                  preferred_element_type=jnp.float32)  # (B, 4H)

    i_g = jax.nn.sigmoid(gates[:, 0 * hdim:1 * hdim])
    f_g = jax.nn.sigmoid(gates[:, 1 * hdim:2 * hdim])
    g_g = jnp.tanh(gates[:, 2 * hdim:3 * hdim])
    o_g = jax.nn.sigmoid(gates[:, 3 * hdim:4 * hdim])

    c_new = f_g * c_prev + i_g * g_g
    h_new = o_g * jnp.tanh(c_new)

    m = m_ref[...]                     # (B, 1); 1.0 = valid (inside sequence)
    c_scr[...] = m * c_new + (1.0 - m) * c_prev
    h_scr[...] = m * h_new + (1.0 - m) * h_prev
    # packed-sequence semantics: padded positions emit zeros
    o_ref[...] = m * h_new


def _attn_kernel(pq_ref, pk_ref, k_ref, v_ref, m_ref, ctx_ref):
    """Normalized Bahdanau attention, one program over the whole batch.

    pq/pk are the already-projected query/keys (normalize_bias folded into the
    query projection). Everything is time-major, so no transposes are needed
    on either side of the kernel.
    """
    pq = pq_ref[...]                                       # (Tq, B, H)
    pk = pk_ref[...]                                       # (Tk, B, H)
    keys = k_ref[...]                                      # (Tk, B, H)

    sum_qk = pq[:, None, :, :] + pk[None, :, :, :]         # (Tq, Tk, B, H)
    scores = jnp.sum(jnp.tanh(sum_qk) * v_ref[...], axis=-1)   # (Tq, Tk, B)

    mask = m_ref[...]                                      # (1, Tk, B)
    scores = jnp.where(mask > 0, scores, jnp.finfo(jnp.float32).min)

    smax = jnp.max(scores, axis=1, keepdims=True)          # softmax over keys
    e = jnp.exp(scores - smax)
    probs = e / jnp.sum(e, axis=1, keepdims=True)          # (Tq, Tk, B)

    # context[q, b, h] = sum_k probs[q, k, b] * keys[k, b, h]
    ctx_ref[...] = jnp.sum(probs[:, :, :, None] * keys[None, :, :, :], axis=1)


def _matmul_kernel(x_ref, w_ref, o_ref):
    o_ref[...] = jnp.dot(x_ref[...].astype(jnp.bfloat16), w_ref[...],
                         preferred_element_type=jnp.float32)


def _linear_kernel(x_ref, w_ref, b_ref, o_ref):
    o_ref[...] = (jnp.dot(x_ref[...].astype(jnp.bfloat16), w_ref[...],
                          preferred_element_type=jnp.float32) + b_ref[...])


# ----------------------------- kernel wrappers ------------------------------
def linear(x2d, w_t, b=None):
    """x2d: (M, K) f32, w_t: (K, N) bf16 (pre-transposed), b: (N,) f32 or None."""
    M, _ = x2d.shape
    N = w_t.shape[1]
    if b is None:
        return pl.pallas_call(
            _matmul_kernel,
            out_shape=jax.ShapeDtypeStruct((M, N), jnp.float32),
            in_specs=[pl.BlockSpec(memory_space=pltpu.MemorySpace.VMEM)] * 2,
            out_specs=pl.BlockSpec(memory_space=pltpu.MemorySpace.VMEM),
        )(x2d, w_t)
    return pl.pallas_call(
        _linear_kernel,
        out_shape=jax.ShapeDtypeStruct((M, N), jnp.float32),
        in_specs=[pl.BlockSpec(memory_space=pltpu.MemorySpec.VMEM
                               if hasattr(pltpu, "MemorySpec")
                               else pltpu.MemorySpace.VMEM)] * 3,
        out_specs=pl.BlockSpec(memory_space=pltpu.MemorySpace.VMEM),
    )(x2d, w_t, b.reshape(1, N))


def run_lstm(x, mask, dir_params):
    """Run a (possibly bidirectional) LSTM layer.

    x: (T, B, In) f32, mask: (T, B, 1) f32 (1.0 = valid).
    dir_params: list of 1 or 2 per-direction dicts with keys
      w_ih_t (In, 4H) bf16, w_hh_t (H, 4H) bf16, b (4H,) f32.
    Direction 0 runs forward in time, direction 1 runs backward (handled via
    the index_map; outputs are already written back in original time order).
    Returns (T, B, D*H) f32.
    """
    T, B, In = x.shape
    D = len(dir_params)
    H = dir_params[0]["w_hh_t"].shape[0]

    # Hoisted input projection: one big lane-dense (T*B, In) x (In, D*4H)
    # matmul covering BOTH directions instead of D*T tiny per-step matmuls.
    x2d = x.reshape(T * B, In)
    w_ih_cat = jnp.concatenate([p["w_ih_t"] for p in dir_params], axis=1)
    b_cat = jnp.concatenate([p["b"] for p in dir_params], axis=0)
    xg = linear(x2d, w_ih_cat, b_cat).reshape(T, B, D * 4 * H)   # f32
    whh = jnp.stack([p["w_hh_t"] for p in dir_params], axis=0)   # (D, H, 4H) bf16

    # time index: d=0 -> t (forward), d=1 -> T-1-t (backward)
    tmap = lambda d, t: t + d * (T - 1 - 2 * t)

    out = pl.pallas_call(
        _lstm_step_kernel,
        out_shape=jax.ShapeDtypeStruct((D, T, B, H), jnp.float32),
        grid_spec=pltpu.PrefetchScalarGridSpec(
            num_scalar_prefetch=0,
            grid=(D, T),
            in_specs=[
                # direction d reads its own 4H-wide lane slab of the fused
                # input projection (no stack/transpose materialized in HBM).
                pl.BlockSpec((None, B, 4 * H),
                             lambda d, t: (tmap(d, t), 0, d)),
                pl.BlockSpec((None, B, 1),
                             lambda d, t: (tmap(d, t), 0, 0)),
                # constant over t -> W_hh stays resident in VMEM
                pl.BlockSpec((None, H, 4 * H),
                             lambda d, t: (d, 0, 0)),
            ],
            out_specs=pl.BlockSpec((None, None, B, H),
                                   lambda d, t: (d, tmap(d, t), 0, 0)),
            scratch_shapes=[pltpu.VMEM((B, H), jnp.float32),
                            pltpu.VMEM((B, H), jnp.float32)],
        ),
        compiler_params=pltpu.CompilerParams(
            dimension_semantics=("parallel", "arbitrary")),
    )(xg, mask, whh)

    if D == 1:
        return out[0]
    return jnp.concatenate([out[0], out[1]], axis=-1)       # (T, B, 2H)


def bahdanau_attention(ap, query, keys, enc_len):
    """query: (Tq, B, H), keys: (Tk, B, H) time-major. Returns (Tq, B, H) ctx."""
    Tq, B, H = query.shape
    Tk = keys.shape[0]
    mask = (jnp.arange(Tk)[:, None] < enc_len[None, :]).astype(jnp.float32)
    mask = mask[None, :, :]                                  # (1, Tk, B)

    v = ap["linear_att"]
    v_n = (v / jnp.sqrt(jnp.sum(v * v))) * ap["normalize_scalar"]

    # Q/K projections as large lane-friendly matmuls (normalize_bias folded
    # into the query projection). pk depends only on the encoder output and
    # is computed exactly once per forward.
    pq = linear(query.reshape(Tq * B, H), ap["wq_t"],
                ap["normalize_bias"]).reshape(Tq, B, H)
    pk = linear(keys.reshape(Tk * B, H), ap["wk_t"], None).reshape(Tk, B, H)

    ctx = pl.pallas_call(
        _attn_kernel,
        out_shape=jax.ShapeDtypeStruct((Tq, B, H), jnp.float32),
        in_specs=[pl.BlockSpec(memory_space=pltpu.MemorySpace.VMEM)] * 5,
        out_specs=pl.BlockSpec(memory_space=pltpu.MemorySpace.VMEM),
    )(pq, pk, keys, v_n.reshape(1, H), mask)
    return ctx


# ----------------------------- model pieces ---------------------------------
def encoder_forward(p, tokens, lengths):
    emb = jnp.take(p["enc_embed"], tokens, axis=0)           # (T, B, H)
    T, B, _ = emb.shape
    mask = (jnp.arange(T)[:, None] < lengths[None, :]).astype(jnp.float32)
    mask = mask[:, :, None]                                  # (T, B, 1)
    ones = jnp.ones((T, B, 1), jnp.float32)

    # layer 0: bidirectional, packed (masked); both directions in one kernel
    x = run_lstm(emb, mask, [p["enc_l0_f"], p["enc_l0_b"]])  # (T, B, 2H)

    # layer 1 (no packing in reference implementation)
    x = run_lstm(x, ones, [p["enc_l1"]])

    # remaining layers with residual connections
    for lp in p["enc_rest"]:
        x = x + run_lstm(x, ones, [lp])
    return x


def decoder_forward(p, tokens, enc_ctx, enc_len):
    emb = jnp.take(p["dec_embed"], tokens, axis=0)           # (Td, B, H)
    Td, B, H = emb.shape
    ones = jnp.ones((Td, B, 1), jnp.float32)

    # RecurrentAttention: LSTM then Bahdanau attention over encoder context
    x = run_lstm(emb, ones, [p["att_rnn"]])
    attn = bahdanau_attention(p["attn"], x, enc_ctx, enc_len)

    # first decoder LSTM layer
    x = run_lstm(jnp.concatenate([x, attn], axis=-1), ones, [p["dec_layers"][0]])

    # remaining decoder layers with residual connections
    for lp in p["dec_layers"][1:]:
        x = x + run_lstm(jnp.concatenate([x, attn], axis=-1), ones, [lp])

    logits = linear(x.reshape(Td * B, H), p["cls_w_t"], p["cls_b"])
    return logits.reshape(Td, B, -1)


def gnmt_forward(params, input_encoder, input_enc_len, input_decoder):
    context = encoder_forward(params, input_encoder, input_enc_len)
    return decoder_forward(params, input_decoder, context, input_enc_len)


# ----------------------------- parameter init -------------------------------
def _uniform(key, shape, scale=0.1):
    return jax.random.uniform(key, shape, jnp.float32, minval=-scale, maxval=scale)


def _lstm_params(key, in_size, hidden):
    """Weights pre-transposed to (in, out) and cast to bf16 once at init."""
    k1, k2, k3, k4 = jax.random.split(key, 4)
    return dict(
        w_ih_t=jnp.transpose(_uniform(k1, (4 * hidden, in_size))).astype(jnp.bfloat16),
        w_hh_t=jnp.transpose(_uniform(k2, (4 * hidden, hidden))).astype(jnp.bfloat16),
        b=_uniform(k3, (4 * hidden,)) + _uniform(k4, (4 * hidden,)),  # b_ih + b_hh
    )


def init_params(key, vocab, hidden, num_layers, padding_idx):
    keys = iter(jax.random.split(key, 64))
    nk = lambda: next(keys)
    params = dict(
        enc_embed=_uniform(nk(), (vocab, hidden)).at[padding_idx].set(0.0),
        dec_embed=_uniform(nk(), (vocab, hidden)).at[padding_idx].set(0.0),
        enc_l0_f=_lstm_params(nk(), hidden, hidden),
        enc_l0_b=_lstm_params(nk(), hidden, hidden),
        enc_l1=_lstm_params(nk(), 2 * hidden, hidden),
        enc_rest=[_lstm_params(nk(), hidden, hidden)
                  for _ in range(num_layers - 2)],
        att_rnn=_lstm_params(nk(), hidden, hidden),
        attn=dict(
            wq_t=jnp.transpose(_uniform(nk(), (hidden, hidden))).astype(jnp.bfloat16),
            wk_t=jnp.transpose(_uniform(nk(), (hidden, hidden))).astype(jnp.bfloat16),
            normalize_bias=jnp.zeros((hidden,), jnp.float32),
            normalize_scalar=jnp.float32(1.0 / (hidden ** 0.5)),
            linear_att=_uniform(nk(), (hidden,), 1.0 / (hidden ** 0.5)),
        ),
        dec_layers=[_lstm_params(nk(), 2 * hidden, hidden)
                    for _ in range(num_layers - 1)],
        cls_w_t=jnp.transpose(_uniform(nk(), (vocab, hidden))).astype(jnp.bfloat16),
        cls_b=_uniform(nk(), (vocab,)),
    )
    return params


# ----------------------------- main ------------------------------------------
if __name__ == "__main__":
    key = jax.random.PRNGKey(0)
    kp, ke, kd = jax.random.split(key, 3)

    T_ENC, T_DEC, B = 8, 8, 2
    params = init_params(kp, VOCAB, HIDDEN, NUM_LAYERS, PAD_IDX)

    input_enc_len = jnp.array([T_ENC, 5], dtype=jnp.int32)   # sorted descending
    input_encoder = jax.random.randint(ke, (T_ENC, B), 1, VOCAB, dtype=jnp.int32)
    # pad positions beyond each sequence length with padding_idx
    pad_mask = jnp.arange(T_ENC)[:, None] < input_enc_len[None, :]
    input_encoder = jnp.where(pad_mask, input_encoder, PAD_IDX)
    input_decoder = jax.random.randint(kd, (T_DEC, B), 1, VOCAB, dtype=jnp.int32)

    fwd = jax.jit(gnmt_forward)
    logits = fwd(params, input_encoder, input_enc_len, input_decoder)
    logits = jax.block_until_ready(logits)

    assert logits.shape == (T_DEC, B, VOCAB)
    assert bool(jnp.all(jnp.isfinite(logits)))
    print("KERNEL_OK")
</pallas_src>

<mosaic_0001>
module attributes {stable_mosaic.version = 11 : i64} {
  func.func @_lstm_step_kernel(%arg0: i32, %arg1: i32, %arg2: memref<1x2x128xf32, #tpu.memory_space<vmem>>, %arg3: memref<1x2x1xf32, #tpu.memory_space<vmem>>, %arg4: memref<1x32x128xbf16, #tpu.memory_space<vmem>>, %arg5: memref<1x1x2x32xf32, #tpu.memory_space<vmem>>, %arg6: memref<2x32xf32, #tpu.memory_space<vmem>>, %arg7: memref<2x32xf32, #tpu.memory_space<vmem>>) attributes {dimension_semantics = [#tpu.dimension_semantics<parallel>, #tpu.dimension_semantics<arbitrary>], iteration_bounds = array<i64: 2, 8>, scalar_prefetch = 0 : i64, scratch_operands = 2 : i64, tpu.core_type = #tpu.core_type<tc>, window_params = [{transform_indices = @transform_0, window_bounds = array<i64: 1, 2, 128>}, {transform_indices = @transform_1, window_bounds = array<i64: 1, 2, 1>}, {transform_indices = @transform_2, window_bounds = array<i64: 1, 32, 128>}, {transform_indices = @transform_3, window_bounds = array<i64: 1, 1, 2, 32>}]} {
    %c0_i32 = arith.constant 0 : i32
    %0 = arith.cmpi eq, %arg1, %c0_i32 : i32
    %1 = arith.extui %0 : i1 to i32
    %c0_i32_0 = arith.constant 0 : i32
    %2 = arith.cmpi ne, %1, %c0_i32_0 : i32
    scf.if %2 {
      %cst_26 = arith.constant 0.000000e+00 : f32
      %60 = vector.broadcast %cst_26 : f32 to vector<2x32xf32>
      %c0_27 = arith.constant 0 : index
      %c0_28 = arith.constant 0 : index
      %61 = vector.load %arg6[%c0_27, %c0_28] : memref<2x32xf32, #tpu.memory_space<vmem>>, vector<2x32xf32>
      tpu.vector_store %arg6[%c0_27, %c0_28], %60 {strides = array<i32>} : memref<2x32xf32, #tpu.memory_space<vmem>>, vector<2x32xf32>,
      %cst_29 = arith.constant 0.000000e+00 : f32
      %62 = vector.broadcast %cst_29 : f32 to vector<2x32xf32>
      %c0_30 = arith.constant 0 : index
      %c0_31 = arith.constant 0 : index
      %63 = vector.load %arg7[%c0_30, %c0_31] : memref<2x32xf32, #tpu.memory_space<vmem>>, vector<2x32xf32>
      tpu.vector_store %arg7[%c0_30, %c0_31], %62 {strides = array<i32>} : memref<2x32xf32, #tpu.memory_space<vmem>>, vector<2x32xf32>,
    } else {
    }
    %c0 = arith.constant 0 : index
    %c0_1 = arith.constant 0 : index
    %3 = vector.load %arg6[%c0, %c0_1] : memref<2x32xf32, #tpu.memory_space<vmem>>, vector<2x32xf32>
    %c0_2 = arith.constant 0 : index
    %c0_3 = arith.constant 0 : index
    %4 = vector.load %arg7[%c0_2, %c0_3] : memref<2x32xf32, #tpu.memory_space<vmem>>, vector<2x32xf32>
    %c0_4 = arith.constant 0 : index
    %c0_5 = arith.constant 0 : index
    %c0_6 = arith.constant 0 : index
    %5 = vector.load %arg2[%c0_4, %c0_5, %c0_6] : memref<1x2x128xf32, #tpu.memory_space<vmem>>, vector<1x2x128xf32>
    %6 = vector.shape_cast %5 : vector<1x2x128xf32> to vector<2x128xf32>
    %7 = arith.truncf %3 : vector<2x32xf32> to vector<2x32xbf16>
    %c0_7 = arith.constant 0 : index
    %c0_8 = arith.constant 0 : index
    %c0_9 = arith.constant 0 : index
    %8 = vector.load %arg4[%c0_7, %c0_8, %c0_9] : memref<1x32x128xbf16, #tpu.memory_space<vmem>>, vector<1x32x128xbf16>
    %9 = vector.shape_cast %8 : vector<1x32x128xbf16> to vector<32x128xbf16>
    %cst = arith.constant dense<0.000000e+00> : vector<2x128xf32>
    %10 = tpu.matmul %7, %9, %cst {dimension_numbers = #tpu.dot_dimension_numbers<[1], [0], [0], [1], [0, 0, 1, 1], [], []>} : vector<2x32xbf16>, vector<32x128xbf16>, vector<2x128xf32> -> vector<2x128xf32>
    %11 = arith.addf %6, %10 : vector<2x128xf32>
    %12 = vector.extract_strided_slice %11 {offsets = [0, 0], sizes = [2, 32], strides = [1, 1]} : vector<2x128xf32> to vector<2x32xf32>
    %13 = arith.negf %12 : vector<2x32xf32>
    %14 = math.exp %13 : vector<2x32xf32>
    %cst_10 = arith.constant 1.000000e+00 : f32
    %15 = vector.broadcast %cst_10 : f32 to vector<2x32xf32>
    %16 = arith.addf %15, %14 : vector<2x32xf32>
    %17 = arith.divf %15, %16 : vector<2x32xf32>
    %18 = vector.extract_strided_slice %11 {offsets = [0, 32], sizes = [2, 32], strides = [1, 1]} : vector<2x128xf32> to vector<2x32xf32>
    %19 = arith.negf %18 : vector<2x32xf32>
    %20 = math.exp %19 : vector<2x32xf32>
    %cst_11 = arith.constant 1.000000e+00 : f32
    %21 = vector.broadcast %cst_11 : f32 to vector<2x32xf32>
    %22 = arith.addf %21, %20 : vector<2x32xf32>
    %23 = arith.divf %21, %22 : vector<2x32xf32>
    %24 = vector.extract_strided_slice %11 {offsets = [0, 64], sizes = [2, 32], strides = [1, 1]} : vector<2x128xf32> to vector<2x32xf32>
    %25 = math.tanh %24 : vector<2x32xf32>
    %26 = vector.extract_strided_slice %11 {offsets = [0, 96], sizes = [2, 32], strides = [1, 1]} : vector<2x128xf32> to vector<2x32xf32>
    %27 = arith.negf %26 : vector<2x32xf32>
    %28 = math.exp %27 : vector<2x32xf32>
    %cst_12 = arith.constant 1.000000e+00 : f32
    %29 = vector.broadcast %cst_12 : f32 to vector<2x32xf32>
    %30 = arith.addf %29, %28 : vector<2x32xf32>
    %31 = arith.divf %29, %30 : vector<2x32xf32>
    %32 = arith.mulf %23, %4 : vector<2x32xf32>
    %33 = arith.mulf %17, %25 : vector<2x32xf32>
    %34 = arith.addf %32, %33 : vector<2x32xf32>
    %35 = math.tanh %34 : vector<2x32xf32>
    %36 = arith.mulf %31, %35 : vector<2x32xf32>
    %c0_13 = arith.constant 0 : index
    %c0_14 = arith.constant 0 : index
    %c0_15 = arith.constant 0 : index
    %37 = vector.load %arg3[%c0_13, %c0_14, %c0_15] : memref<1x2x1xf32, #tpu.memory_space<vmem>>, vector<1x2x1xf32>
    %38 = vector.shape_cast %37 : vector<1x2x1xf32> to vector<2x1xf32>
    %39 = vector.broadcast %38 : vector<2x1xf32> to vector<2x32xf32>
    %40 = arith.mulf %39, %34 : vector<2x32xf32>
    %cst_16 = arith.constant 1.000000e+00 : f32
    %41 = vector.broadcast %cst_16 : f32 to vector<2x1xf32>
    %42 = arith.subf %41, %38 : vector<2x1xf32>
    %43 = vector.broadcast %42 : vector<2x1xf32> to vector<2x32xf32>
    %44 = arith.mulf %43, %4 : vector<2x32xf32>
    %45 = arith.addf %40, %44 : vector<2x32xf32>
    %c0_17 = arith.constant 0 : index
    %c0_18 = arith.constant 0 : index
    %46 = vector.load %arg7[%c0_17, %c0_18] : memref<2x32xf32, #tpu.memory_space<vmem>>, vector<2x32xf32>
    tpu.vector_store %arg7[%c0_17, %c0_18], %45 {strides = array<i32>} : memref<2x32xf32, #tpu.memory_space<vmem>>, vector<2x32xf32>,
    %47 = vector.broadcast %38 : vector<2x1xf32> to vector<2x32xf32>
    %48 = arith.mulf %47, %36 : vector<2x32xf32>
    %cst_19 = arith.constant 1.000000e+00 : f32
    %49 = vector.broadcast %cst_19 : f32 to vector<2x1xf32>
    %50 = arith.subf %49, %38 : vector<2x1xf32>
    %51 = vector.broadcast %50 : vector<2x1xf32> to vector<2x32xf32>
    %52 = arith.mulf %51, %3 : vector<2x32xf32>
    %53 = arith.addf %48, %52 : vector<2x32xf32>
    %c0_20 = arith.constant 0 : index
    %c0_21 = arith.constant 0 : index
    %54 = vector.load %arg6[%c0_20, %c0_21] : memref<2x32xf32, #tpu.memory_space<vmem>>, vector<2x32xf32>
    tpu.vector_store %arg6[%c0_20, %c0_21], %53 {strides = array<i32>} : memref<2x32xf32, #tpu.memory_space<vmem>>, vector<2x32xf32>,
    %55 = vector.broadcast %38 : vector<2x1xf32> to vector<2x32xf32>
    %56 = arith.mulf %55, %36 : vector<2x32xf32>
    %c0_22 = arith.constant 0 : index
    %c0_23 = arith.constant 0 : index
    %c0_24 = arith.constant 0 : index
    %c0_25 = arith.constant 0 : index
    %57 = vector.load %arg5[%c0_22, %c0_23, %c0_24, %c0_25] : memref<1x1x2x32xf32, #tpu.memory_space<vmem>>, vector<1x1x2x32xf32>
    %58 = vector.shape_cast %57 : vector<1x1x2x32xf32> to vector<2x32xf32>
    %59 = vector.shape_cast %56 : vector<2x32xf32> to vector<1x1x2x32xf32>
    tpu.vector_store %arg5[%c0_22, %c0_23, %c0_24, %c0_25], %59 {strides = array<i32>} : memref<1x1x2x32xf32, #tpu.memory_space<vmem>>, vector<1x1x2x32xf32>,
    return
  }
  func.func @transform_0(%arg0: i32, %arg1: i32) -> (i32, i32, i32) {
    %c2_i32 = arith.constant 2 : i32
    %0 = arith.muli %c2_i32, %arg1 : i32
    %c7_i32 = arith.constant 7 : i32
    %1 = arith.subi %c7_i32, %0 : i32
    %2 = arith.muli %arg0, %1 : i32
    %3 = arith.addi %arg1, %2 : i32
    %c0_i32 = arith.constant 0 : i32
    %c0_i32_0 = arith.constant 0 : i32
    return %3, %c0_i32, %arg0 : i32, i32, i32
  }
  func.func @transform_1(%arg0: i32, %arg1: i32) -> (i32, i32, i32) {
    %c2_i32 = arith.constant 2 : i32
    %0 = arith.muli %c2_i32, %arg1 : i32
    %c7_i32 = arith.constant 7 : i32
    %1 = arith.subi %c7_i32, %0 : i32
    %2 = arith.muli %arg0, %1 : i32
    %3 = arith.addi %arg1, %2 : i32
    %c0_i32 = arith.constant 0 : i32
    %c0_i32_0 = arith.constant 0 : i32
    %c0_i32_1 = arith.constant 0 : i32
    return %3, %c0_i32, %c0_i32_0 : i32, i32, i32
  }
  func.func @transform_2(%arg0: i32, %arg1: i32) -> (i32, i32, i32) {
    %c0_i32 = arith.constant 0 : i32
    %c0_i32_0 = arith.constant 0 : i32
    %c0_i32_1 = arith.constant 0 : i32
    return %arg0, %c0_i32, %c0_i32_0 : i32, i32, i32
  }
  func.func @transform_3(%arg0: i32, %arg1: i32) -> (i32, i32, i32, i32) {
    %c2_i32 = arith.constant 2 : i32
    %0 = arith.muli %c2_i32, %arg1 : i32
    %c7_i32 = arith.constant 7 : i32
    %1 = arith.subi %c7_i32, %0 : i32
    %2 = arith.muli %arg0, %1 : i32
    %3 = arith.addi %arg1, %2 : i32
    %c0_i32 = arith.constant 0 : i32
    %c0_i32_0 = arith.constant 0 : i32
    %c0_i32_1 = arith.constant 0 : i32
    return %arg0, %3, %c0_i32, %c0_i32_0 : i32, i32, i32, i32
  }
}

module attributes {stable_mosaic.version = 11 : i64} {
  func.func @_linear_kernel(%arg0: memref<16x32xf32, #tpu.memory_space<vmem>>, %arg1: memref<32x256xbf16, #tpu.memory_space<vmem>>, %arg2: memref<1x256xf32, #tpu.memory_space<vmem>>, %arg3: memref<16x256xf32, #tpu.memory_space<vmem>>) attributes {dimension_semantics = [], scalar_prefetch = 0 : i64, scratch_operands = 0 : i64, tpu.core_type = #tpu.core_type<tc>} {
    %c0 = arith.constant 0 : index
    %c0_0 = arith.constant 0 : index
    %0 = vector.load %arg0[%c0, %c0_0] : memref<16x32xf32, #tpu.memory_space<vmem>>, vector<16x32xf32>
    %1 = arith.truncf %0 : vector<16x32xf32> to vector<16x32xbf16>
    %c0_1 = arith.constant 0 : index
    %c0_2 = arith.constant 0 : index
    %2 = vector.load %arg1[%c0_1, %c0_2] : memref<32x256xbf16, #tpu.memory_space<vmem>>, vector<32x256xbf16>
    %cst = arith.constant dense<0.000000e+00> : vector<16x256xf32>
    %3 = tpu.matmul %1, %2, %cst {dimension_numbers = #tpu.dot_dimension_numbers<[1], [0], [0], [1], [0, 0, 1, 1], [], []>} : vector<16x32xbf16>, vector<32x256xbf16>, vector<16x256xf32> -> vector<16x256xf32>
    %c0_3 = arith.constant 0 : index
    %c0_4 = arith.constant 0 : index
    %4 = vector.load %arg2[%c0_3, %c0_4] : memref<1x256xf32, #tpu.memory_space<vmem>>, vector<1x256xf32>
    %5 = vector.broadcast %4 : vector<1x256xf32> to vector<16x256xf32>
    %6 = arith.addf %3, %5 : vector<16x256xf32>
    %c0_5 = arith.constant 0 : index
    %c0_6 = arith.constant 0 : index
    %7 = vector.load %arg3[%c0_5, %c0_6] : memref<16x256xf32, #tpu.memory_space<vmem>>, vector<16x256xf32>
    tpu.vector_store %arg3[%c0_5, %c0_6], %6 {strides = array<i32>} : memref<16x256xf32, #tpu.memory_space<vmem>>, vector<16x256xf32>,
    return
  }
}

module attributes {stable_mosaic.version = 11 : i64} {
  func.func @_linear_kernel(%arg0: memref<16x64xf32, #tpu.memory_space<vmem>>, %arg1: memref<64x128xbf16, #tpu.memory_space<vmem>>, %arg2: memref<1x128xf32, #tpu.memory_space<vmem>>, %arg3: memref<16x128xf32, #tpu.memory_space<vmem>>) attributes {dimension_semantics = [], scalar_prefetch = 0 : i64, scratch_operands = 0 : i64, tpu.core_type = #tpu.core_type<tc>} {
    %c0 = arith.constant 0 : index
    %c0_0 = arith.constant 0 : index
    %0 = vector.load %arg0[%c0, %c0_0] : memref<16x64xf32, #tpu.memory_space<vmem>>, vector<16x64xf32>
    %1 = arith.truncf %0 : vector<16x64xf32> to vector<16x64xbf16>
    %c0_1 = arith.constant 0 : index
    %c0_2 = arith.constant 0 : index
    %2 = vector.load %arg1[%c0_1, %c0_2] : memref<64x128xbf16, #tpu.memory_space<vmem>>, vector<64x128xbf16>
    %cst = arith.constant dense<0.000000e+00> : vector<16x128xf32>
    %3 = tpu.matmul %1, %2, %cst {dimension_numbers = #tpu.dot_dimension_numbers<[1], [0], [0], [1], [0, 0, 1, 1], [], []>} : vector<16x64xbf16>, vector<64x128xbf16>, vector<16x128xf32> -> vector<16x128xf32>
    %c0_3 = arith.constant 0 : index
    %c0_4 = arith.constant 0 : index
    %4 = vector.load %arg2[%c0_3, %c0_4] : memref<1x128xf32, #tpu.memory_space<vmem>>, vector<1x128xf32>
    %5 = vector.broadcast %4 : vector<1x128xf32> to vector<16x128xf32>
    %6 = arith.addf %3, %5 : vector<16x128xf32>
    %c0_5 = arith.constant 0 : index
    %c0_6 = arith.constant 0 : index
    %7 = vector.load %arg3[%c0_5, %c0_6] : memref<16x128xf32, #tpu.memory_space<vmem>>, vector<16x128xf32>
    tpu.vector_store %arg3[%c0_5, %c0_6], %6 {strides = array<i32>} : memref<16x128xf32, #tpu.memory_space<vmem>>, vector<16x128xf32>,
    return
  }
}

module attributes {stable_mosaic.version = 11 : i64} {
  func.func @_lstm_step_kernel(%arg0: i32, %arg1: i32, %arg2: memref<1x2x128xf32, #tpu.memory_space<vmem>>, %arg3: memref<1x2x1xf32, #tpu.memory_space<vmem>>, %arg4: memref<1x32x128xbf16, #tpu.memory_space<vmem>>, %arg5: memref<1x1x2x32xf32, #tpu.memory_space<vmem>>, %arg6: memref<2x32xf32, #tpu.memory_space<vmem>>, %arg7: memref<2x32xf32, #tpu.memory_space<vmem>>) attributes {dimension_semantics = [#tpu.dimension_semantics<parallel>, #tpu.dimension_semantics<arbitrary>], iteration_bounds = array<i64: 1, 8>, scalar_prefetch = 0 : i64, scratch_operands = 2 : i64, tpu.core_type = #tpu.core_type<tc>, window_params = [{transform_indices = @transform_0, window_bounds = array<i64: 1, 2, 128>}, {transform_indices = @transform_1, window_bounds = array<i64: 1, 2, 1>}, {transform_indices = @transform_2, window_bounds = array<i64: 1, 32, 128>}, {transform_indices = @transform_3, window_bounds = array<i64: 1, 1, 2, 32>}]} {
    %c0_i32 = arith.constant 0 : i32
    %0 = arith.cmpi eq, %arg1, %c0_i32 : i32
    %1 = arith.extui %0 : i1 to i32
    %c0_i32_0 = arith.constant 0 : i32
    %2 = arith.cmpi ne, %1, %c0_i32_0 : i32
    scf.if %2 {
      %cst_26 = arith.constant 0.000000e+00 : f32
      %60 = vector.broadcast %cst_26 : f32 to vector<2x32xf32>
      %c0_27 = arith.constant 0 : index
      %c0_28 = arith.constant 0 : index
      %61 = vector.load %arg6[%c0_27, %c0_28] : memref<2x32xf32, #tpu.memory_space<vmem>>, vector<2x32xf32>
      tpu.vector_store %arg6[%c0_27, %c0_28], %60 {strides = array<i32>} : memref<2x32xf32, #tpu.memory_space<vmem>>, vector<2x32xf32>,
      %cst_29 = arith.constant 0.000000e+00 : f32
      %62 = vector.broadcast %cst_29 : f32 to vector<2x32xf32>
      %c0_30 = arith.constant 0 : index
      %c0_31 = arith.constant 0 : index
      %63 = vector.load %arg7[%c0_30, %c0_31] : memref<2x32xf32, #tpu.memory_space<vmem>>, vector<2x32xf32>
      tpu.vector_store %arg7[%c0_30, %c0_31], %62 {strides = array<i32>} : memref<2x32xf32, #tpu.memory_space<vmem>>, vector<2x32xf32>,
    } else {
    }
    %c0 = arith.constant 0 : index
    %c0_1 = arith.constant 0 : index
    %3 = vector.load %arg6[%c0, %c0_1] : memref<2x32xf32, #tpu.memory_space<vmem>>, vector<2x32xf32>
    %c0_2 = arith.constant 0 : index
    %c0_3 = arith.constant 0 : index
    %4 = vector.load %arg7[%c0_2, %c0_3] : memref<2x32xf32, #tpu.memory_space<vmem>>, vector<2x32xf32>
    %c0_4 = arith.constant 0 : index
    %c0_5 = arith.constant 0 : index
    %c0_6 = arith.constant 0 : index
    %5 = vector.load %arg2[%c0_4, %c0_5, %c0_6] : memref<1x2x128xf32, #tpu.memory_space<vmem>>, vector<1x2x128xf32>
    %6 = vector.shape_cast %5 : vector<1x2x128xf32> to vector<2x128xf32>
    %7 = arith.truncf %3 : vector<2x32xf32> to vector<2x32xbf16>
    %c0_7 = arith.constant 0 : index
    %c0_8 = arith.constant 0 : index
    %c0_9 = arith.constant 0 : index
    %8 = vector.load %arg4[%c0_7, %c0_8, %c0_9] : memref<1x32x128xbf16, #tpu.memory_space<vmem>>, vector<1x32x128xbf16>
    %9 = vector.shape_cast %8 : vector<1x32x128xbf16> to vector<32x128xbf16>
    %cst = arith.constant dense<0.000000e+00> : vector<2x128xf32>
    %10 = tpu.matmul %7, %9, %cst {dimension_numbers = #tpu.dot_dimension_numbers<[1], [0], [0], [1], [0, 0, 1, 1], [], []>} : vector<2x32xbf16>, vector<32x128xbf16>, vector<2x128xf32> -> vector<2x128xf32>
    %11 = arith.addf %6, %10 : vector<2x128xf32>
    %12 = vector.extract_strided_slice %11 {offsets = [0, 0], sizes = [2, 32], strides = [1, 1]} : vector<2x128xf32> to vector<2x32xf32>
    %13 = arith.negf %12 : vector<2x32xf32>
    %14 = math.exp %13 : vector<2x32xf32>
    %cst_10 = arith.constant 1.000000e+00 : f32
    %15 = vector.broadcast %cst_10 : f32 to vector<2x32xf32>
    %16 = arith.addf %15, %14 : vector<2x32xf32>
    %17 = arith.divf %15, %16 : vector<2x32xf32>
    %18 = vector.extract_strided_slice %11 {offsets = [0, 32], sizes = [2, 32], strides = [1, 1]} : vector<2x128xf32> to vector<2x32xf32>
    %19 = arith.negf %18 : vector<2x32xf32>
    %20 = math.exp %19 : vector<2x32xf32>
    %cst_11 = arith.constant 1.000000e+00 : f32
    %21 = vector.broadcast %cst_11 : f32 to vector<2x32xf32>
    %22 = arith.addf %21, %20 : vector<2x32xf32>
    %23 = arith.divf %21, %22 : vector<2x32xf32>
    %24 = vector.extract_strided_slice %11 {offsets = [0, 64], sizes = [2, 32], strides = [1, 1]} : vector<2x128xf32> to vector<2x32xf32>
    %25 = math.tanh %24 : vector<2x32xf32>
    %26 = vector.extract_strided_slice %11 {offsets = [0, 96], sizes = [2, 32], strides = [1, 1]} : vector<2x128xf32> to vector<2x32xf32>
    %27 = arith.negf %26 : vector<2x32xf32>
    %28 = math.exp %27 : vector<2x32xf32>
    %cst_12 = arith.constant 1.000000e+00 : f32
    %29 = vector.broadcast %cst_12 : f32 to vector<2x32xf32>
    %30 = arith.addf %29, %28 : vector<2x32xf32>
    %31 = arith.divf %29, %30 : vector<2x32xf32>
    %32 = arith.mulf %23, %4 : vector<2x32xf32>
    %33 = arith.mulf %17, %25 : vector<2x32xf32>
    %34 = arith.addf %32, %33 : vector<2x32xf32>
    %35 = math.tanh %34 : vector<2x32xf32>
    %36 = arith.mulf %31, %35 : vector<2x32xf32>
    %c0_13 = arith.constant 0 : index
    %c0_14 = arith.constant 0 : index
    %c0_15 = arith.constant 0 : index
    %37 = vector.load %arg3[%c0_13, %c0_14, %c0_15] : memref<1x2x1xf32, #tpu.memory_space<vmem>>, vector<1x2x1xf32>
    %38 = vector.shape_cast %37 : vector<1x2x1xf32> to vector<2x1xf32>
    %39 = vector.broadcast %38 : vector<2x1xf32> to vector<2x32xf32>
    %40 = arith.mulf %39, %34 : vector<2x32xf32>
    %cst_16 = arith.constant 1.000000e+00 : f32
    %41 = vector.broadcast %cst_16 : f32 to vector<2x1xf32>
    %42 = arith.subf %41, %38 : vector<2x1xf32>
    %43 = vector.broadcast %42 : vector<2x1xf32> to vector<2x32xf32>
    %44 = arith.mulf %43, %4 : vector<2x32xf32>
    %45 = arith.addf %40, %44 : vector<2x32xf32>
    %c0_17 = arith.constant 0 : index
    %c0_18 = arith.constant 0 : index
    %46 = vector.load %arg7[%c0_17, %c0_18] : memref<2x32xf32, #tpu.memory_space<vmem>>, vector<2x32xf32>
    tpu.vector_store %arg7[%c0_17, %c0_18], %45 {strides = array<i32>} : memref<2x32xf32, #tpu.memory_space<vmem>>, vector<2x32xf32>,
    %47 = vector.broadcast %38 : vector<2x1xf32> to vector<2x32xf32>
    %48 = arith.mulf %47, %36 : vector<2x32xf32>
    %cst_19 = arith.constant 1.000000e+00 : f32
    %49 = vector.broadcast %cst_19 : f32 to vector<2x1xf32>
    %50 = arith.subf %49, %38 : vector<2x1xf32>
    %51 = vector.broadcast %50 : vector<2x1xf32> to vector<2x32xf32>
    %52 = arith.mulf %51, %3 : vector<2x32xf32>
    %53 = arith.addf %48, %52 : vector<2x32xf32>
    %c0_20 = arith.constant 0 : index
    %c0_21 = arith.constant 0 : index
    %54 = vector.load %arg6[%c0_20, %c0_21] : memref<2x32xf32, #tpu.memory_space<vmem>>, vector<2x32xf32>
    tpu.vector_store %arg6[%c0_20, %c0_21], %53 {strides = array<i32>} : memref<2x32xf32, #tpu.memory_space<vmem>>, vector<2x32xf32>,
    %55 = vector.broadcast %38 : vector<2x1xf32> to vector<2x32xf32>
    %56 = arith.mulf %55, %36 : vector<2x32xf32>
    %c0_22 = arith.constant 0 : index
    %c0_23 = arith.constant 0 : index
    %c0_24 = arith.constant 0 : index
    %c0_25 = arith.constant 0 : index
    %57 = vector.load %arg5[%c0_22, %c0_23, %c0_24, %c0_25] : memref<1x1x2x32xf32, #tpu.memory_space<vmem>>, vector<1x1x2x32xf32>
    %58 = vector.shape_cast %57 : vector<1x1x2x32xf32> to vector<2x32xf32>
    %59 = vector.shape_cast %56 : vector<2x32xf32> to vector<1x1x2x32xf32>
    tpu.vector_store %arg5[%c0_22, %c0_23, %c0_24, %c0_25], %59 {strides = array<i32>} : memref<1x1x2x32xf32, #tpu.memory_space<vmem>>, vector<1x1x2x32xf32>,
    return
  }
  func.func @transform_0(%arg0: i32, %arg1: i32) -> (i32, i32, i32) {
    %c2_i32 = arith.constant 2 : i32
    %0 = arith.muli %c2_i32, %arg1 : i32
    %c7_i32 = arith.constant 7 : i32
    %1 = arith.subi %c7_i32, %0 : i32
    %2 = arith.muli %arg0, %1 : i32
    %3 = arith.addi %arg1, %2 : i32
    %c0_i32 = arith.constant 0 : i32
    %c0_i32_0 = arith.constant 0 : i32
    return %3, %c0_i32, %arg0 : i32, i32, i32
  }
  func.func @transform_1(%arg0: i32, %arg1: i32) -> (i32, i32, i32) {
    %c2_i32 = arith.constant 2 : i32
    %0 = arith.muli %c2_i32, %arg1 : i32
    %c7_i32 = arith.constant 7 : i32
    %1 = arith.subi %c7_i32, %0 : i32
    %2 = arith.muli %arg0, %1 : i32
    %3 = arith.addi %arg1, %2 : i32
    %c0_i32 = arith.constant 0 : i32
    %c0_i32_0 = arith.constant 0 : i32
    %c0_i32_1 = arith.constant 0 : i32
    return %3, %c0_i32, %c0_i32_0 : i32, i32, i32
  }
  func.func @transform_2(%arg0: i32, %arg1: i32) -> (i32, i32, i32) {
    %c0_i32 = arith.constant 0 : i32
    %c0_i32_0 = arith.constant 0 : i32
    %c0_i32_1 = arith.constant 0 : i32
    return %arg0, %c0_i32, %c0_i32_0 : i32, i32, i32
  }
  func.func @transform_3(%arg0: i32, %arg1: i32) -> (i32, i32, i32, i32) {
    %c2_i32 = arith.constant 2 : i32
    %0 = arith.muli %c2_i32, %arg1 : i32
    %c7_i32 = arith.constant 7 : i32
    %1 = arith.subi %c7_i32, %0 : i32
    %2 = arith.muli %arg0, %1 : i32
    %3 = arith.addi %arg1, %2 : i32
    %c0_i32 = arith.constant 0 : i32
    %c0_i32_0 = arith.constant 0 : i32
    %c0_i32_1 = arith.constant 0 : i32
    return %arg0, %3, %c0_i32, %c0_i32_0 : i32, i32, i32, i32
  }
}

module attributes {stable_mosaic.version = 11 : i64} {
  func.func @_linear_kernel(%arg0: memref<16x32xf32, #tpu.memory_space<vmem>>, %arg1: memref<32x128xbf16, #tpu.memory_space<vmem>>, %arg2: memref<1x128xf32, #tpu.memory_space<vmem>>, %arg3: memref<16x128xf32, #tpu.memory_space<vmem>>) attributes {dimension_semantics = [], scalar_prefetch = 0 : i64, scratch_operands = 0 : i64, tpu.core_type = #tpu.core_type<tc>} {
    %c0 = arith.constant 0 : index
    %c0_0 = arith.constant 0 : index
    %0 = vector.load %arg0[%c0, %c0_0] : memref<16x32xf32, #tpu.memory_space<vmem>>, vector<16x32xf32>
    %1 = arith.truncf %0 : vector<16x32xf32> to vector<16x32xbf16>
    %c0_1 = arith.constant 0 : index
    %c0_2 = arith.constant 0 : index
    %2 = vector.load %arg1[%c0_1, %c0_2] : memref<32x128xbf16, #tpu.memory_space<vmem>>, vector<32x128xbf16>
    %cst = arith.constant dense<0.000000e+00> : vector<16x128xf32>
    %3 = tpu.matmul %1, %2, %cst {dimension_numbers = #tpu.dot_dimension_numbers<[1], [0], [0], [1], [0, 0, 1, 1], [], []>} : vector<16x32xbf16>, vector<32x128xbf16>, vector<16x128xf32> -> vector<16x128xf32>
    %c0_3 = arith.constant 0 : index
    %c0_4 = arith.constant 0 : index
    %4 = vector.load %arg2[%c0_3, %c0_4] : memref<1x128xf32, #tpu.memory_space<vmem>>, vector<1x128xf32>
    %5 = vector.broadcast %4 : vector<1x128xf32> to vector<16x128xf32>
    %6 = arith.addf %3, %5 : vector<16x128xf32>
    %c0_5 = arith.constant 0 : index
    %c0_6 = arith.constant 0 : index
    %7 = vector.load %arg3[%c0_5, %c0_6] : memref<16x128xf32, #tpu.memory_space<vmem>>, vector<16x128xf32>
    tpu.vector_store %arg3[%c0_5, %c0_6], %6 {strides = array<i32>} : memref<16x128xf32, #tpu.memory_space<vmem>>, vector<16x128xf32>,
    return
  }
}

module attributes {stable_mosaic.version = 11 : i64} {
  func.func @_matmul_kernel(%arg0: memref<16x32xf32, #tpu.memory_space<vmem>>, %arg1: memref<32x32xbf16, #tpu.memory_space<vmem>>, %arg2: memref<16x32xf32, #tpu.memory_space<vmem>>) attributes {dimension_semantics = [], scalar_prefetch = 0 : i64, scratch_operands = 0 : i64, tpu.core_type = #tpu.core_type<tc>} {
    %c0 = arith.constant 0 : index
    %c0_0 = arith.constant 0 : index
    %0 = vector.load %arg0[%c0, %c0_0] : memref<16x32xf32, #tpu.memory_space<vmem>>, vector<16x32xf32>
    %1 = arith.truncf %0 : vector<16x32xf32> to vector<16x32xbf16>
    %c0_1 = arith.constant 0 : index
    %c0_2 = arith.constant 0 : index
    %2 = vector.load %arg1[%c0_1, %c0_2] : memref<32x32xbf16, #tpu.memory_space<vmem>>, vector<32x32xbf16>
    %cst = arith.constant dense<0.000000e+00> : vector<16x32xf32>
    %3 = tpu.matmul %1, %2, %cst {dimension_numbers = #tpu.dot_dimension_numbers<[1], [0], [0], [1], [0, 0, 1, 1], [], []>} : vector<16x32xbf16>, vector<32x32xbf16>, vector<16x32xf32> -> vector<16x32xf32>
    %c0_3 = arith.constant 0 : index
    %c0_4 = arith.constant 0 : index
    %4 = vector.load %arg2[%c0_3, %c0_4] : memref<16x32xf32, #tpu.memory_space<vmem>>, vector<16x32xf32>
    tpu.vector_store %arg2[%c0_3, %c0_4], %3 {strides = array<i32>} : memref<16x32xf32, #tpu.memory_space<vmem>>, vector<16x32xf32>,
    return
  }
}

module attributes {stable_mosaic.version = 11 : i64} {
  func.func @_linear_kernel(%arg0: memref<16x32xf32, #tpu.memory_space<vmem>>, %arg1: memref<32x32xbf16, #tpu.memory_space<vmem>>, %arg2: memref<1x32xf32, #tpu.memory_space<vmem>>, %arg3: memref<16x32xf32, #tpu.memory_space<vmem>>) attributes {dimension_semantics = [], scalar_prefetch = 0 : i64, scratch_operands = 0 : i64, tpu.core_type = #tpu.core_type<tc>} {
    %c0 = arith.constant 0 : index
    %c0_0 = arith.constant 0 : index
    %0 = vector.load %arg0[%c0, %c0_0] : memref<16x32xf32, #tpu.memory_space<vmem>>, vector<16x32xf32>
    %1 = arith.truncf %0 : vector<16x32xf32> to vector<16x32xbf16>
    %c0_1 = arith.constant 0 : index
    %c0_2 = arith.constant 0 : index
    %2 = vector.load %arg1[%c0_1, %c0_2] : memref<32x32xbf16, #tpu.memory_space<vmem>>, vector<32x32xbf16>
    %cst = arith.constant dense<0.000000e+00> : vector<16x32xf32>
    %3 = tpu.matmul %1, %2, %cst {dimension_numbers = #tpu.dot_dimension_numbers<[1], [0], [0], [1], [0, 0, 1, 1], [], []>} : vector<16x32xbf16>, vector<32x32xbf16>, vector<16x32xf32> -> vector<16x32xf32>
    %c0_3 = arith.constant 0 : index
    %c0_4 = arith.constant 0 : index
    %4 = vector.load %arg2[%c0_3, %c0_4] : memref<1x32xf32, #tpu.memory_space<vmem>>, vector<1x32xf32>
    %5 = vector.broadcast %4 : vector<1x32xf32> to vector<16x32xf32>
    %6 = arith.addf %3, %5 : vector<16x32xf32>
    %c0_5 = arith.constant 0 : index
    %c0_6 = arith.constant 0 : index
    %7 = vector.load %arg3[%c0_5, %c0_6] : memref<16x32xf32, #tpu.memory_space<vmem>>, vector<16x32xf32>
    tpu.vector_store %arg3[%c0_5, %c0_6], %6 {strides = array<i32>} : memref<16x32xf32, #tpu.memory_space<vmem>>, vector<16x32xf32>,
    return
  }
}

module attributes {stable_mosaic.version = 11 : i64} {
  func.func @_attn_kernel(%arg0: memref<8x2x32xf32, #tpu.memory_space<vmem>>, %arg1: memref<8x2x32xf32, #tpu.memory_space<vmem>>, %arg2: memref<8x2x32xf32, #tpu.memory_space<vmem>>, %arg3: memref<1x32xf32, #tpu.memory_space<vmem>>, %arg4: memref<1x8x2xf32, #tpu.memory_space<vmem>>, %arg5: memref<8x2x32xf32, #tpu.memory_space<vmem>>) attributes {dimension_semantics = [], scalar_prefetch = 0 : i64, scratch_operands = 0 : i64, tpu.core_type = #tpu.core_type<tc>} {
    %c0 = arith.constant 0 : index
    %c0_0 = arith.constant 0 : index
    %c0_1 = arith.constant 0 : index
    %0 = vector.load %arg0[%c0, %c0_0, %c0_1] : memref<8x2x32xf32, #tpu.memory_space<vmem>>, vector<8x2x32xf32>
    %c0_2 = arith.constant 0 : index
    %c0_3 = arith.constant 0 : index
    %c0_4 = arith.constant 0 : index
    %1 = vector.load %arg1[%c0_2, %c0_3, %c0_4] : memref<8x2x32xf32, #tpu.memory_space<vmem>>, vector<8x2x32xf32>
    %c0_5 = arith.constant 0 : index
    %c0_6 = arith.constant 0 : index
    %c0_7 = arith.constant 0 : index
    %2 = vector.load %arg2[%c0_5, %c0_6, %c0_7] : memref<8x2x32xf32, #tpu.memory_space<vmem>>, vector<8x2x32xf32>
    %3 = vector.shape_cast %0 : vector<8x2x32xf32> to vector<8x1x2x32xf32>
    %4 = vector.shape_cast %1 : vector<8x2x32xf32> to vector<1x8x2x32xf32>
    %5 = vector.broadcast %3 : vector<8x1x2x32xf32> to vector<8x8x2x32xf32>
    %6 = vector.broadcast %4 : vector<1x8x2x32xf32> to vector<8x8x2x32xf32>
    %7 = arith.addf %5, %6 : vector<8x8x2x32xf32>
    %8 = math.tanh %7 : vector<8x8x2x32xf32>
    %c0_8 = arith.constant 0 : index
    %c0_9 = arith.constant 0 : index
    %9 = vector.load %arg3[%c0_8, %c0_9] : memref<1x32xf32, #tpu.memory_space<vmem>>, vector<1x32xf32>
    %10 = vector.shape_cast %9 : vector<1x32xf32> to vector<1x1x1x32xf32>
    %11 = vector.broadcast %10 : vector<1x1x1x32xf32> to vector<8x8x2x32xf32>
    %12 = arith.mulf %8, %11 : vector<8x8x2x32xf32>
    %cst = arith.constant dense<0.000000e+00> : vector<8x8x2xf32>
    %13 = vector.multi_reduction <add>, %12, %cst [3] : vector<8x8x2x32xf32> to vector<8x8x2xf32>
    %c0_10 = arith.constant 0 : index
    %c0_11 = arith.constant 0 : index
    %c0_12 = arith.constant 0 : index
    %14 = vector.load %arg4[%c0_10, %c0_11, %c0_12] : memref<1x8x2xf32, #tpu.memory_space<vmem>>, vector<1x8x2xf32>
    %cst_13 = arith.constant 0.000000e+00 : f32
    %15 = vector.broadcast %cst_13 : f32 to vector<1x8x2xf32>
    %16 = arith.cmpf ogt, %14, %15 : vector<1x8x2xf32>
    %cst_14 = arith.constant -3.40282347E+38 : f32
    %17 = vector.shape_cast %16 : vector<1x8x2xi1> to vector<1x8x2xi1>
    %18 = vector.broadcast %17 : vector<1x8x2xi1> to vector<8x8x2xi1>
    %19 = vector.broadcast %cst_14 : f32 to vector<8x8x2xf32>
    %20 = arith.select %18, %13, %19 : vector<8x8x2xi1>, vector<8x8x2xf32>
    %cst_15 = arith.constant dense<0xFF800000> : vector<8x2xf32>
    %21 = vector.multi_reduction <maximumf>, %20, %cst_15 [1] : vector<8x8x2xf32> to vector<8x2xf32>
    %22 = vector.shape_cast %21 : vector<8x2xf32> to vector<8x1x2xf32>
    %23 = vector.broadcast %22 : vector<8x1x2xf32> to vector<8x8x2xf32>
    %24 = arith.subf %20, %23 : vector<8x8x2xf32>
    %25 = math.exp %24 : vector<8x8x2xf32>
    %cst_16 = arith.constant dense<0.000000e+00> : vector<8x2xf32>
    %26 = vector.multi_reduction <add>, %25, %cst_16 [1] : vector<8x8x2xf32> to vector<8x2xf32>
    %27 = vector.shape_cast %26 : vector<8x2xf32> to vector<8x1x2xf32>
    %28 = vector.broadcast %27 : vector<8x1x2xf32> to vector<8x8x2xf32>
    %29 = arith.divf %25, %28 : vector<8x8x2xf32>
    %30 = vector.shape_cast %29 : vector<8x8x2xf32> to vector<8x8x2x1xf32>
    %31 = vector.shape_cast %2 : vector<8x2x32xf32> to vector<1x8x2x32xf32>
    %32 = vector.broadcast %30 : vector<8x8x2x1xf32> to vector<8x8x2x32xf32>
    %33 = vector.broadcast %31 : vector<1x8x2x32xf32> to vector<8x8x2x32xf32>
    %34 = arith.mulf %32, %33 : vector<8x8x2x32xf32>
    %cst_17 = arith.constant dense<0.000000e+00> : vector<8x2x32xf32>
    %35 = vector.multi_reduction <add>, %34, %cst_17 [1] : vector<8x8x2x32xf32> to vector<8x2x32xf32>
    %c0_18 = arith.constant 0 : index
    %c0_19 = arith.constant 0 : index
    %c0_20 = arith.constant 0 : index
    %36 = vector.load %arg5[%c0_18, %c0_19, %c0_20] : memref<8x2x32xf32, #tpu.memory_space<vmem>>, vector<8x2x32xf32>
    tpu.vector_store %arg5[%c0_18, %c0_19, %c0_20], %35 {strides = array<i32>} : memref<8x2x32xf32, #tpu.memory_space<vmem>>, vector<8x2x32xf32>,
    return
  }
}

module attributes {stable_mosaic.version = 11 : i64} {
  func.func @_linear_kernel(%arg0: memref<16x32xf32, #tpu.memory_space<vmem>>, %arg1: memref<32x64xbf16, #tpu.memory_space<vmem>>, %arg2: memref<1x64xf32, #tpu.memory_space<vmem>>, %arg3: memref<16x64xf32, #tpu.memory_space<vmem>>) attributes {dimension_semantics = [], scalar_prefetch = 0 : i64, scratch_operands = 0 : i64, tpu.core_type = #tpu.core_type<tc>} {
    %c0 = arith.constant 0 : index
    %c0_0 = arith.constant 0 : index
    %0 = vector.load %arg0[%c0, %c0_0] : memref<16x32xf32, #tpu.memory_space<vmem>>, vector<16x32xf32>
    %1 = arith.truncf %0 : vector<16x32xf32> to vector<16x32xbf16>
    %c0_1 = arith.constant 0 : index
    %c0_2 = arith.constant 0 : index
    %2 = vector.load %arg1[%c0_1, %c0_2] : memref<32x64xbf16, #tpu.memory_space<vmem>>, vector<32x64xbf16>
    %cst = arith.constant dense<0.000000e+00> : vector<16x64xf32>
    %3 = tpu.matmul %1, %2, %cst {dimension_numbers = #tpu.dot_dimension_numbers<[1], [0], [0], [1], [0, 0, 1, 1], [], []>} : vector<16x32xbf16>, vector<32x64xbf16>, vector<16x64xf32> -> vector<16x64xf32>
    %c0_3 = arith.constant 0 : index
    %c0_4 = arith.constant 0 : index
    %4 = vector.load %arg2[%c0_3, %c0_4] : memref<1x64xf32, #tpu.memory_space<vmem>>, vector<1x64xf32>
    %5 = vector.broadcast %4 : vector<1x64xf32> to vector<16x64xf32>
    %6 = arith.addf %3, %5 : vector<16x64xf32>
    %c0_5 = arith.constant 0 : index
    %c0_6 = arith.constant 0 : index
    %7 = vector.load %arg3[%c0_5, %c0_6] : memref<16x64xf32, #tpu.memory_space<vmem>>, vector<16x64xf32>
    tpu.vector_store %arg3[%c0_5, %c0_6], %6 {strides = array<i32>} : memref<16x64xf32, #tpu.memory_space<vmem>>, vector<16x64xf32>,
    return
  }
}

</mosaic_0001>

<llo_original>
// kernel: gnmt_forward.20
$region0: #{gnmt_forward.20}
  #allocation0 [shape = 'u32[]', space=smem, size = 0x4, offset = 0x4, fixed_abs, tag = 'smem constant byte address 0x4 - core index']
  #allocation1 [shape = 'u32[72,128]{1,0:T(1,128)}', space=vmem, size = 0x9000, scoped, tag = 'internal scratch']
  %s0 = inlined_call_operand.vmem [shape: f32[16,32], index: 0, kind: input, shape index: {}]
  %s1 = inlined_call_operand.vmem [shape: bf16[32,256], index: 1, kind: input, shape index: {}]
  %s2 = inlined_call_operand.vmem [shape: f32[1,256], index: 2, kind: input, shape index: {}]
  %s3 = inlined_call_operand.vmem [shape: f32[16,256], index: 3, kind: output, shape index: {}]
  %s4 = sld [smem:[#allocation0]]
  $region22: #{gnmt_forward.20} parent=0
    _
  %s6 = ssub.s32 1, %s4
  %s7 = scalar_select 0, %s6, %s4
  // Predicated region
  $region2: #{gnmt_forward.20} parent=0 // pred_check
    _
  $region3: #{gnmt_forward.20} parent=0 // pred_check_branch
    %9 = sbr.rel (0) target = $region5
  $region4: #{gnmt_forward.20} parent=0 // pred_region
    _
  $region5: #{gnmt_forward.20} parent=0 // pred_fallthru
    _
  // Predicated region
  $region6: #{gnmt_forward.20} parent=0 // pred_check
    _
  $region7: #{gnmt_forward.20} parent=0 // pred_check_branch
    %11 = sbr.rel (0) target = $region9
  $region8: #{gnmt_forward.20} parent=0 // pred_region
    _
  $region9: #{gnmt_forward.20} parent=0 // pred_fallthru
    _
  // Predicated region
  $region10: #{gnmt_forward.20} parent=0 // pred_check
    _
  $region11: #{gnmt_forward.20} parent=0 // pred_check_branch
    %13 = sbr.rel (0) target = $region13
  $region12: #{gnmt_forward.20} parent=0 // pred_region
    _
  $region13: #{gnmt_forward.20} parent=0 // pred_fallthru
    _
  %v15 = vld [vmem:[%s0] sm:$0xff]
  %v16 = vld [vmem:[%s0 + $0x8] sm:$0xff]
  %v17 = vpack.c.bf16 %v16, %v15
  %v18 = vld [vmem:[%s1] sm:$0xff]
  %v19 = vld [vmem:[%s1 + $0x8] sm:$0xff]
  %v20 = vld [vmem:[%s1 + $0x10] sm:$0xff]
  %v21 = vld [vmem:[%s1 + $0x18] sm:$0xff]
  %v22 = vld [vmem:[%s2] sm:$0x3]
  %v24 = vperm.slane %v22, 0
  %v25 = vperm.slane %v22, 1
  %v32 = vunpack.c.l.b16 %v18
  %v33 = vunpack.c.h.b16 %v18
  %v34 = vunpack.c.l.b16 %v19
  %v35 = vunpack.c.h.b16 %v19
  %v36 = vunpack.c.l.b16 %v20
  %v37 = vunpack.c.h.b16 %v20
  %v38 = vunpack.c.l.b16 %v21
  %v39 = vunpack.c.h.b16 %v21
  %v40 = vpack.c.b16 %v34, %v32
  %v41 = vpack.c.b16 %v35, %v33
  %v42 = vpack.c.b16 %v38, %v36
  %v43 = vpack.c.b16 %v39, %v37
  %vm48 = vcmask 261120
  %v50 = vsel %vm48, %v17, 0
  %52 = vmatpush.bf16.msra.mxu0 0
  %53 = vmatpush.bf16.msra.mxu0 0
  %54 = vmatpush.bf16.msra.mxu0 0
  %55 = vmatpush.bf16.msra.mxu0 0
  %56 = vmatpush.bf16.msra.mxu0 0
  %57 = vmatpush.bf16.msra.mxu0 0
  %58 = vmatpush.bf16.msra.mxu0 %v42
  %59 = vmatpush.bf16.msra.mxu0 %v40
  %60 = vmatmul.bf16.gmra.mxu0 %v50
  %v61 = vpop.f32.mrf.mxu0
  %v62 = vadd.f32 %v24, %v61
  %v63 = vpop.f32.mrf.mxu0
  %v64 = vadd.f32 %v24, %v63
  %65 = vdwg.mxu0
  %66 = vmatpush.bf16.msra.mxu0 0
  %67 = vmatpush.bf16.msra.mxu0 0
  %68 = vmatpush.bf16.msra.mxu0 0
  %69 = vmatpush.bf16.msra.mxu0 0
  %70 = vmatpush.bf16.msra.mxu0 0
  %71 = vmatpush.bf16.msra.mxu0 0
  %72 = vmatpush.bf16.msra.mxu0 %v43
  %73 = vmatpush.bf16.msra.mxu0 %v41
  %74 = vmatmul.bf16.gmra.mxu0 %v50
  %v75 = vpop.f32.mrf.mxu0
  %v76 = vadd.f32 %v25, %v75
  %v77 = vpop.f32.mrf.mxu0
  %v78 = vadd.f32 %v25, %v77
  %79 = vdwg.mxu0
  %80 = vst [vmem:[%s3] sm:$0xff] %v62
  %81 = vst [vmem:[%s3 + $0x8] sm:$0xff] %v76
  %82 = vst [vmem:[%s3 + $0x10] sm:$0xff] %v64
  %83 = vst [vmem:[%s3 + $0x18] sm:$0xff] %v78
  // Predicated region
  $region14: #{gnmt_forward.20} parent=0 // pred_check
    _
  $region15: #{gnmt_forward.20} parent=0 // pred_check_branch
    %85 = sbr.rel (0) target = $region17
  $region16: #{gnmt_forward.20} parent=0 // pred_region
    _
  $region17: #{gnmt_forward.20} parent=0 // pred_fallthru
    _
  // Predicated region
  $region18: #{gnmt_forward.20} parent=0 // pred_check
    _
  $region19: #{gnmt_forward.20} parent=0 // pred_check_branch
    %87 = sbr.rel (0) target = $region21
  $region20: #{gnmt_forward.20} parent=0 // pred_region
    _
  $region21: #{gnmt_forward.20} parent=0 // pred_fallthru
    _

// kernel: gnmt_forward.22
$region0: #{gnmt_forward.22}
  #allocation0 [shape = 'u32[]', space=smem, size = 0x4, offset = 0x4, fixed_abs, tag = 'smem constant byte address 0x4 - core index']
  #allocation1 [shape = 'u32[72,128]{1,0:T(1,128)}', space=vmem, size = 0x9000, scoped, tag = 'internal scratch']
  %s0 = inlined_call_operand.vmem [shape: f32[16,64], index: 0, kind: input, shape index: {}]
  %s1 = inlined_call_operand.vmem [shape: bf16[64,128], index: 1, kind: input, shape index: {}]
  %s2 = inlined_call_operand.vmem [shape: f32[1,128], index: 2, kind: input, shape index: {}]
  %s3 = inlined_call_operand.vmem [shape: f32[16,128], index: 3, kind: output, shape index: {}]
  %s4 = sld [smem:[#allocation0]]
  $region22: #{gnmt_forward.22} parent=0
    _
  %s6 = ssub.s32 1, %s4
  %s7 = scalar_select 0, %s6, %s4
  // Predicated region
  $region2: #{gnmt_forward.22} parent=0 // pred_check
    _
  $region3: #{gnmt_forward.22} parent=0 // pred_check_branch
    %9 = sbr.rel (0) target = $region5
  $region4: #{gnmt_forward.22} parent=0 // pred_region
    _
  $region5: #{gnmt_forward.22} parent=0 // pred_fallthru
    _
  // Predicated region
  $region6: #{gnmt_forward.22} parent=0 // pred_check
    _
  $region7: #{gnmt_forward.22} parent=0 // pred_check_branch
    %11 = sbr.rel (0) target = $region9
  $region8: #{gnmt_forward.22} parent=0 // pred_region
    _
  $region9: #{gnmt_forward.22} parent=0 // pred_fallthru
    _
  // Predicated region
  $region10: #{gnmt_forward.22} parent=0 // pred_check
    _
  $region11: #{gnmt_forward.22} parent=0 // pred_check_branch
    %13 = sbr.rel (0) target = $region13
  $region12: #{gnmt_forward.22} parent=0 // pred_region
    _
  $region13: #{gnmt_forward.22} parent=0 // pred_fallthru
    _
  %v15 = vld [vmem:[%s0] sm:$0xff]
  %v16 = vld [vmem:[%s0 + $0x8] sm:$0xff]
  %v17 = vpack.c.bf16 %v16, %v15
  %v18 = vld [vmem:[%s1] sm:$0xf]
  %v19 = vld [vmem:[%s1 + $0x4] sm:$0xf]
  %v20 = vld [vmem:[%s1 + $0x8] sm:$0xf]
  %v21 = vld [vmem:[%s1 + $0xc] sm:$0xf]
  %v22 = vld [vmem:[%s1 + $0x10] sm:$0xf]
  %v23 = vld [vmem:[%s1 + $0x14] sm:$0xf]
  %v24 = vld [vmem:[%s1 + $0x18] sm:$0xf]
  %v25 = vld [vmem:[%s1 + $0x1c] sm:$0xf]
  %v26 = vld [vmem:[%s2] sm:$0x1]
  %v28 = vperm.slane %v26, 0
  %v38 = vunpack.c.l.b16 %v18
  %v39 = vunpack.c.l.b16 %v19
  %v40 = vunpack.c.l.b16 %v20
  %v41 = vunpack.c.l.b16 %v21
  %v42 = vunpack.c.l.b16 %v22
  %v43 = vunpack.c.l.b16 %v23
  %v44 = vunpack.c.l.b16 %v24
  %v45 = vunpack.c.l.b16 %v25
  %v46 = vpack.c.b16 %v39, %v38
  %v47 = vpack.c.b16 %v41, %v40
  %v48 = vpack.c.b16 %v43, %v42
  %v49 = vpack.c.b16 %v45, %v44
  %vm54 = vcmask 523264
  %v56 = vsel %vm54, %v17, 0
  %58 = vmatpush.bf16.msra.mxu0 0
  %59 = vmatpush.bf16.msra.mxu0 0
  %60 = vmatpush.bf16.msra.mxu0 0
  %61 = vmatpush.bf16.msra.mxu0 0
  %62 = vmatpush.bf16.msra.mxu0 %v49
  %63 = vmatpush.bf16.msra.mxu0 %v48
  %64 = vmatpush.bf16.msra.mxu0 %v47
  %65 = vmatpush.bf16.msra.mxu0 %v46
  %66 = vmatmul.bf16.gmra.mxu0 %v56
  %v67 = vpop.f32.mrf.mxu0
  %v68 = vadd.f32 %v28, %v67
  %v69 = vpop.f32.mrf.mxu0
  %v70 = vadd.f32 %v28, %v69
  %71 = vdwg.mxu0
  %72 = vst [vmem:[%s3] sm:$0xff] %v68
  %73 = vst [vmem:[%s3 + $0x8] sm:$0xff] %v70
  // Predicated region
  $region14: #{gnmt_forward.22} parent=0 // pred_check
    _
  $region15: #{gnmt_forward.22} parent=0 // pred_check_branch
    %75 = sbr.rel (0) target = $region17
  $region16: #{gnmt_forward.22} parent=0 // pred_region
    _
  $region17: #{gnmt_forward.22} parent=0 // pred_fallthru
    _
  // Predicated region
  $region18: #{gnmt_forward.22} parent=0 // pred_check
    _
  $region19: #{gnmt_forward.22} parent=0 // pred_check_branch
    %77 = sbr.rel (0) target = $region21
  $region20: #{gnmt_forward.22} parent=0 // pred_region
    _
  $region21: #{gnmt_forward.22} parent=0 // pred_fallthru
    _

// kernel: gnmt_forward.21
$region0: #{gnmt_forward.21}
  #allocation0 [shape = 'u32[]', space=smem, size = 0x4, offset = 0x4, fixed_abs, tag = 'smem constant byte address 0x4 - core index']
  #allocation1 [shape = 'u32[72,128]{1,0:T(1,128)}', space=vmem, size = 0x9000, scoped, tag = 'internal scratch']
  #allocation2 [shape = 'f32[2,32]{1,0:T(2,128)}', space=vmem, size = 0x400, scoped, tag = 'scratch operand']
  #allocation3 [shape = 'f32[2,32]{1,0:T(2,128)}', space=vmem, size = 0x400, scoped, tag = 'scratch operand']
  %s0 = inlined_call_operand.vmem [shape: f32[8,2,256], index: 0, kind: input, shape index: {}]
  %s1 = inlined_call_operand.vmem [shape: f32[8,2,1], index: 1, kind: input, shape index: {}]
  %s2 = inlined_call_operand.vmem [shape: bf16[2,32,128], index: 2, kind: input, shape index: {}]
  %s3 = inlined_call_operand.vmem [shape: f32[2,8,2,32], index: 3, kind: output, shape index: {}]
  %s4 = sld [smem:[#allocation0]]
  $region49: #{gnmt_forward.21} parent=0
    _
  %s6 = ssub.s32 1, %s4
  %s7 = scalar_select 0, %s6, %s4
  loop: start=0, step=1, limit=18
  $region2: #{gnmt_forward.21} parent=0 // loop_pre_header
    _
  $region3: #{gnmt_forward.21} parent=0 // loop_header
    %s9 = sphi 0, %s13
    %p10 = scmp.ge.s32.totalorder %s9, 18
    %s16 = sphi 0, %s28
    %s17 = sphi 0, %s24
    %s18 = sphi 0, %s16
    %s19 = sphi 0, %s17
    %s20 = sphi 0, %s18
    %s21 = sphi 0, %s19
    %s41 = sphi 0, %s43
    %s44 = sphi 0, %s41
    %s45 = sphi 0, %s44
    %s61 = sphi 0, %s45
    %s75 = sphi 0, %s77
    %s78 = sphi 0, %s75
    %s79 = sphi 0, %s78
    %s95 = sphi 0, %s79
    %s101 = sphi 0, %s103
    %s104 = sphi 0, %s101
    %s105 = sphi 0, %s104
    %s121 = sphi 0, %s105
    %s137 = sphi 0, %s139
    %s140 = sphi 0, %s137
    %s141 = sphi 0, %s140
    %s157 = sphi 0, %s141
  $region4: #{gnmt_forward.21} parent=0 // loop_header_branch
    %12 = sbr.rel (%p10) target = $region8
  $region5: #{gnmt_forward.21} parent=0 // loop_body
    %s14 = ssub.s32 %s9, 1
    %s15 = ssub.s32 %s9, 2
    %s22 = sadd.s32 1, %s17
    %p23 = scmp.ge.s32.totalorder %s22, 8
    %s24 = scalar_select %p23, 0, %s22
    %s25 = sadd.s32 1, %s16
    %s26 = scalar_select %p23, %s25, %s16
    %p27 = scmp.ge.s32.totalorder %s26, 2
    %s28 = scalar_select %p27, 0, %s26
    %s29 = smul.u32 %s17, 2
    %s30 = ssub.s32 7, %s29
    %s31 = smul.u32 %s16, %s30
    %s32 = sadd.s32 %s17, %s31
    %s33 = smul.u32 %s24, 2
    %s34 = ssub.s32 7, %s33
    %s35 = smul.u32 %s28, %s34
    %s36 = sadd.s32 %s24, %s35
    %s37 = ssub.s32 %s32, %s36
    %s38 = ssub.s32 %s16, %s28
    %s39 = sor.u32 %s37, %s38
    %p40 = scmp.eq.s32.totalorder %s39, 0
    %s42 = sadd.s32 %s41, 1
    %s43 = scalar_select %p40, %s41, %s42
    %p46 = pneg %p40
    %p47 = scmp.eq.s32.totalorder %s9, 15
    %p48 = por %p46, %p47
    %p49 = scmp.ne.s32.totalorder %s41, %s44
    %p50 = scmp.eq.s32.totalorder %s9, 0
    %p51 = por %p49, %p50
    %p52 = scmp.ne.s32.totalorder %s41, %s44
    %p53 = scmp.eq.s32.totalorder %s14, 15
    %p54 = por %p52, %p53
    %p55 = scmp.ne.s32.totalorder %s44, %s45
    %p56 = scmp.eq.s32.totalorder %s14, 0
    %p57 = por %p55, %p56
    %p58 = scmp.ne.s32.totalorder %s44, %s45
    %p59 = scmp.eq.s32.totalorder %s15, 15
    %p60 = por %p58, %p59
    %p62 = scmp.ne.s32.totalorder %s45, %s61
    %p63 = scmp.eq.s32.totalorder %s15, 0
    %p64 = por %p62, %p63
    %s65 = smul.u32 %s17, 2
    %s66 = ssub.s32 7, %s65
    %s67 = smul.u32 %s16, %s66
    %s68 = sadd.s32 %s17, %s67
    %s69 = smul.u32 %s24, 2
    %s70 = ssub.s32 7, %s69
    %s71 = smul.u32 %s28, %s70
    %s72 = sadd.s32 %s24, %s71
    %s73 = ssub.s32 %s68, %s72
    %p74 = scmp.eq.s32.totalorder %s73, 0
    %s76 = sadd.s32 %s75, 1
    %s77 = scalar_select %p74, %s75, %s76
    %p80 = pneg %p74
    %p81 = scmp.eq.s32.totalorder %s9, 15
    %p82 = por %p80, %p81
    %p83 = scmp.ne.s32.totalorder %s75, %s78
    %p84 = scmp.eq.s32.totalorder %s9, 0
    %p85 = por %p83, %p84
    %p86 = scmp.ne.s32.totalorder %s75, %s78
    %p87 = scmp.eq.s32.totalorder %s14, 15
    %p88 = por %p86, %p87
    %p89 = scmp.ne.s32.totalorder %s78, %s79
    %p90 = scmp.eq.s32.totalorder %s14, 0
    %p91 = por %p89, %p90
    %p92 = scmp.ne.s32.totalorder %s78, %s79
    %p93 = scmp.eq.s32.totalorder %s15, 15
    %p94 = por %p92, %p93
    %p96 = scmp.ne.s32.totalorder %s79, %s95
    %p97 = scmp.eq.s32.totalorder %s15, 0
    %p98 = por %p96, %p97
    %s99 = ssub.s32 %s16, %s28
    %p100 = scmp.eq.s32.totalorder %s99, 0
    %s102 = sadd.s32 %s101, 1
    %s103 = scalar_select %p100, %s101, %s102
    %p106 = pneg %p100
    %p107 = scmp.eq.s32.totalorder %s9, 15
    %p108 = por %p106, %p107
    %p109 = scmp.ne.s32.totalorder %s101, %s104
    %p110 = scmp.eq.s32.totalorder %s9, 0
    %p111 = por %p109, %p110
    %p112 = scmp.ne.s32.totalorder %s101, %s104
    %p113 = scmp.eq.s32.totalorder %s14, 15
    %p114 = por %p112, %p113
    %p115 = scmp.ne.s32.totalorder %s104, %s105
    %p116 = scmp.eq.s32.totalorder %s14, 0
    %p117 = por %p115, %p116
    %p118 = scmp.ne.s32.totalorder %s104, %s105
    %p119 = scmp.eq.s32.totalorder %s15, 15
    %p120 = por %p118, %p119
    %p122 = scmp.ne.s32.totalorder %s105, %s121
    %p123 = scmp.eq.s32.totalorder %s15, 0
    %p124 = por %p122, %p123
    %s125 = smul.u32 %s17, 2
    %s126 = ssub.s32 7, %s125
    %s127 = smul.u32 %s16, %s126
    %s128 = sadd.s32 %s17, %s127
    %s129 = smul.u32 %s24, 2
    %s130 = ssub.s32 7, %s129
    %s131 = smul.u32 %s28, %s130
    %s132 = sadd.s32 %s24, %s131
    %s133 = ssub.s32 %s16, %s28
    %s134 = ssub.s32 %s128, %s132
    %s135 = sor.u32 %s133, %s134
    %p136 = scmp.eq.s32.totalorder %s135, 0
    %s138 = sadd.s32 %s137, 1
    %s139 = scalar_select %p136, %s137, %s138
    %p142 = pneg %p136
    %p143 = scmp.eq.s32.totalorder %s9, 15
    %p144 = por %p142, %p143
    %p145 = scmp.ne.s32.totalorder %s137, %s140
    %p146 = scmp.eq.s32.totalorder %s9, 0
    %p147 = por %p145, %p146
    %p148 = scmp.ne.s32.totalorder %s137, %s140
    %p149 = scmp.eq.s32.totalorder %s14, 15
    %p150 = por %p148, %p149
    %p151 = scmp.ne.s32.totalorder %s140, %s141
    %p152 = scmp.eq.s32.totalorder %s14, 0
    %p153 = por %p151, %p152
    %p154 = scmp.ne.s32.totalorder %s140, %s141
    %p155 = scmp.eq.s32.totalorder %s15, 15
    %p156 = por %p154, %p155
    %p158 = scmp.ne.s32.totalorder %s141, %s157
    %p159 = scmp.eq.s32.totalorder %s15, 0
    %p160 = por %p158, %p159
    %p161 = scmp.le.s32.totalorder 1, %s9
    %p162 = scmp.lt.s32.totalorder %s9, 17
    %p163 = pnand %p161, %p162
    %p164 = pneg %p163
    // Predicated region
    $region9: #{gnmt_forward.21} parent=5 // pred_check
      _
    $region10: #{gnmt_forward.21} parent=5 // pred_check_branch
      %166 = sbr.rel (%p163) target = $region12
    $region11: #{gnmt_forward.21} parent=5 // pred_region
      %s167 = ssub.s32 %s9, 1
    $region12: #{gnmt_forward.21} parent=5 // pred_fallthru
      _
    %p168 = scmp.lt.s32.totalorder %s9, 16
    // Predicated region
    $region13: #{gnmt_forward.21} parent=5 // pred_check
      %p169 = pneg %p168
    $region14: #{gnmt_forward.21} parent=5 // pred_check_branch
      %171 = sbr.rel (%p169) target = $region16
    $region15: #{gnmt_forward.21} parent=5 // pred_region
      // Predicated region
      $region17: #{gnmt_forward.21} parent=15 // pred_check
        %p172 = pneg %p51
      $region18: #{gnmt_forward.21} parent=15 // pred_check_branch
        %174 = sbr.rel (%p172) target = $region20
      $region19: #{gnmt_forward.21} parent=15 // pred_region
        %s175 = smul.u32 %s17, 2
        %s176 = ssub.s32 7, %s175
        %s177 = smul.u32 %s16, %s176
        %s178 = sadd.s32 %s17, %s177
        %p179 = scmp.lt.s32.totalorder %s178, 7
        %s180 = scalar_select %p179, %s178, 7
        %p181 = scmp.lt.s32.totalorder %s16, 1
        %s182 = scalar_select %p181, %s16, 1
        %s183 = smul.addr %s180, 2
        %s184 = sadd.s32 %s182, %s183
        %s185 = smul.addr %s184, 2
        %s186 = scalar_lea.vmem %s0, %s185
        %s187 = smul.u32 %s17, 2
        %s188 = ssub.s32 7, %s187
        %s189 = smul.u32 %s16, %s188
        %s190 = sadd.s32 %s17, %s189
      $region20: #{gnmt_forward.21} parent=15 // pred_fallthru
        _
      // Predicated region
      $region21: #{gnmt_forward.21} parent=15 // pred_check
        %p191 = pneg %p85
      $region22: #{gnmt_forward.21} parent=15 // pred_check_branch
        %193 = sbr.rel (%p191) target = $region24
      $region23: #{gnmt_forward.21} parent=15 // pred_region
        %s194 = smul.u32 %s17, 2
        %s195 = ssub.s32 7, %s194
        %s196 = smul.u32 %s16, %s195
        %s197 = sadd.s32 %s17, %s196
        %p198 = scmp.lt.s32.totalorder %s197, 7
        %s199 = scalar_select %p198, %s197, 7
        %s200 = smul.addr %s199, 2
        %s201 = scalar_lea.vmem %s1, %s200
        %s202 = smul.u32 %s17, 2
        %s203 = ssub.s32 7, %s202
        %s204 = smul.u32 %s16, %s203
        %s205 = sadd.s32 %s17, %s204
      $region24: #{gnmt_forward.21} parent=15 // pred_fallthru
        _
      // Predicated region
      $region25: #{gnmt_forward.21} parent=15 // pred_check
        %p206 = pneg %p111
      $region26: #{gnmt_forward.21} parent=15 // pred_check_branch
        %208 = sbr.rel (%p206) target = $region28
      $region27: #{gnmt_forward.21} parent=15 // pred_region
        %p209 = scmp.lt.s32.totalorder %s16, 1
        %s210 = scalar_select %p209, %s16, 1
        %s211 = smul.addr %s210, 4
        %s212 = smul.addr %s211, 4
        %s213 = scalar_lea.vmem %s2, %s212
      $region28: #{gnmt_forward.21} parent=15 // pred_fallthru
        _
    $region16: #{gnmt_forward.21} parent=5 // pred_fallthru
      _
    %p214 = scmp.le.s32.totalorder 1, %s9
    %p215 = scmp.lt.s32.totalorder %s9, 17
    %p216 = pnand %p214, %p215
    %p217 = pneg %p216
    // Predicated region
    $region29: #{gnmt_forward.21} parent=5 // pred_check
      _
    $region30: #{gnmt_forward.21} parent=5 // pred_check_branch
      %219 = sbr.rel (%p216) target = $region32
    $region31: #{gnmt_forward.21} parent=5 // pred_region
      %s220 = ssub.s32 %s9, 1
      %s221 = smul.u32 %s19, 2
      %s222 = ssub.s32 7, %s221
      %s223 = smul.u32 %s18, %s222
      %s224 = sadd.s32 %s19, %s223
      %p225 = scmp.lt.s32.totalorder %s224, 7
      %s226 = scalar_select %p225, %s224, 7
      %p227 = scmp.lt.s32.totalorder %s18, 1
      %s228 = scalar_select %p227, %s18, 1
      %s229 = smul.addr %s226, 2
      %s230 = sadd.s32 %s228, %s229
      %s231 = smul.addr %s230, 2
      %s232 = scalar_lea.vmem %s0, %s231
      %p233 = pneg %p57
      %p234 = pneg %p54
      %s235 = smul.u32 %s19, 2
      %s236 = ssub.s32 7, %s235
      %s237 = smul.u32 %s18, %s236
      %s238 = sadd.s32 %s19, %s237
      %p239 = scmp.lt.s32.totalorder %s238, 7
      %s240 = scalar_select %p239, %s238, 7
      %s241 = smul.addr %s240, 2
      %s242 = scalar_lea.vmem %s1, %s241
      %p243 = pneg %p91
      %p244 = pneg %p88
      %p245 = scmp.lt.s32.totalorder %s18, 1
      %s246 = scalar_select %p245, %s18, 1
      %s247 = smul.addr %s246, 4
      %s248 = smul.addr %s247, 4
      %s249 = scalar_lea.vmem %s2, %s248
      %p250 = pneg %p117
      %p251 = pneg %p114
      %p252 = pneg %p153
      %p253 = pneg %p150
      %s254 = smul.u32 %s19, 2
      %s255 = ssub.s32 7, %s254
      %s256 = smul.u32 %s18, %s255
      %s257 = sadd.s32 %s19, %s256
      %p258 = scmp.lt.s32.totalorder %s18, 1
      %s259 = scalar_select %p258, %s18, 1
      %p260 = scmp.lt.s32.totalorder %s257, 7
      %s261 = scalar_select %p260, %s257, 7
      %s262 = smul.addr %s259, 8
      %s263 = sadd.s32 %s261, %s262
      %s264 = smul.addr %s263, 2
      %s265 = scalar_lea.vmem %s3, %s264
      %s266 = smul.u32 %s19, 2
      %s267 = ssub.s32 7, %s266
      %s268 = smul.u32 %s18, %s267
      %s269 = sadd.s32 %s19, %s268
      %p270 = scmp.lt.s32.totalorder %s269, 7
      %s271 = scalar_select %p270, %s269, 7
      %p272 = scmp.lt.s32.totalorder %s18, 1
      %s273 = scalar_select %p272, %s18, 1
      %s274 = smul.addr %s271, 2
      %s275 = sadd.s32 %s273, %s274
      %s276 = smul.addr %s275, 2
      %s277 = scalar_lea.vmem %s0, %s276
      %s278 = smul.u32 %s19, 2
      %s279 = ssub.s32 7, %s278
      %s280 = smul.u32 %s18, %s279
      %s281 = sadd.s32 %s19, %s280
      %s282 = smul.u32 %s19, 2
      %s283 = ssub.s32 7, %s282
      %s284 = smul.u32 %s18, %s283
      %s285 = sadd.s32 %s19, %s284
      %p286 = scmp.lt.s32.totalorder %s285, 7
      %s287 = scalar_select %p286, %s285, 7
      %s288 = smul.addr %s287, 2
      %s289 = scalar_lea.vmem %s1, %s288
      %s290 = smul.u32 %s19, 2
      %s291 = ssub.s32 7, %s290
      %s292 = smul.u32 %s18, %s291
      %s293 = sadd.s32 %s19, %s292
      %p294 = scmp.lt.s32.totalorder %s18, 1
      %s295 = scalar_select %p294, %s18, 1
      %s296 = smul.addr %s295, 4
      %s297 = smul.addr %s296, 4
      %s298 = scalar_lea.vmem %s2, %s297
      %s299 = smul.u32 %s19, 2
      %s300 = ssub.s32 7, %s299
      %s301 = smul.u32 %s18, %s300
      %s302 = sadd.s32 %s19, %s301
      %p303 = scmp.lt.s32.totalorder %s18, 1
      %s304 = scalar_select %p303, %s18, 1
      %p305 = scmp.lt.s32.totalorder %s302, 7
      %s306 = scalar_select %p305, %s302, 7
      %s307 = smul.addr %s304, 8
      %s308 = sadd.s32 %s306, %s307
      %s309 = smul.addr %s308, 2
      %s310 = scalar_lea.vmem %s3, %s309
      %s311 = smul.u32 %s19, 2
      %s312 = ssub.s32 7, %s311
      %s313 = smul.u32 %s18, %s312
      %s314 = sadd.s32 %s19, %s313
      %p316 = scmp.eq.s32.totalorder %s19, 0
      // Predicated region
      $region33: #{gnmt_forward.21} parent=31 // pred_check
        %p317 = pneg %p316
      $region34: #{gnmt_forward.21} parent=31 // pred_check_branch
        %319 = sbr.rel (%p317) target = $region36
      $region35: #{gnmt_forward.21} parent=31 // pred_region
        %vm320 = vcmask 254976
        %321 = vst.msk [vmem:[#allocation2] sm:$0x3] %vm320, 0.0
        %322 = vst.msk [vmem:[#allocation3] sm:$0x3] %vm320, 0.0
      $region36: #{gnmt_forward.21} parent=31 // pred_fallthru
        _
      %v323 = vld [vmem:[#allocation2] sm:$0x3]
      %v324 = vld [vmem:[#allocation3] sm:$0x3]
      %v325 = vld [vmem:[%s277] sm:$0x3]
      %v326 = vpack.c.bf16 %v323, %v323
      %v327 = vld [vmem:[%s298] sm:$0xf]
      %v328 = vld [vmem:[%s298 + $0x4] sm:$0xf]
      %v329 = vld [vmem:[%s298 + $0x8] sm:$0xf]
      %v330 = vld [vmem:[%s298 + $0xc] sm:$0xf]
      %v335 = vunpack.c.l.b16 %v327
      %v336 = vunpack.c.l.b16 %v328
      %v337 = vunpack.c.l.b16 %v329
      %v338 = vunpack.c.l.b16 %v330
      %v339 = vpack.c.b16 %v336, %v335
      %v340 = vpack.c.b16 %v338, %v337
      %vm343 = vcmask 261120
      %v345 = vsel %vm343, %v326, 0
      %347 = vmatpush.bf16.msra.mxu0 0
      %348 = vmatpush.bf16.msra.mxu0 0
      %349 = vmatpush.bf16.msra.mxu0 0
      %350 = vmatpush.bf16.msra.mxu0 0
      %351 = vmatpush.bf16.msra.mxu0 0
      %352 = vmatpush.bf16.msra.mxu0 0
      %353 = vmatpush.bf16.msra.mxu0 %v340
      %354 = vmatpush.bf16.msra.mxu0 %v339
      %355 = vmatmul.bf16.gmra.mxu0 %v345
      %v356 = vpop.f32.mrf.mxu0
      %v357 = vadd.f32 0.0, %v356
      %v358 = vpop.f32.mrf.mxu0
      %359 = vdwg.mxu0
      %v360 = vadd.f32 %v325, %v357
      %v361 = vxor.u32 %v360, 2147483648
      %v362 = vmul.f32 %v361, 1.442695
      %v363 = vpow.pop %v362
      %v364 = vadd.f32 %v363, 1.0
      %v365 = vrcp.pop %v364
      %v366 = vmul.f32 %v364, %v365
      %v367 = vsub.f32 1.0, %v366
      %v368 = vmul.f32 %v365, %v367
      %v369 = vadd.f32 %v365, %v368
      %vm370 = vweird.f32 %v364
      %vm371 = vweird.f32 %v365
      %vm372 = vmor %vm370, %vm371
      %v373 = vsel %vm372, %v365, %v369
      %v374 = vand.u32 2147483647, %v364
      %vm375 = vcmp.eq.f32.partialorder %v374, 8.507059e+37
      %v376 = vand.u32 %v364, 2147483648
      %v377 = vor.u32 1.1754944e-38, %v376
      %v378 = vsel %vm375, %v377, %v373
      %v379 = vmul.f32 1.0, %v378
      %v380 = vtanh.pop %v360
      %382 = vrot.lane.b32.xlu0 %v324, 32
      %v383 = vpop.permute.xlu0 %382
      %v385 = vmul.f32 %v379, %v383
      %387 = vrot.lane.b32.xlu0 %v380, 64
      %v388 = vpop.permute.xlu0 %387
      %v390 = vmul.f32 %v379, %v388
      %392 = vrot.lane.b32.xlu0 %v390, 32
      %v393 = vpop.permute.xlu0 %392
      %v395 = vadd.f32 %v385, %v393
      %v396 = vtanh.pop %v395
      %398 = vrot.lane.b32.xlu0 %v396, 64
      %v399 = vpop.permute.xlu0 %398
      %v401 = vmul.f32 %v379, %v399
      %v402 = vld [vmem:[%s289] sm:$0x3]
      %404 = vset.pattern.permute.xlu0 0
      %405 = vperm.xlu0 %404, %v402
      %v406 = vpop.permute.xlu0 %405
      %v408 = vmul.f32 %v406, %v395
      %v409 = vsub.f32 1.0, %v402
      %411 = vset.pattern.permute.xlu0 0
      %412 = vperm.xlu0 %411, %v409
      %v413 = vpop.permute.xlu0 %412
      %v415 = vmul.f32 %v413, %v324
      %417 = vrot.lane.b32.xlu0 %v415, 32
      %v418 = vpop.permute.xlu0 %417
      %v420 = vadd.f32 %v408, %v418
      %422 = vrot.lane.b32.xlu0 %v420, 96
      %v423 = vpop.permute.xlu0 %422
      %vm425 = vcmask 254976
      %426 = vst.msk [vmem:[#allocation3] sm:$0x3] %vm425, %v423
      %v427 = vmul.f32 %v406, %v401
      %v428 = vmul.f32 %v413, %v323
      %430 = vrot.lane.b32.xlu0 %v428, 96
      %v431 = vpop.permute.xlu0 %430
      %v433 = vadd.f32 %v427, %v431
      %435 = vrot.lane.b32.xlu0 %v433, 32
      %v436 = vpop.permute.xlu0 %435
      %438 = vst.msk [vmem:[#allocation2] sm:$0x3] %vm425, %v436
      %440 = vrot.lane.b32.xlu0 %v427, 32
      %v441 = vpop.permute.xlu0 %440
      %443 = vst.msk [vmem:[%s310] sm:$0x3] %vm425, %v441
      %s444 = smul.u32 %s19, 2
      %s445 = ssub.s32 7, %s444
      %s446 = smul.u32 %s18, %s445
      %s447 = sadd.s32 %s19, %s446
      %p448 = scmp.lt.s32.totalorder %s18, 1
      %s449 = scalar_select %p448, %s18, 1
      %p450 = scmp.lt.s32.totalorder %s447, 7
      %s451 = scalar_select %p450, %s447, 7
      %s452 = smul.addr %s449, 8
      %s453 = sadd.s32 %s451, %s452
      %s454 = smul.addr %s453, 2
      %s455 = scalar_lea.vmem %s3, %s454
      // Predicated region
      $region37: #{gnmt_forward.21} parent=31 // pred_check
        %p456 = pneg %p150
      $region38: #{gnmt_forward.21} parent=31 // pred_check_branch
        %458 = sbr.rel (%p456) target = $region40
      $region39: #{gnmt_forward.21} parent=31 // pred_region
        %s459 = smul.u32 %s19, 2
        %s460 = ssub.s32 7, %s459
        %s461 = smul.u32 %s18, %s460
        %s462 = sadd.s32 %s19, %s461
      $region40: #{gnmt_forward.21} parent=31 // pred_fallthru
        _
    $region32: #{gnmt_forward.21} parent=5 // pred_fallthru
      _
    %p463 = scmp.le.s32.totalorder 2, %s9
    // Predicated region
    $region41: #{gnmt_forward.21} parent=5 // pred_check
      %p464 = pneg %p463
    $region42: #{gnmt_forward.21} parent=5 // pred_check_branch
      %466 = sbr.rel (%p464) target = $region44
    $region43: #{gnmt_forward.21} parent=5 // pred_region
      %s467 = ssub.s32 %s9, 2
      // Predicated region
      $region45: #{gnmt_forward.21} parent=43 // pred_check
        %p468 = pneg %p156
      $region46: #{gnmt_forward.21} parent=43 // pred_check_branch
        %470 = sbr.rel (%p468) target = $region48
      $region47: #{gnmt_forward.21} parent=43 // pred_region
        %s471 = smul.u32 %s21, 2
        %s472 = ssub.s32 7, %s471
        %s473 = smul.u32 %s20, %s472
        %s474 = sadd.s32 %s21, %s473
        %p475 = scmp.lt.s32.totalorder %s20, 1
        %s476 = scalar_select %p475, %s20, 1
        %p477 = scmp.lt.s32.totalorder %s474, 7
        %s478 = scalar_select %p477, %s474, 7
        %s479 = smul.addr %s476, 8
        %s480 = sadd.s32 %s478, %s479
        %s481 = smul.addr %s480, 2
        %s482 = scalar_lea.vmem %s3, %s481
      $region48: #{gnmt_forward.21} parent=43 // pred_fallthru
        _
    $region44: #{gnmt_forward.21} parent=5 // pred_fallthru
      _
  $region6: #{gnmt_forward.21} parent=0 // loop_footer
    %s13 = sadd.s32 1, %s9
  $region7: #{gnmt_forward.21} parent=0 // loop_footer_branch
    %8 = sbr.rel target = $region3
  $region8: #{gnmt_forward.21} parent=0 // loop_exit
    _

// kernel: gnmt_forward.23
$region0: #{gnmt_forward.23}
  #allocation0 [shape = 'u32[]', space=smem, size = 0x4, offset = 0x4, fixed_abs, tag = 'smem constant byte address 0x4 - core index']
  #allocation1 [shape = 'u32[72,128]{1,0:T(1,128)}', space=vmem, size = 0x9000, scoped, tag = 'internal scratch']
  #allocation2 [shape = 'f32[2,32]{1,0:T(2,128)}', space=vmem, size = 0x400, scoped, tag = 'scratch operand']
  #allocation3 [shape = 'f32[2,32]{1,0:T(2,128)}', space=vmem, size = 0x400, scoped, tag = 'scratch operand']
  %s0 = inlined_call_operand.vmem [shape: f32[8,2,128], index: 0, kind: input, shape index: {}]
  %s1 = inlined_call_operand.vmem [shape: f32[8,2,1], index: 1, kind: input, shape index: {}]
  %s2 = inlined_call_operand.vmem [shape: bf16[1,32,128], index: 2, kind: input, shape index: {}]
  %s3 = inlined_call_operand.vmem [shape: f32[1,8,2,32], index: 3, kind: output, shape index: {}]
  %s4 = sld [smem:[#allocation0]]
  $region49: #{gnmt_forward.23} parent=0
    _
  %s6 = ssub.s32 1, %s4
  %s7 = scalar_select 0, %s6, %s4
  loop: start=0, step=1, limit=10
  $region2: #{gnmt_forward.23} parent=0 // loop_pre_header
    _
  $region3: #{gnmt_forward.23} parent=0 // loop_header
    %s9 = sphi 0, %s13
    %p10 = scmp.ge.s32.totalorder %s9, 10
    %s16 = sphi 0, %s28
    %s17 = sphi 0, %s24
    %s18 = sphi 0, %s16
    %s19 = sphi 0, %s17
    %s20 = sphi 0, %s18
    %s21 = sphi 0, %s19
    %s41 = sphi 0, %s43
    %s44 = sphi 0, %s41
    %s45 = sphi 0, %s44
    %s61 = sphi 0, %s45
    %s75 = sphi 0, %s77
    %s78 = sphi 0, %s75
    %s79 = sphi 0, %s78
    %s95 = sphi 0, %s79
    %s101 = sphi 0, %s103
    %s104 = sphi 0, %s101
    %s105 = sphi 0, %s104
    %s121 = sphi 0, %s105
    %s137 = sphi 0, %s139
    %s140 = sphi 0, %s137
    %s141 = sphi 0, %s140
    %s157 = sphi 0, %s141
  $region4: #{gnmt_forward.23} parent=0 // loop_header_branch
    %12 = sbr.rel (%p10) target = $region8
  $region5: #{gnmt_forward.23} parent=0 // loop_body
    %s14 = ssub.s32 %s9, 1
    %s15 = ssub.s32 %s9, 2
    %s22 = sadd.s32 1, %s17
    %p23 = scmp.ge.s32.totalorder %s22, 8
    %s24 = scalar_select %p23, 0, %s22
    %s25 = sadd.s32 1, %s16
    %s26 = scalar_select %p23, %s25, %s16
    %p27 = scmp.ge.s32.totalorder %s26, 1
    %s28 = scalar_select %p27, 0, %s26
    %s29 = smul.u32 %s17, 2
    %s30 = ssub.s32 7, %s29
    %s31 = smul.u32 %s16, %s30
    %s32 = sadd.s32 %s17, %s31
    %s33 = smul.u32 %s24, 2
    %s34 = ssub.s32 7, %s33
    %s35 = smul.u32 %s28, %s34
    %s36 = sadd.s32 %s24, %s35
    %s37 = ssub.s32 %s32, %s36
    %s38 = ssub.s32 %s16, %s28
    %s39 = sor.u32 %s37, %s38
    %p40 = scmp.eq.s32.totalorder %s39, 0
    %s42 = sadd.s32 %s41, 1
    %s43 = scalar_select %p40, %s41, %s42
    %p46 = pneg %p40
    %p47 = scmp.eq.s32.totalorder %s9, 7
    %p48 = por %p46, %p47
    %p49 = scmp.ne.s32.totalorder %s41, %s44
    %p50 = scmp.eq.s32.totalorder %s9, 0
    %p51 = por %p49, %p50
    %p52 = scmp.ne.s32.totalorder %s41, %s44
    %p53 = scmp.eq.s32.totalorder %s14, 7
    %p54 = por %p52, %p53
    %p55 = scmp.ne.s32.totalorder %s44, %s45
    %p56 = scmp.eq.s32.totalorder %s14, 0
    %p57 = por %p55, %p56
    %p58 = scmp.ne.s32.totalorder %s44, %s45
    %p59 = scmp.eq.s32.totalorder %s15, 7
    %p60 = por %p58, %p59
    %p62 = scmp.ne.s32.totalorder %s45, %s61
    %p63 = scmp.eq.s32.totalorder %s15, 0
    %p64 = por %p62, %p63
    %s65 = smul.u32 %s17, 2
    %s66 = ssub.s32 7, %s65
    %s67 = smul.u32 %s16, %s66
    %s68 = sadd.s32 %s17, %s67
    %s69 = smul.u32 %s24, 2
    %s70 = ssub.s32 7, %s69
    %s71 = smul.u32 %s28, %s70
    %s72 = sadd.s32 %s24, %s71
    %s73 = ssub.s32 %s68, %s72
    %p74 = scmp.eq.s32.totalorder %s73, 0
    %s76 = sadd.s32 %s75, 1
    %s77 = scalar_select %p74, %s75, %s76
    %p80 = pneg %p74
    %p81 = scmp.eq.s32.totalorder %s9, 7
    %p82 = por %p80, %p81
    %p83 = scmp.ne.s32.totalorder %s75, %s78
    %p84 = scmp.eq.s32.totalorder %s9, 0
    %p85 = por %p83, %p84
    %p86 = scmp.ne.s32.totalorder %s75, %s78
    %p87 = scmp.eq.s32.totalorder %s14, 7
    %p88 = por %p86, %p87
    %p89 = scmp.ne.s32.totalorder %s78, %s79
    %p90 = scmp.eq.s32.totalorder %s14, 0
    %p91 = por %p89, %p90
    %p92 = scmp.ne.s32.totalorder %s78, %s79
    %p93 = scmp.eq.s32.totalorder %s15, 7
    %p94 = por %p92, %p93
    %p96 = scmp.ne.s32.totalorder %s79, %s95
    %p97 = scmp.eq.s32.totalorder %s15, 0
    %p98 = por %p96, %p97
    %s99 = ssub.s32 %s16, %s28
    %p100 = scmp.eq.s32.totalorder %s99, 0
    %s102 = sadd.s32 %s101, 1
    %s103 = scalar_select %p100, %s101, %s102
    %p106 = pneg %p100
    %p107 = scmp.eq.s32.totalorder %s9, 7
    %p108 = por %p106, %p107
    %p109 = scmp.ne.s32.totalorder %s101, %s104
    %p110 = scmp.eq.s32.totalorder %s9, 0
    %p111 = por %p109, %p110
    %p112 = scmp.ne.s32.totalorder %s101, %s104
    %p113 = scmp.eq.s32.totalorder %s14, 7
    %p114 = por %p112, %p113
    %p115 = scmp.ne.s32.totalorder %s104, %s105
    %p116 = scmp.eq.s32.totalorder %s14, 0
    %p117 = por %p115, %p116
    %p118 = scmp.ne.s32.totalorder %s104, %s105
    %p119 = scmp.eq.s32.totalorder %s15, 7
    %p120 = por %p118, %p119
    %p122 = scmp.ne.s32.totalorder %s105, %s121
    %p123 = scmp.eq.s32.totalorder %s15, 0
    %p124 = por %p122, %p123
    %s125 = smul.u32 %s17, 2
    %s126 = ssub.s32 7, %s125
    %s127 = smul.u32 %s16, %s126
    %s128 = sadd.s32 %s17, %s127
    %s129 = smul.u32 %s24, 2
    %s130 = ssub.s32 7, %s129
    %s131 = smul.u32 %s28, %s130
    %s132 = sadd.s32 %s24, %s131
    %s133 = ssub.s32 %s16, %s28
    %s134 = ssub.s32 %s128, %s132
    %s135 = sor.u32 %s133, %s134
    %p136 = scmp.eq.s32.totalorder %s135, 0
    %s138 = sadd.s32 %s137, 1
    %s139 = scalar_select %p136, %s137, %s138
    %p142 = pneg %p136
    %p143 = scmp.eq.s32.totalorder %s9, 7
    %p144 = por %p142, %p143
    %p145 = scmp.ne.s32.totalorder %s137, %s140
    %p146 = scmp.eq.s32.totalorder %s9, 0
    %p147 = por %p145, %p146
    %p148 = scmp.ne.s32.totalorder %s137, %s140
    %p149 = scmp.eq.s32.totalorder %s14, 7
    %p150 = por %p148, %p149
    %p151 = scmp.ne.s32.totalorder %s140, %s141
    %p152 = scmp.eq.s32.totalorder %s14, 0
    %p153 = por %p151, %p152
    %p154 = scmp.ne.s32.totalorder %s140, %s141
    %p155 = scmp.eq.s32.totalorder %s15, 7
    %p156 = por %p154, %p155
    %p158 = scmp.ne.s32.totalorder %s141, %s157
    %p159 = scmp.eq.s32.totalorder %s15, 0
    %p160 = por %p158, %p159
    %p161 = scmp.le.s32.totalorder 1, %s9
    %p162 = scmp.lt.s32.totalorder %s9, 9
    %p163 = pnand %p161, %p162
    %p164 = pneg %p163
    // Predicated region
    $region9: #{gnmt_forward.23} parent=5 // pred_check
      _
    $region10: #{gnmt_forward.23} parent=5 // pred_check_branch
      %166 = sbr.rel (%p163) target = $region12
    $region11: #{gnmt_forward.23} parent=5 // pred_region
      %s167 = ssub.s32 %s9, 1
      // Predicated region
      $region13: #{gnmt_forward.23} parent=11 // pred_check
        %p168 = pneg %p117
      $region14: #{gnmt_forward.23} parent=11 // pred_check_branch
        %170 = sbr.rel (%p168) target = $region16
      $region15: #{gnmt_forward.23} parent=11 // pred_region
        %p171 = scmp.lt.s32.totalorder %s18, 0
        %s172 = scalar_select %p171, %s18, 0
        %s173 = smul.addr %s172, 4
        %s174 = smul.addr %s173, 4
        %s175 = scalar_lea.vmem %s2, %s174
      $region16: #{gnmt_forward.23} parent=11 // pred_fallthru
        _
    $region12: #{gnmt_forward.23} parent=5 // pred_fallthru
      _
    %p176 = scmp.lt.s32.totalorder %s9, 8
    // Predicated region
    $region17: #{gnmt_forward.23} parent=5 // pred_check
      %p177 = pneg %p176
    $region18: #{gnmt_forward.23} parent=5 // pred_check_branch
      %179 = sbr.rel (%p177) target = $region20
    $region19: #{gnmt_forward.23} parent=5 // pred_region
      // Predicated region
      $region21: #{gnmt_forward.23} parent=19 // pred_check
        %p180 = pneg %p51
      $region22: #{gnmt_forward.23} parent=19 // pred_check_branch
        %182 = sbr.rel (%p180) target = $region24
      $region23: #{gnmt_forward.23} parent=19 // pred_region
        %s183 = smul.u32 %s17, 2
        %s184 = ssub.s32 7, %s183
        %s185 = smul.u32 %s16, %s184
        %s186 = sadd.s32 %s17, %s185
        %p187 = scmp.lt.s32.totalorder %s186, 7
        %s188 = scalar_select %p187, %s186, 7
        %p189 = scmp.lt.s32.totalorder %s16, 0
        %s190 = scalar_select %p189, %s16, 0
        %s191 = sadd.s32 %s190, %s188
        %s192 = smul.addr %s191, 2
        %s193 = scalar_lea.vmem %s0, %s192
        %s194 = smul.u32 %s17, 2
        %s195 = ssub.s32 7, %s194
        %s196 = smul.u32 %s16, %s195
        %s197 = sadd.s32 %s17, %s196
      $region24: #{gnmt_forward.23} parent=19 // pred_fallthru
        _
      // Predicated region
      $region25: #{gnmt_forward.23} parent=19 // pred_check
        %p198 = pneg %p85
      $region26: #{gnmt_forward.23} parent=19 // pred_check_branch
        %200 = sbr.rel (%p198) target = $region28
      $region27: #{gnmt_forward.23} parent=19 // pred_region
        %s201 = smul.u32 %s17, 2
        %s202 = ssub.s32 7, %s201
        %s203 = smul.u32 %s16, %s202
        %s204 = sadd.s32 %s17, %s203
        %p205 = scmp.lt.s32.totalorder %s204, 7
        %s206 = scalar_select %p205, %s204, 7
        %s207 = smul.addr %s206, 2
        %s208 = scalar_lea.vmem %s1, %s207
        %s209 = smul.u32 %s17, 2
        %s210 = ssub.s32 7, %s209
        %s211 = smul.u32 %s16, %s210
        %s212 = sadd.s32 %s17, %s211
      $region28: #{gnmt_forward.23} parent=19 // pred_fallthru
        _
    $region20: #{gnmt_forward.23} parent=5 // pred_fallthru
      _
    %p213 = scmp.le.s32.totalorder 1, %s9
    %p214 = scmp.lt.s32.totalorder %s9, 9
    %p215 = pnand %p213, %p214
    %p216 = pneg %p215
    // Predicated region
    $region29: #{gnmt_forward.23} parent=5 // pred_check
      _
    $region30: #{gnmt_forward.23} parent=5 // pred_check_branch
      %218 = sbr.rel (%p215) target = $region32
    $region31: #{gnmt_forward.23} parent=5 // pred_region
      %s219 = ssub.s32 %s9, 1
      %s220 = smul.u32 %s19, 2
      %s221 = ssub.s32 7, %s220
      %s222 = smul.u32 %s18, %s221
      %s223 = sadd.s32 %s19, %s222
      %p224 = scmp.lt.s32.totalorder %s223, 7
      %s225 = scalar_select %p224, %s223, 7
      %p226 = scmp.lt.s32.totalorder %s18, 0
      %s227 = scalar_select %p226, %s18, 0
      %s228 = sadd.s32 %s227, %s225
      %s229 = smul.addr %s228, 2
      %s230 = scalar_lea.vmem %s0, %s229
      %p231 = pneg %p57
      %p232 = pneg %p54
      %s233 = smul.u32 %s19, 2
      %s234 = ssub.s32 7, %s233
      %s235 = smul.u32 %s18, %s234
      %s236 = sadd.s32 %s19, %s235
      %p237 = scmp.lt.s32.totalorder %s236, 7
      %s238 = scalar_select %p237, %s236, 7
      %s239 = smul.addr %s238, 2
      %s240 = scalar_lea.vmem %s1, %s239
      %p241 = pneg %p91
      %p242 = pneg %p88
      %p243 = scmp.lt.s32.totalorder %s18, 0
      %s244 = scalar_select %p243, %s18, 0
      %s245 = smul.addr %s244, 4
      %s246 = smul.addr %s245, 4
      %s247 = scalar_lea.vmem %s2, %s246
      %p248 = pneg %p117
      %p249 = pneg %p114
      %p250 = pneg %p153
      %p251 = pneg %p150
      %s252 = smul.u32 %s19, 2
      %s253 = ssub.s32 7, %s252
      %s254 = smul.u32 %s18, %s253
      %s255 = sadd.s32 %s19, %s254
      %p256 = scmp.lt.s32.totalorder %s18, 0
      %s257 = scalar_select %p256, %s18, 0
      %p258 = scmp.lt.s32.totalorder %s255, 7
      %s259 = scalar_select %p258, %s255, 7
      %s260 = smul.addr %s257, 8
      %s261 = sadd.s32 %s259, %s260
      %s262 = smul.addr %s261, 2
      %s263 = scalar_lea.vmem %s3, %s262
      %s264 = smul.u32 %s19, 2
      %s265 = ssub.s32 7, %s264
      %s266 = smul.u32 %s18, %s265
      %s267 = sadd.s32 %s19, %s266
      %p268 = scmp.lt.s32.totalorder %s267, 7
      %s269 = scalar_select %p268, %s267, 7
      %p270 = scmp.lt.s32.totalorder %s18, 0
      %s271 = scalar_select %p270, %s18, 0
      %s272 = sadd.s32 %s271, %s269
      %s273 = smul.addr %s272, 2
      %s274 = scalar_lea.vmem %s0, %s273
      %s275 = smul.u32 %s19, 2
      %s276 = ssub.s32 7, %s275
      %s277 = smul.u32 %s18, %s276
      %s278 = sadd.s32 %s19, %s277
      %s279 = smul.u32 %s19, 2
      %s280 = ssub.s32 7, %s279
      %s281 = smul.u32 %s18, %s280
      %s282 = sadd.s32 %s19, %s281
      %p283 = scmp.lt.s32.totalorder %s282, 7
      %s284 = scalar_select %p283, %s282, 7
      %s285 = smul.addr %s284, 2
      %s286 = scalar_lea.vmem %s1, %s285
      %s287 = smul.u32 %s19, 2
      %s288 = ssub.s32 7, %s287
      %s289 = smul.u32 %s18, %s288
      %s290 = sadd.s32 %s19, %s289
      %p291 = scmp.lt.s32.totalorder %s18, 0
      %s292 = scalar_select %p291, %s18, 0
      %s293 = smul.addr %s292, 4
      %s294 = smul.addr %s293, 4
      %s295 = scalar_lea.vmem %s2, %s294
      %s296 = smul.u32 %s19, 2
      %s297 = ssub.s32 7, %s296
      %s298 = smul.u32 %s18, %s297
      %s299 = sadd.s32 %s19, %s298
      %p300 = scmp.lt.s32.totalorder %s18, 0
      %s301 = scalar_select %p300, %s18, 0
      %p302 = scmp.lt.s32.totalorder %s299, 7
      %s303 = scalar_select %p302, %s299, 7
      %s304 = smul.addr %s301, 8
      %s305 = sadd.s32 %s303, %s304
      %s306 = smul.addr %s305, 2
      %s307 = scalar_lea.vmem %s3, %s306
      %s308 = smul.u32 %s19, 2
      %s309 = ssub.s32 7, %s308
      %s310 = smul.u32 %s18, %s309
      %s311 = sadd.s32 %s19, %s310
      %p313 = scmp.eq.s32.totalorder %s19, 0
      // Predicated region
      $region33: #{gnmt_forward.23} parent=31 // pred_check
        %p314 = pneg %p313
      $region34: #{gnmt_forward.23} parent=31 // pred_check_branch
        %316 = sbr.rel (%p314) target = $region36
      $region35: #{gnmt_forward.23} parent=31 // pred_region
        %vm317 = vcmask 254976
        %318 = vst.msk [vmem:[#allocation2] sm:$0x3] %vm317, 0.0
        %319 = vst.msk [vmem:[#allocation3] sm:$0x3] %vm317, 0.0
      $region36: #{gnmt_forward.23} parent=31 // pred_fallthru
        _
      %v320 = vld [vmem:[#allocation2] sm:$0x3]
      %v321 = vld [vmem:[#allocation3] sm:$0x3]
      %v322 = vld [vmem:[%s274] sm:$0x3]
      %v323 = vpack.c.bf16 %v320, %v320
      %v324 = vld [vmem:[%s295] sm:$0xf]
      %v325 = vld [vmem:[%s295 + $0x4] sm:$0xf]
      %v326 = vld [vmem:[%s295 + $0x8] sm:$0xf]
      %v327 = vld [vmem:[%s295 + $0xc] sm:$0xf]
      %v332 = vunpack.c.l.b16 %v324
      %v333 = vunpack.c.l.b16 %v325
      %v334 = vunpack.c.l.b16 %v326
      %v335 = vunpack.c.l.b16 %v327
      %v336 = vpack.c.b16 %v333, %v332
      %v337 = vpack.c.b16 %v335, %v334
      %vm340 = vcmask 261120
      %v342 = vsel %vm340, %v323, 0
      %344 = vmatpush.bf16.msra.mxu0 0
      %345 = vmatpush.bf16.msra.mxu0 0
      %346 = vmatpush.bf16.msra.mxu0 0
      %347 = vmatpush.bf16.msra.mxu0 0
      %348 = vmatpush.bf16.msra.mxu0 0
      %349 = vmatpush.bf16.msra.mxu0 0
      %350 = vmatpush.bf16.msra.mxu0 %v337
      %351 = vmatpush.bf16.msra.mxu0 %v336
      %352 = vmatmul.bf16.gmra.mxu0 %v342
      %v353 = vpop.f32.mrf.mxu0
      %v354 = vadd.f32 0.0, %v353
      %v355 = vpop.f32.mrf.mxu0
      %356 = vdwg.mxu0
      %v357 = vadd.f32 %v322, %v354
      %v358 = vxor.u32 %v357, 2147483648
      %v359 = vmul.f32 %v358, 1.442695
      %v360 = vpow.pop %v359
      %v361 = vadd.f32 %v360, 1.0
      %v362 = vrcp.pop %v361
      %v363 = vmul.f32 %v361, %v362
      %v364 = vsub.f32 1.0, %v363
      %v365 = vmul.f32 %v362, %v364
      %v366 = vadd.f32 %v362, %v365
      %vm367 = vweird.f32 %v361
      %vm368 = vweird.f32 %v362
      %vm369 = vmor %vm367, %vm368
      %v370 = vsel %vm369, %v362, %v366
      %v371 = vand.u32 2147483647, %v361
      %vm372 = vcmp.eq.f32.partialorder %v371, 8.507059e+37
      %v373 = vand.u32 %v361, 2147483648
      %v374 = vor.u32 1.1754944e-38, %v373
      %v375 = vsel %vm372, %v374, %v370
      %v376 = vmul.f32 1.0, %v375
      %v377 = vtanh.pop %v357
      %379 = vrot.lane.b32.xlu0 %v321, 32
      %v380 = vpop.permute.xlu0 %379
      %v382 = vmul.f32 %v376, %v380
      %384 = vrot.lane.b32.xlu0 %v377, 64
      %v385 = vpop.permute.xlu0 %384
      %v387 = vmul.f32 %v376, %v385
      %389 = vrot.lane.b32.xlu0 %v387, 32
      %v390 = vpop.permute.xlu0 %389
      %v392 = vadd.f32 %v382, %v390
      %v393 = vtanh.pop %v392
      %395 = vrot.lane.b32.xlu0 %v393, 64
      %v396 = vpop.permute.xlu0 %395
      %v398 = vmul.f32 %v376, %v396
      %v399 = vld [vmem:[%s286] sm:$0x3]
      %401 = vset.pattern.permute.xlu0 0
      %402 = vperm.xlu0 %401, %v399
      %v403 = vpop.permute.xlu0 %402
      %v405 = vmul.f32 %v403, %v392
      %v406 = vsub.f32 1.0, %v399
      %408 = vset.pattern.permute.xlu0 0
      %409 = vperm.xlu0 %408, %v406
      %v410 = vpop.permute.xlu0 %409
      %v412 = vmul.f32 %v410, %v321
      %414 = vrot.lane.b32.xlu0 %v412, 32
      %v415 = vpop.permute.xlu0 %414
      %v417 = vadd.f32 %v405, %v415
      %419 = vrot.lane.b32.xlu0 %v417, 96
      %v420 = vpop.permute.xlu0 %419
      %vm422 = vcmask 254976
      %423 = vst.msk [vmem:[#allocation3] sm:$0x3] %vm422, %v420
      %v424 = vmul.f32 %v403, %v398
      %v425 = vmul.f32 %v410, %v320
      %427 = vrot.lane.b32.xlu0 %v425, 96
      %v428 = vpop.permute.xlu0 %427
      %v430 = vadd.f32 %v424, %v428
      %432 = vrot.lane.b32.xlu0 %v430, 32
      %v433 = vpop.permute.xlu0 %432
      %435 = vst.msk [vmem:[#allocation2] sm:$0x3] %vm422, %v433
      %437 = vrot.lane.b32.xlu0 %v424, 32
      %v438 = vpop.permute.xlu0 %437
      %440 = vst.msk [vmem:[%s307] sm:$0x3] %vm422, %v438
      %s441 = smul.u32 %s19, 2
      %s442 = ssub.s32 7, %s441
      %s443 = smul.u32 %s18, %s442
      %s444 = sadd.s32 %s19, %s443
      %p445 = scmp.lt.s32.totalorder %s18, 0
      %s446 = scalar_select %p445, %s18, 0
      %p447 = scmp.lt.s32.totalorder %s444, 7
      %s448 = scalar_select %p447, %s444, 7
      %s449 = smul.addr %s446, 8
      %s450 = sadd.s32 %s448, %s449
      %s451 = smul.addr %s450, 2
      %s452 = scalar_lea.vmem %s3, %s451
      // Predicated region
      $region37: #{gnmt_forward.23} parent=31 // pred_check
        %p453 = pneg %p150
      $region38: #{gnmt_forward.23} parent=31 // pred_check_branch
        %455 = sbr.rel (%p453) target = $region40
      $region39: #{gnmt_forward.23} parent=31 // pred_region
        %s456 = smul.u32 %s19, 2
        %s457 = ssub.s32 7, %s456
        %s458 = smul.u32 %s18, %s457
        %s459 = sadd.s32 %s19, %s458
      $region40: #{gnmt_forward.23} parent=31 // pred_fallthru
        _
    $region32: #{gnmt_forward.23} parent=5 // pred_fallthru
      _
    %p460 = scmp.le.s32.totalorder 2, %s9
    // Predicated region
    $region41: #{gnmt_forward.23} parent=5 // pred_check
      %p461 = pneg %p460
    $region42: #{gnmt_forward.23} parent=5 // pred_check_branch
      %463 = sbr.rel (%p461) target = $region44
    $region43: #{gnmt_forward.23} parent=5 // pred_region
      %s464 = ssub.s32 %s9, 2
      // Predicated region
      $region45: #{gnmt_forward.23} parent=43 // pred_check
        %p465 = pneg %p156
      $region46: #{gnmt_forward.23} parent=43 // pred_check_branch
        %467 = sbr.rel (%p465) target = $region48
      $region47: #{gnmt_forward.23} parent=43 // pred_region
        %s468 = smul.u32 %s21, 2
        %s469 = ssub.s32 7, %s468
        %s470 = smul.u32 %s20, %s469
        %s471 = sadd.s32 %s21, %s470
        %p472 = scmp.lt.s32.totalorder %s20, 0
        %s473 = scalar_select %p472, %s20, 0
        %p474 = scmp.lt.s32.totalorder %s471, 7
        %s475 = scalar_select %p474, %s471, 7
        %s476 = smul.addr %s473, 8
        %s477 = sadd.s32 %s475, %s476
        %s478 = smul.addr %s477, 2
        %s479 = scalar_lea.vmem %s3, %s478
      $region48: #{gnmt_forward.23} parent=43 // pred_fallthru
        _
    $region44: #{gnmt_forward.23} parent=5 // pred_fallthru
      _
  $region6: #{gnmt_forward.23} parent=0 // loop_footer
    %s13 = sadd.s32 1, %s9
  $region7: #{gnmt_forward.23} parent=0 // loop_footer_branch
    %8 = sbr.rel target = $region3
  $region8: #{gnmt_forward.23} parent=0 // loop_exit
    _

// kernel: gnmt_forward.24
$region0: #{gnmt_forward.24}
  #allocation0 [shape = 'u32[]', space=smem, size = 0x4, offset = 0x4, fixed_abs, tag = 'smem constant byte address 0x4 - core index']
  #allocation1 [shape = 'u32[72,128]{1,0:T(1,128)}', space=vmem, size = 0x9000, scoped, tag = 'internal scratch']
  %s0 = inlined_call_operand.vmem [shape: f32[16,32], index: 0, kind: input, shape index: {}]
  %s1 = inlined_call_operand.vmem [shape: bf16[32,128], index: 1, kind: input, shape index: {}]
  %s2 = inlined_call_operand.vmem [shape: f32[1,128], index: 2, kind: input, shape index: {}]
  %s3 = inlined_call_operand.vmem [shape: f32[16,128], index: 3, kind: output, shape index: {}]
  %s4 = sld [smem:[#allocation0]]
  $region22: #{gnmt_forward.24} parent=0
    _
  %s6 = ssub.s32 1, %s4
  %s7 = scalar_select 0, %s6, %s4
  // Predicated region
  $region2: #{gnmt_forward.24} parent=0 // pred_check
    _
  $region3: #{gnmt_forward.24} parent=0 // pred_check_branch
    %9 = sbr.rel (0) target = $region5
  $region4: #{gnmt_forward.24} parent=0 // pred_region
    _
  $region5: #{gnmt_forward.24} parent=0 // pred_fallthru
    _
  // Predicated region
  $region6: #{gnmt_forward.24} parent=0 // pred_check
    _
  $region7: #{gnmt_forward.24} parent=0 // pred_check_branch
    %11 = sbr.rel (0) target = $region9
  $region8: #{gnmt_forward.24} parent=0 // pred_region
    _
  $region9: #{gnmt_forward.24} parent=0 // pred_fallthru
    _
  // Predicated region
  $region10: #{gnmt_forward.24} parent=0 // pred_check
    _
  $region11: #{gnmt_forward.24} parent=0 // pred_check_branch
    %13 = sbr.rel (0) target = $region13
  $region12: #{gnmt_forward.24} parent=0 // pred_region
    _
  $region13: #{gnmt_forward.24} parent=0 // pred_fallthru
    _
  %v15 = vld [vmem:[%s0] sm:$0xff]
  %v16 = vld [vmem:[%s0 + $0x8] sm:$0xff]
  %v17 = vpack.c.bf16 %v16, %v15
  %v18 = vld [vmem:[%s1] sm:$0xf]
  %v19 = vld [vmem:[%s1 + $0x4] sm:$0xf]
  %v20 = vld [vmem:[%s1 + $0x8] sm:$0xf]
  %v21 = vld [vmem:[%s1 + $0xc] sm:$0xf]
  %v22 = vld [vmem:[%s2] sm:$0x1]
  %v24 = vperm.slane %v22, 0
  %v30 = vunpack.c.l.b16 %v18
  %v31 = vunpack.c.l.b16 %v19
  %v32 = vunpack.c.l.b16 %v20
  %v33 = vunpack.c.l.b16 %v21
  %v34 = vpack.c.b16 %v31, %v30
  %v35 = vpack.c.b16 %v33, %v32
  %vm38 = vcmask 261120
  %v40 = vsel %vm38, %v17, 0
  %42 = vmatpush.bf16.msra.mxu0 0
  %43 = vmatpush.bf16.msra.mxu0 0
  %44 = vmatpush.bf16.msra.mxu0 0
  %45 = vmatpush.bf16.msra.mxu0 0
  %46 = vmatpush.bf16.msra.mxu0 0
  %47 = vmatpush.bf16.msra.mxu0 0
  %48 = vmatpush.bf16.msra.mxu0 %v35
  %49 = vmatpush.bf16.msra.mxu0 %v34
  %50 = vmatmul.bf16.gmra.mxu0 %v40
  %v51 = vpop.f32.mrf.mxu0
  %v52 = vadd.f32 %v24, %v51
  %v53 = vpop.f32.mrf.mxu0
  %v54 = vadd.f32 %v24, %v53
  %55 = vdwg.mxu0
  %56 = vst [vmem:[%s3] sm:$0xff] %v52
  %57 = vst [vmem:[%s3 + $0x8] sm:$0xff] %v54
  // Predicated region
  $region14: #{gnmt_forward.24} parent=0 // pred_check
    _
  $region15: #{gnmt_forward.24} parent=0 // pred_check_branch
    %59 = sbr.rel (0) target = $region17
  $region16: #{gnmt_forward.24} parent=0 // pred_region
    _
  $region17: #{gnmt_forward.24} parent=0 // pred_fallthru
    _
  // Predicated region
  $region18: #{gnmt_forward.24} parent=0 // pred_check
    _
  $region19: #{gnmt_forward.24} parent=0 // pred_check_branch
    %61 = sbr.rel (0) target = $region21
  $region20: #{gnmt_forward.24} parent=0 // pred_region
    _
  $region21: #{gnmt_forward.24} parent=0 // pred_fallthru
    _

// kernel: gnmt_forward.31
$region0: #{gnmt_forward.31}
  #allocation0 [shape = 'u32[]', space=smem, size = 0x4, offset = 0x4, fixed_abs, tag = 'smem constant byte address 0x4 - core index']
  #allocation1 [shape = 'u32[72,128]{1,0:T(1,128)}', space=vmem, size = 0x9000, scoped, tag = 'internal scratch']
  %s0 = inlined_call_operand.vmem [shape: f32[16,32], index: 0, kind: input, shape index: {}]
  %s1 = inlined_call_operand.vmem [shape: bf16[32,32], index: 1, kind: input, shape index: {}]
  %s2 = inlined_call_operand.vmem [shape: f32[16,32], index: 2, kind: output, shape index: {}]
  %s3 = sld [smem:[#allocation0]]
  $region18: #{gnmt_forward.31} parent=0
    _
  %s5 = ssub.s32 1, %s3
  %s6 = scalar_select 0, %s5, %s3
  // Predicated region
  $region2: #{gnmt_forward.31} parent=0 // pred_check
    _
  $region3: #{gnmt_forward.31} parent=0 // pred_check_branch
    %8 = sbr.rel (0) target = $region5
  $region4: #{gnmt_forward.31} parent=0 // pred_region
    _
  $region5: #{gnmt_forward.31} parent=0 // pred_fallthru
    _
  // Predicated region
  $region6: #{gnmt_forward.31} parent=0 // pred_check
    _
  $region7: #{gnmt_forward.31} parent=0 // pred_check_branch
    %10 = sbr.rel (0) target = $region9
  $region8: #{gnmt_forward.31} parent=0 // pred_region
    _
  $region9: #{gnmt_forward.31} parent=0 // pred_fallthru
    _
  %v12 = vld [vmem:[%s0] sm:$0xff]
  %v13 = vld [vmem:[%s0 + $0x8] sm:$0xff]
  %v14 = vpack.c.bf16 %v13, %v12
  %v15 = vld [vmem:[%s1] sm:$0xf]
  %v16 = vld [vmem:[%s1 + $0x4] sm:$0xf]
  %v17 = vld [vmem:[%s1 + $0x8] sm:$0xf]
  %v18 = vld [vmem:[%s1 + $0xc] sm:$0xf]
  %v23 = vunpack.c.l.b16 %v15
  %v24 = vunpack.c.l.b16 %v16
  %v25 = vunpack.c.l.b16 %v17
  %v26 = vunpack.c.l.b16 %v18
  %v27 = vpack.c.b16 %v24, %v23
  %v28 = vpack.c.b16 %v26, %v25
  %vm31 = vcmask 261120
  %v33 = vsel %vm31, %v14, 0
  %35 = vmatpush.bf16.msra.mxu0 0
  %36 = vmatpush.bf16.msra.mxu0 0
  %37 = vmatpush.bf16.msra.mxu0 0
  %38 = vmatpush.bf16.msra.mxu0 0
  %39 = vmatpush.bf16.msra.mxu0 0
  %40 = vmatpush.bf16.msra.mxu0 0
  %41 = vmatpush.bf16.msra.mxu0 %v28
  %42 = vmatpush.bf16.msra.mxu0 %v27
  %43 = vmatmul.bf16.gmra.mxu0 %v33
  %v44 = vpop.f32.mrf.mxu0
  %v45 = vadd.f32 0.0, %v44
  %v46 = vpop.f32.mrf.mxu0
  %v47 = vadd.f32 0.0, %v46
  %48 = vdwg.mxu0
  %49 = vst.msk [vmem:[%s2] sm:$0xff] %vm31, %v45
  %50 = vst.msk [vmem:[%s2 + $0x8] sm:$0xff] %vm31, %v47
  // Predicated region
  $region10: #{gnmt_forward.31} parent=0 // pred_check
    _
  $region11: #{gnmt_forward.31} parent=0 // pred_check_branch
    %52 = sbr.rel (0) target = $region13
  $region12: #{gnmt_forward.31} parent=0 // pred_region
    _
  $region13: #{gnmt_forward.31} parent=0 // pred_fallthru
    _
  // Predicated region
  $region14: #{gnmt_forward.31} parent=0 // pred_check
    _
  $region15: #{gnmt_forward.31} parent=0 // pred_check_branch
    %54 = sbr.rel (0) target = $region17
  $region16: #{gnmt_forward.31} parent=0 // pred_region
    _
  $region17: #{gnmt_forward.31} parent=0 // pred_fallthru
    _

// kernel: gnmt_forward.30
$region0: #{gnmt_forward.30}
  #allocation0 [shape = 'u32[]', space=smem, size = 0x4, offset = 0x4, fixed_abs, tag = 'smem constant byte address 0x4 - core index']
  #allocation1 [shape = 'u32[72,128]{1,0:T(1,128)}', space=vmem, size = 0x9000, scoped, tag = 'internal scratch']
  %s0 = inlined_call_operand.vmem [shape: f32[16,32], index: 0, kind: input, shape index: {}]
  %s1 = inlined_call_operand.vmem [shape: bf16[32,32], index: 1, kind: input, shape index: {}]
  %s2 = inlined_call_operand.vmem [shape: f32[1,32], index: 2, kind: input, shape index: {}]
  %s3 = inlined_call_operand.vmem [shape: f32[16,32], index: 3, kind: output, shape index: {}]
  %s4 = sld [smem:[#allocation0]]
  $region22: #{gnmt_forward.30} parent=0
    _
  %s6 = ssub.s32 1, %s4
  %s7 = scalar_select 0, %s6, %s4
  // Predicated region
  $region2: #{gnmt_forward.30} parent=0 // pred_check
    _
  $region3: #{gnmt_forward.30} parent=0 // pred_check_branch
    %9 = sbr.rel (0) target = $region5
  $region4: #{gnmt_forward.30} parent=0 // pred_region
    _
  $region5: #{gnmt_forward.30} parent=0 // pred_fallthru
    _
  // Predicated region
  $region6: #{gnmt_forward.30} parent=0 // pred_check
    _
  $region7: #{gnmt_forward.30} parent=0 // pred_check_branch
    %11 = sbr.rel (0) target = $region9
  $region8: #{gnmt_forward.30} parent=0 // pred_region
    _
  $region9: #{gnmt_forward.30} parent=0 // pred_fallthru
    _
  // Predicated region
  $region10: #{gnmt_forward.30} parent=0 // pred_check
    _
  $region11: #{gnmt_forward.30} parent=0 // pred_check_branch
    %13 = sbr.rel (0) target = $region13
  $region12: #{gnmt_forward.30} parent=0 // pred_region
    _
  $region13: #{gnmt_forward.30} parent=0 // pred_fallthru
    _
  %v15 = vld [vmem:[%s0] sm:$0xff]
  %v16 = vld [vmem:[%s0 + $0x8] sm:$0xff]
  %v17 = vpack.c.bf16 %v16, %v15
  %v18 = vld [vmem:[%s1] sm:$0xf]
  %v19 = vld [vmem:[%s1 + $0x4] sm:$0xf]
  %v20 = vld [vmem:[%s1 + $0x8] sm:$0xf]
  %v21 = vld [vmem:[%s1 + $0xc] sm:$0xf]
  %v22 = vld [vmem:[%s2] sm:$0x1]
  %v24 = vperm.slane %v22, 0
  %v30 = vunpack.c.l.b16 %v18
  %v31 = vunpack.c.l.b16 %v19
  %v32 = vunpack.c.l.b16 %v20
  %v33 = vunpack.c.l.b16 %v21
  %v34 = vpack.c.b16 %v31, %v30
  %v35 = vpack.c.b16 %v33, %v32
  %vm38 = vcmask 261120
  %v40 = vsel %vm38, %v17, 0
  %42 = vmatpush.bf16.msra.mxu0 0
  %43 = vmatpush.bf16.msra.mxu0 0
  %44 = vmatpush.bf16.msra.mxu0 0
  %45 = vmatpush.bf16.msra.mxu0 0
  %46 = vmatpush.bf16.msra.mxu0 0
  %47 = vmatpush.bf16.msra.mxu0 0
  %48 = vmatpush.bf16.msra.mxu0 %v35
  %49 = vmatpush.bf16.msra.mxu0 %v34
  %50 = vmatmul.bf16.gmra.mxu0 %v40
  %v51 = vpop.f32.mrf.mxu0
  %v52 = vadd.f32 %v24, %v51
  %v53 = vpop.f32.mrf.mxu0
  %v54 = vadd.f32 %v24, %v53
  %55 = vdwg.mxu0
  %56 = vst.msk [vmem:[%s3] sm:$0xff] %vm38, %v52
  %57 = vst.msk [vmem:[%s3 + $0x8] sm:$0xff] %vm38, %v54
  // Predicated region
  $region14: #{gnmt_forward.30} parent=0 // pred_check
    _
  $region15: #{gnmt_forward.30} parent=0 // pred_check_branch
    %59 = sbr.rel (0) target = $region17
  $region16: #{gnmt_forward.30} parent=0 // pred_region
    _
  $region17: #{gnmt_forward.30} parent=0 // pred_fallthru
    _
  // Predicated region
  $region18: #{gnmt_forward.30} parent=0 // pred_check
    _
  $region19: #{gnmt_forward.30} parent=0 // pred_check_branch
    %61 = sbr.rel (0) target = $region21
  $region20: #{gnmt_forward.30} parent=0 // pred_region
    _
  $region21: #{gnmt_forward.30} parent=0 // pred_fallthru
    _

// kernel: gnmt_forward.39
$region0: #{gnmt_forward.39}
  #allocation0 [shape = 'u32[]', space=smem, size = 0x4, offset = 0x4, fixed_abs, tag = 'smem constant byte address 0x4 - core index']
  #allocation1 [shape = 'u32[72,128]{1,0:T(1,128)}', space=vmem, size = 0x9000, scoped, tag = 'internal scratch']
  %s0 = inlined_call_operand.vmem [shape: f32[16,32], index: 0, kind: input, shape index: {}]
  %s1 = inlined_call_operand.vmem [shape: bf16[32,64], index: 1, kind: input, shape index: {}]
  %s2 = inlined_call_operand.vmem [shape: f32[1,64], index: 2, kind: input, shape index: {}]
  %s3 = inlined_call_operand.hbm [shape: f32[16,64], index: 3, kind: output, shape index: {}]
  %s4 = sld [smem:[#allocation0]]
  $region22: #{gnmt_forward.39} parent=0
    _
  %s6 = ssub.s32 1, %s4
  %s7 = scalar_select 0, %s6, %s4
  $region1: #{gnmt_forward.39} parent=0
    #allocation2 [shape = 'u8[8192]{0}', space=vmem, size = 0x2000, scoped, tag = 'output window, operand 0, single buffered']
    #allocation3 [shape = 's32[1]{0}', space=sflag, size = 0x4, scoped, tag = 'scoped memory for gnmt_forward.39']
    %8 = vsyncpa [#allocation3], 0
    // Predicated region
    $region2: #{gnmt_forward.39} parent=1 // pred_check
      _
    $region3: #{gnmt_forward.39} parent=1 // pred_check_branch
      %10 = sbr.rel (0) target = $region5
    $region4: #{gnmt_forward.39} parent=1 // pred_region
      _
    $region5: #{gnmt_forward.39} parent=1 // pred_fallthru
      _
    // Predicated region
    $region6: #{gnmt_forward.39} parent=1 // pred_check
      _
    $region7: #{gnmt_forward.39} parent=1 // pred_check_branch
      %12 = sbr.rel (0) target = $region9
    $region8: #{gnmt_forward.39} parent=1 // pred_region
      _
    $region9: #{gnmt_forward.39} parent=1 // pred_fallthru
      _
    // Predicated region
    $region10: #{gnmt_forward.39} parent=1 // pred_check
      _
    $region11: #{gnmt_forward.39} parent=1 // pred_check_branch
      %14 = sbr.rel (0) target = $region13
    $region12: #{gnmt_forward.39} parent=1 // pred_region
      _
    $region13: #{gnmt_forward.39} parent=1 // pred_fallthru
      _
    %v16 = vld [vmem:[%s0] sm:$0xff]
    %v17 = vld [vmem:[%s0 + $0x8] sm:$0xff]
    %v18 = vpack.c.bf16 %v17, %v16
    %v19 = vld [vmem:[%s1] sm:$0xf]
    %v20 = vld [vmem:[%s1 + $0x4] sm:$0xf]
    %v21 = vld [vmem:[%s1 + $0x8] sm:$0xf]
    %v22 = vld [vmem:[%s1 + $0xc] sm:$0xf]
    %v23 = vld [vmem:[%s2] sm:$0x1]
    %v25 = vperm.slane %v23, 0
    %v31 = vunpack.c.l.b16 %v19
    %v32 = vunpack.c.l.b16 %v20
    %v33 = vunpack.c.l.b16 %v21
    %v34 = vunpack.c.l.b16 %v22
    %v35 = vpack.c.b16 %v32, %v31
    %v36 = vpack.c.b16 %v34, %v33
    %vm39 = vcmask 261120
    %v41 = vsel %vm39, %v18, 0
    %43 = vmatpush.bf16.msra.mxu0 0
    %44 = vmatpush.bf16.msra.mxu0 0
    %45 = vmatpush.bf16.msra.mxu0 0
    %46 = vmatpush.bf16.msra.mxu0 0
    %47 = vmatpush.bf16.msra.mxu0 0
    %48 = vmatpush.bf16.msra.mxu0 0
    %49 = vmatpush.bf16.msra.mxu0 %v36
    %50 = vmatpush.bf16.msra.mxu0 %v35
    %51 = vmatmul.bf16.gmra.mxu0 %v41
    %v52 = vpop.f32.mrf.mxu0
    %v53 = vadd.f32 %v25, %v52
    %v54 = vpop.f32.mrf.mxu0
    %v55 = vadd.f32 %v25, %v54
    %56 = vdwg.mxu0
    %vm57 = vcmask 523264
    %58 = vst.msk [vmem:[#allocation2] sm:$0xff] %vm57, %v53
    %59 = vst.msk [vmem:[#allocation2 + $0x8] sm:$0xff] %vm57, %v55
    // Predicated region
    $region14: #{gnmt_forward.39} parent=1 // pred_check
      _
    $region15: #{gnmt_forward.39} parent=1 // pred_check_branch
      %61 = sbr.rel (0) target = $region17
    $region16: #{gnmt_forward.39} parent=1 // pred_region
      %63 = vsyncadd [#allocation3], 0
      %s64 = sshll.u32 [#allocation2], 4
      %s65 = int_to_ptr.vmem [resolvable:$true] %s64
      %s66 = sshll.u32 %s3, 4
      %s67 = int_to_ptr.hbm [resolvable:$true] %s66
      %72 = dma.vmem_to_hbm [thread:$0]  %s65, 256, %s67, [#allocation3], 128, 128, 8
    $region17: #{gnmt_forward.39} parent=1 // pred_fallthru
      _
    // Predicated region
    $region18: #{gnmt_forward.39} parent=1 // pred_check
      _
    $region19: #{gnmt_forward.39} parent=1 // pred_check_branch
      %74 = sbr.rel (0) target = $region21
    $region20: #{gnmt_forward.39} parent=1 // pred_region
      %76 = dma.done [#allocation3], 256
    $region21: #{gnmt_forward.39} parent=1 // pred_fallthru
      _
    %77 = vsyncpa [#allocation3], 1

// kernel: gnmt_forward.32
$region0: #{gnmt_forward.32}
  #allocation0 [shape = 'u32[]', space=smem, size = 0x4, offset = 0x4, fixed_abs, tag = 'smem constant byte address 0x4 - core index']
  #allocation1 [shape = 'u32[72,128]{1,0:T(1,128)}', space=vmem, size = 0x9000, scoped, tag = 'internal scratch']
  %s0 = inlined_call_operand.vmem [shape: f32[8,2,32], index: 0, kind: input, shape index: {}]
  %s1 = inlined_call_operand.vmem [shape: f32[8,2,32], index: 1, kind: input, shape index: {}]
  %s2 = inlined_call_operand.vmem [shape: f32[8,2,32], index: 2, kind: input, shape index: {}]
  %s3 = inlined_call_operand.vmem [shape: f32[1,32], index: 3, kind: input, shape index: {}]
  %s4 = inlined_call_operand.vmem [shape: f32[1,8,2], index: 4, kind: input, shape index: {}]
  %s5 = inlined_call_operand.vmem [shape: f32[8,2,32], index: 5, kind: output, shape index: {}]
  %s6 = sld [smem:[#allocation0]]
  $region30: #{gnmt_forward.32} parent=0
    _
  %s8 = ssub.s32 1, %s6
  %s9 = scalar_select 0, %s8, %s6
  // Predicated region
  $region2: #{gnmt_forward.32} parent=0 // pred_check
    _
  $region3: #{gnmt_forward.32} parent=0 // pred_check_branch
    %11 = sbr.rel (0) target = $region5
  $region4: #{gnmt_forward.32} parent=0 // pred_region
    _
  $region5: #{gnmt_forward.32} parent=0 // pred_fallthru
    _
  // Predicated region
  $region6: #{gnmt_forward.32} parent=0 // pred_check
    _
  $region7: #{gnmt_forward.32} parent=0 // pred_check_branch
    %13 = sbr.rel (0) target = $region9
  $region8: #{gnmt_forward.32} parent=0 // pred_region
    _
  $region9: #{gnmt_forward.32} parent=0 // pred_fallthru
    _
  // Predicated region
  $region10: #{gnmt_forward.32} parent=0 // pred_check
    _
  $region11: #{gnmt_forward.32} parent=0 // pred_check_branch
    %15 = sbr.rel (0) target = $region13
  $region12: #{gnmt_forward.32} parent=0 // pred_region
    _
  $region13: #{gnmt_forward.32} parent=0 // pred_fallthru
    _
  // Predicated region
  $region14: #{gnmt_forward.32} parent=0 // pred_check
    _
  $region15: #{gnmt_forward.32} parent=0 // pred_check_branch
    %17 = sbr.rel (0) target = $region17
  $region16: #{gnmt_forward.32} parent=0 // pred_region
    _
  $region17: #{gnmt_forward.32} parent=0 // pred_fallthru
    _
  // Predicated region
  $region18: #{gnmt_forward.32} parent=0 // pred_check
    _
  $region19: #{gnmt_forward.32} parent=0 // pred_check_branch
    %19 = sbr.rel (0) target = $region21
  $region20: #{gnmt_forward.32} parent=0 // pred_region
    _
  $region21: #{gnmt_forward.32} parent=0 // pred_fallthru
    _
  %v20 = vld [vmem:[%s0] sm:$0x3]
  %v21 = vld [vmem:[%s0 + $0x2] sm:$0x3]
  %v22 = vld [vmem:[%s0 + $0x4] sm:$0x3]
  %v23 = vld [vmem:[%s0 + $0x6] sm:$0x3]
  %v24 = vld [vmem:[%s0 + $0x8] sm:$0x3]
  %v25 = vld [vmem:[%s0 + $0xa] sm:$0x3]
  %v26 = vld [vmem:[%s0 + $0xc] sm:$0x3]
  %v27 = vld [vmem:[%s0 + $0xe] sm:$0x3]
  %v28 = vld [vmem:[%s1] sm:$0x3]
  %v29 = vld [vmem:[%s1 + $0x2] sm:$0x3]
  %v30 = vld [vmem:[%s1 + $0x4] sm:$0x3]
  %v31 = vld [vmem:[%s1 + $0x6] sm:$0x3]
  %v32 = vld [vmem:[%s1 + $0x8] sm:$0x3]
  %v33 = vld [vmem:[%s1 + $0xa] sm:$0x3]
  %v34 = vld [vmem:[%s1 + $0xc] sm:$0x3]
  %v35 = vld [vmem:[%s1 + $0xe] sm:$0x3]
  %v36 = vld [vmem:[%s2] sm:$0x3]
  %v37 = vld [vmem:[%s2 + $0x2] sm:$0x3]
  %v38 = vld [vmem:[%s2 + $0x4] sm:$0x3]
  %v39 = vld [vmem:[%s2 + $0x6] sm:$0x3]
  %v40 = vld [vmem:[%s2 + $0x8] sm:$0x3]
  %v41 = vld [vmem:[%s2 + $0xa] sm:$0x3]
  %v42 = vld [vmem:[%s2 + $0xc] sm:$0x3]
  %v43 = vld [vmem:[%s2 + $0xe] sm:$0x3]
  %v44 = vadd.f32 %v20, %v28
  %v45 = vadd.f32 %v20, %v29
  %v46 = vadd.f32 %v20, %v30
  %v47 = vadd.f32 %v20, %v31
  %v48 = vadd.f32 %v20, %v32
  %v49 = vadd.f32 %v20, %v33
  %v50 = vadd.f32 %v20, %v34
  %v51 = vadd.f32 %v20, %v35
  %v52 = vadd.f32 %v21, %v28
  %v53 = vadd.f32 %v21, %v29
  %v54 = vadd.f32 %v21, %v30
  %v55 = vadd.f32 %v21, %v31
  %v56 = vadd.f32 %v21, %v32
  %v57 = vadd.f32 %v21, %v33
  %v58 = vadd.f32 %v21, %v34
  %v59 = vadd.f32 %v21, %v35
  %v60 = vadd.f32 %v22, %v28
  %v61 = vadd.f32 %v22, %v29
  %v62 = vadd.f32 %v22, %v30
  %v63 = vadd.f32 %v22, %v31
  %v64 = vadd.f32 %v22, %v32
  %v65 = vadd.f32 %v22, %v33
  %v66 = vadd.f32 %v22, %v34
  %v67 = vadd.f32 %v22, %v35
  %v68 = vadd.f32 %v23, %v28
  %v69 = vadd.f32 %v23, %v29
  %v70 = vadd.f32 %v23, %v30
  %v71 = vadd.f32 %v23, %v31
  %v72 = vadd.f32 %v23, %v32
  %v73 = vadd.f32 %v23, %v33
  %v74 = vadd.f32 %v23, %v34
  %v75 = vadd.f32 %v23, %v35
  %v76 = vadd.f32 %v24, %v28
  %v77 = vadd.f32 %v24, %v29
  %v78 = vadd.f32 %v24, %v30
  %v79 = vadd.f32 %v24, %v31
  %v80 = vadd.f32 %v24, %v32
  %v81 = vadd.f32 %v24, %v33
  %v82 = vadd.f32 %v24, %v34
  %v83 = vadd.f32 %v24, %v35
  %v84 = vadd.f32 %v25, %v28
  %v85 = vadd.f32 %v25, %v29
  %v86 = vadd.f32 %v25, %v30
  %v87 = vadd.f32 %v25, %v31
  %v88 = vadd.f32 %v25, %v32
  %v89 = vadd.f32 %v25, %v33
  %v90 = vadd.f32 %v25, %v34
  %v91 = vadd.f32 %v25, %v35
  %v92 = vadd.f32 %v26, %v28
  %v93 = vadd.f32 %v26, %v29
  %v94 = vadd.f32 %v26, %v30
  %v95 = vadd.f32 %v26, %v31
  %v96 = vadd.f32 %v26, %v32
  %v97 = vadd.f32 %v26, %v33
  %v98 = vadd.f32 %v26, %v34
  %v99 = vadd.f32 %v26, %v35
  %v100 = vadd.f32 %v27, %v28
  %v101 = vadd.f32 %v27, %v29
  %v102 = vadd.f32 %v27, %v30
  %v103 = vadd.f32 %v27, %v31
  %v104 = vadd.f32 %v27, %v32
  %v105 = vadd.f32 %v27, %v33
  %v106 = vadd.f32 %v27, %v34
  %v107 = vadd.f32 %v27, %v35
  %v108 = vtanh.pop %v44
  %v109 = vtanh.pop %v45
  %v110 = vtanh.pop %v46
  %v111 = vtanh.pop %v47
  %v112 = vtanh.pop %v48
  %v113 = vtanh.pop %v49
  %v114 = vtanh.pop %v50
  %v115 = vtanh.pop %v51
  %v116 = vtanh.pop %v52
  %v117 = vtanh.pop %v53
  %v118 = vtanh.pop %v54
  %v119 = vtanh.pop %v55
  %v120 = vtanh.pop %v56
  %v121 = vtanh.pop %v57
  %v122 = vtanh.pop %v58
  %v123 = vtanh.pop %v59
  %v124 = vtanh.pop %v60
  %v125 = vtanh.pop %v61
  %v126 = vtanh.pop %v62
  %v127 = vtanh.pop %v63
  %v128 = vtanh.pop %v64
  %v129 = vtanh.pop %v65
  %v130 = vtanh.pop %v66
  %v131 = vtanh.pop %v67
  %v132 = vtanh.pop %v68
  %v133 = vtanh.pop %v69
  %v134 = vtanh.pop %v70
  %v135 = vtanh.pop %v71
  %v136 = vtanh.pop %v72
  %v137 = vtanh.pop %v73
  %v138 = vtanh.pop %v74
  %v139 = vtanh.pop %v75
  %v140 = vtanh.pop %v76
  %v141 = vtanh.pop %v77
  %v142 = vtanh.pop %v78
  %v143 = vtanh.pop %v79
  %v144 = vtanh.pop %v80
  %v145 = vtanh.pop %v81
  %v146 = vtanh.pop %v82
  %v147 = vtanh.pop %v83
  %v148 = vtanh.pop %v84
  %v149 = vtanh.pop %v85
  %v150 = vtanh.pop %v86
  %v151 = vtanh.pop %v87
  %v152 = vtanh.pop %v88
  %v153 = vtanh.pop %v89
  %v154 = vtanh.pop %v90
  %v155 = vtanh.pop %v91
  %v156 = vtanh.pop %v92
  %v157 = vtanh.pop %v93
  %v158 = vtanh.pop %v94
  %v159 = vtanh.pop %v95
  %v160 = vtanh.pop %v96
  %v161 = vtanh.pop %v97
  %v162 = vtanh.pop %v98
  %v163 = vtanh.pop %v99
  %v164 = vtanh.pop %v100
  %v165 = vtanh.pop %v101
  %v166 = vtanh.pop %v102
  %v167 = vtanh.pop %v103
  %v168 = vtanh.pop %v104
  %v169 = vtanh.pop %v105
  %v170 = vtanh.pop %v106
  %v171 = vtanh.pop %v107
  %v172 = vld [vmem:[%s3] sm:$0x1]
  %v174 = vperm.slane %v172, 0
  %v176 = vmul.f32 %v108, %v174
  %v177 = vmul.f32 %v109, %v174
  %v178 = vmul.f32 %v110, %v174
  %v179 = vmul.f32 %v111, %v174
  %v180 = vmul.f32 %v112, %v174
  %v181 = vmul.f32 %v113, %v174
  %v182 = vmul.f32 %v114, %v174
  %v183 = vmul.f32 %v115, %v174
  %v184 = vmul.f32 %v116, %v174
  %v185 = vmul.f32 %v117, %v174
  %v186 = vmul.f32 %v118, %v174
  %v187 = vmul.f32 %v119, %v174
  %v188 = vmul.f32 %v120, %v174
  %v189 = vmul.f32 %v121, %v174
  %v190 = vmul.f32 %v122, %v174
  %v191 = vmul.f32 %v123, %v174
  %v192 = vmul.f32 %v124, %v174
  %v193 = vmul.f32 %v125, %v174
  %v194 = vmul.f32 %v126, %v174
  %v195 = vmul.f32 %v127, %v174
  %v196 = vmul.f32 %v128, %v174
  %v197 = vmul.f32 %v129, %v174
  %v198 = vmul.f32 %v130, %v174
  %v199 = vmul.f32 %v131, %v174
  %v200 = vmul.f32 %v132, %v174
  %v201 = vmul.f32 %v133, %v174
  %v202 = vmul.f32 %v134, %v174
  %v203 = vmul.f32 %v135, %v174
  %v204 = vmul.f32 %v136, %v174
  %v205 = vmul.f32 %v137, %v174
  %v206 = vmul.f32 %v138, %v174
  %v207 = vmul.f32 %v139, %v174
  %v208 = vmul.f32 %v140, %v174
  %v209 = vmul.f32 %v141, %v174
  %v210 = vmul.f32 %v142, %v174
  %v211 = vmul.f32 %v143, %v174
  %v212 = vmul.f32 %v144, %v174
  %v213 = vmul.f32 %v145, %v174
  %v214 = vmul.f32 %v146, %v174
  %v215 = vmul.f32 %v147, %v174
  %v216 = vmul.f32 %v148, %v174
  %v217 = vmul.f32 %v149, %v174
  %v218 = vmul.f32 %v150, %v174
  %v219 = vmul.f32 %v151, %v174
  %v220 = vmul.f32 %v152, %v174
  %v221 = vmul.f32 %v153, %v174
  %v222 = vmul.f32 %v154, %v174
  %v223 = vmul.f32 %v155, %v174
  %v224 = vmul.f32 %v156, %v174
  %v225 = vmul.f32 %v157, %v174
  %v226 = vmul.f32 %v158, %v174
  %v227 = vmul.f32 %v159, %v174
  %v228 = vmul.f32 %v160, %v174
  %v229 = vmul.f32 %v161, %v174
  %v230 = vmul.f32 %v162, %v174
  %v231 = vmul.f32 %v163, %v174
  %v232 = vmul.f32 %v164, %v174
  %v233 = vmul.f32 %v165, %v174
  %v234 = vmul.f32 %v166, %v174
  %v235 = vmul.f32 %v167, %v174
  %v236 = vmul.f32 %v168, %v174
  %v237 = vmul.f32 %v169, %v174
  %v238 = vmul.f32 %v170, %v174
  %v239 = vmul.f32 %v171, %v174
  %vm240 = vcmask 254976
  %v241 = vsel %vm240, %v176, 0.0
  %242 = vadd.xlane.f32.xlu0 %v241
  %v243 = vpop.xlane.xlu0 %242
  %v244 = vsel %vm240, %v177, 0.0
  %245 = vadd.xlane.f32.xlu0 %v244
  %v246 = vpop.xlane.xlu0 %245
  %v247 = vsel %vm240, %v178, 0.0
  %248 = vadd.xlane.f32.xlu0 %v247
  %v249 = vpop.xlane.xlu0 %248
  %v250 = vsel %vm240, %v179, 0.0
  %251 = vadd.xlane.f32.xlu0 %v250
  %v252 = vpop.xlane.xlu0 %251
  %v253 = vsel %vm240, %v180, 0.0
  %254 = vadd.xlane.f32.xlu0 %v253
  %v255 = vpop.xlane.xlu0 %254
  %v256 = vsel %vm240, %v181, 0.0
  %257 = vadd.xlane.f32.xlu0 %v256
  %v258 = vpop.xlane.xlu0 %257
  %v259 = vsel %vm240, %v182, 0.0
  %260 = vadd.xlane.f32.xlu0 %v259
  %v261 = vpop.xlane.xlu0 %260
  %v262 = vsel %vm240, %v183, 0.0
  %263 = vadd.xlane.f32.xlu0 %v262
  %v264 = vpop.xlane.xlu0 %263
  %v265 = vsel %vm240, %v184, 0.0
  %266 = vadd.xlane.f32.xlu0 %v265
  %v267 = vpop.xlane.xlu0 %266
  %v268 = vsel %vm240, %v185, 0.0
  %269 = vadd.xlane.f32.xlu0 %v268
  %v270 = vpop.xlane.xlu0 %269
  %v271 = vsel %vm240, %v186, 0.0
  %272 = vadd.xlane.f32.xlu0 %v271
  %v273 = vpop.xlane.xlu0 %272
  %v274 = vsel %vm240, %v187, 0.0
  %275 = vadd.xlane.f32.xlu0 %v274
  %v276 = vpop.xlane.xlu0 %275
  %v277 = vsel %vm240, %v188, 0.0
  %278 = vadd.xlane.f32.xlu0 %v277
  %v279 = vpop.xlane.xlu0 %278
  %v280 = vsel %vm240, %v189, 0.0
  %281 = vadd.xlane.f32.xlu0 %v280
  %v282 = vpop.xlane.xlu0 %281
  %v283 = vsel %vm240, %v190, 0.0
  %284 = vadd.xlane.f32.xlu0 %v283
  %v285 = vpop.xlane.xlu0 %284
  %v286 = vsel %vm240, %v191, 0.0
  %287 = vadd.xlane.f32.xlu0 %v286
  %v288 = vpop.xlane.xlu0 %287
  %v289 = vsel %vm240, %v192, 0.0
  %290 = vadd.xlane.f32.xlu0 %v289
  %v291 = vpop.xlane.xlu0 %290
  %v292 = vsel %vm240, %v193, 0.0
  %293 = vadd.xlane.f32.xlu0 %v292
  %v294 = vpop.xlane.xlu0 %293
  %v295 = vsel %vm240, %v194, 0.0
  %296 = vadd.xlane.f32.xlu0 %v295
  %v297 = vpop.xlane.xlu0 %296
  %v298 = vsel %vm240, %v195, 0.0
  %299 = vadd.xlane.f32.xlu0 %v298
  %v300 = vpop.xlane.xlu0 %299
  %v301 = vsel %vm240, %v196, 0.0
  %302 = vadd.xlane.f32.xlu0 %v301
  %v303 = vpop.xlane.xlu0 %302
  %v304 = vsel %vm240, %v197, 0.0
  %305 = vadd.xlane.f32.xlu0 %v304
  %v306 = vpop.xlane.xlu0 %305
  %v307 = vsel %vm240, %v198, 0.0
  %308 = vadd.xlane.f32.xlu0 %v307
  %v309 = vpop.xlane.xlu0 %308
  %v310 = vsel %vm240, %v199, 0.0
  %311 = vadd.xlane.f32.xlu0 %v310
  %v312 = vpop.xlane.xlu0 %311
  %v313 = vsel %vm240, %v200, 0.0
  %314 = vadd.xlane.f32.xlu0 %v313
  %v315 = vpop.xlane.xlu0 %314
  %v316 = vsel %vm240, %v201, 0.0
  %317 = vadd.xlane.f32.xlu0 %v316
  %v318 = vpop.xlane.xlu0 %317
  %v319 = vsel %vm240, %v202, 0.0
  %320 = vadd.xlane.f32.xlu0 %v319
  %v321 = vpop.xlane.xlu0 %320
  %v322 = vsel %vm240, %v203, 0.0
  %323 = vadd.xlane.f32.xlu0 %v322
  %v324 = vpop.xlane.xlu0 %323
  %v325 = vsel %vm240, %v204, 0.0
  %326 = vadd.xlane.f32.xlu0 %v325
  %v327 = vpop.xlane.xlu0 %326
  %v328 = vsel %vm240, %v205, 0.0
  %329 = vadd.xlane.f32.xlu0 %v328
  %v330 = vpop.xlane.xlu0 %329
  %v331 = vsel %vm240, %v206, 0.0
  %332 = vadd.xlane.f32.xlu0 %v331
  %v333 = vpop.xlane.xlu0 %332
  %v334 = vsel %vm240, %v207, 0.0
  %335 = vadd.xlane.f32.xlu0 %v334
  %v336 = vpop.xlane.xlu0 %335
  %v337 = vsel %vm240, %v208, 0.0
  %338 = vadd.xlane.f32.xlu0 %v337
  %v339 = vpop.xlane.xlu0 %338
  %v340 = vsel %vm240, %v209, 0.0
  %341 = vadd.xlane.f32.xlu0 %v340
  %v342 = vpop.xlane.xlu0 %341
  %v343 = vsel %vm240, %v210, 0.0
  %344 = vadd.xlane.f32.xlu0 %v343
  %v345 = vpop.xlane.xlu0 %344
  %v346 = vsel %vm240, %v211, 0.0
  %347 = vadd.xlane.f32.xlu0 %v346
  %v348 = vpop.xlane.xlu0 %347
  %v349 = vsel %vm240, %v212, 0.0
  %350 = vadd.xlane.f32.xlu0 %v349
  %v351 = vpop.xlane.xlu0 %350
  %v352 = vsel %vm240, %v213, 0.0
  %353 = vadd.xlane.f32.xlu0 %v352
  %v354 = vpop.xlane.xlu0 %353
  %v355 = vsel %vm240, %v214, 0.0
  %356 = vadd.xlane.f32.xlu0 %v355
  %v357 = vpop.xlane.xlu0 %356
  %v358 = vsel %vm240, %v215, 0.0
  %359 = vadd.xlane.f32.xlu0 %v358
  %v360 = vpop.xlane.xlu0 %359
  %v361 = vsel %vm240, %v216, 0.0
  %362 = vadd.xlane.f32.xlu0 %v361
  %v363 = vpop.xlane.xlu0 %362
  %v364 = vsel %vm240, %v217, 0.0
  %365 = vadd.xlane.f32.xlu0 %v364
  %v366 = vpop.xlane.xlu0 %365
  %v367 = vsel %vm240, %v218, 0.0
  %368 = vadd.xlane.f32.xlu0 %v367
  %v369 = vpop.xlane.xlu0 %368
  %v370 = vsel %vm240, %v219, 0.0
  %371 = vadd.xlane.f32.xlu0 %v370
  %v372 = vpop.xlane.xlu0 %371
  %v373 = vsel %vm240, %v220, 0.0
  %374 = vadd.xlane.f32.xlu0 %v373
  %v375 = vpop.xlane.xlu0 %374
  %v376 = vsel %vm240, %v221, 0.0
  %377 = vadd.xlane.f32.xlu0 %v376
  %v378 = vpop.xlane.xlu0 %377
  %v379 = vsel %vm240, %v222, 0.0
  %380 = vadd.xlane.f32.xlu0 %v379
  %v381 = vpop.xlane.xlu0 %380
  %v382 = vsel %vm240, %v223, 0.0
  %383 = vadd.xlane.f32.xlu0 %v382
  %v384 = vpop.xlane.xlu0 %383
  %v385 = vsel %vm240, %v224, 0.0
  %386 = vadd.xlane.f32.xlu0 %v385
  %v387 = vpop.xlane.xlu0 %386
  %v388 = vsel %vm240, %v225, 0.0
  %389 = vadd.xlane.f32.xlu0 %v388
  %v390 = vpop.xlane.xlu0 %389
  %v391 = vsel %vm240, %v226, 0.0
  %392 = vadd.xlane.f32.xlu0 %v391
  %v393 = vpop.xlane.xlu0 %392
  %v394 = vsel %vm240, %v227, 0.0
  %395 = vadd.xlane.f32.xlu0 %v394
  %v396 = vpop.xlane.xlu0 %395
  %v397 = vsel %vm240, %v228, 0.0
  %398 = vadd.xlane.f32.xlu0 %v397
  %v399 = vpop.xlane.xlu0 %398
  %v400 = vsel %vm240, %v229, 0.0
  %401 = vadd.xlane.f32.xlu0 %v400
  %v402 = vpop.xlane.xlu0 %401
  %v403 = vsel %vm240, %v230, 0.0
  %404 = vadd.xlane.f32.xlu0 %v403
  %v405 = vpop.xlane.xlu0 %404
  %v406 = vsel %vm240, %v231, 0.0
  %407 = vadd.xlane.f32.xlu0 %v406
  %v408 = vpop.xlane.xlu0 %407
  %v409 = vsel %vm240, %v232, 0.0
  %410 = vadd.xlane.f32.xlu0 %v409
  %v411 = vpop.xlane.xlu0 %410
  %v412 = vsel %vm240, %v233, 0.0
  %413 = vadd.xlane.f32.xlu0 %v412
  %v414 = vpop.xlane.xlu0 %413
  %v415 = vsel %vm240, %v234, 0.0
  %416 = vadd.xlane.f32.xlu0 %v415
  %v417 = vpop.xlane.xlu0 %416
  %v418 = vsel %vm240, %v235, 0.0
  %419 = vadd.xlane.f32.xlu0 %v418
  %v420 = vpop.xlane.xlu0 %419
  %v421 = vsel %vm240, %v236, 0.0
  %422 = vadd.xlane.f32.xlu0 %v421
  %v423 = vpop.xlane.xlu0 %422
  %v424 = vsel %vm240, %v237, 0.0
  %425 = vadd.xlane.f32.xlu0 %v424
  %v426 = vpop.xlane.xlu0 %425
  %v427 = vsel %vm240, %v238, 0.0
  %428 = vadd.xlane.f32.xlu0 %v427
  %v429 = vpop.xlane.xlu0 %428
  %v430 = vsel %vm240, %v239, 0.0
  %431 = vadd.xlane.f32.xlu0 %v430
  %v432 = vpop.xlane.xlu0 %431
  %v433 = vld [vmem:[%s4] sm:$0xff]
  %vm434 = vcmp.gt.f32.partialorder %v433, 0.0
  %v435 = vsel %vm434, 1, 0
  %vm436 = vcmp.eq.s32.totalorder %v435, 1
  %v501 = vlaneseq
  %v502 = vand.u32 %v501, 127
  %v503 = vperm.slane %v243, %v502
  %v504 = vperm.slane %v246, %v502
  %v505 = vperm.slane %v249, %v502
  %v506 = vperm.slane %v252, %v502
  %v507 = vperm.slane %v255, %v502
  %v508 = vperm.slane %v258, %v502
  %v509 = vperm.slane %v261, %v502
  %v510 = vperm.slane %v264, %v502
  %v511 = vperm.slane %v267, %v502
  %v512 = vperm.slane %v270, %v502
  %v513 = vperm.slane %v273, %v502
  %v514 = vperm.slane %v276, %v502
  %v515 = vperm.slane %v279, %v502
  %v516 = vperm.slane %v282, %v502
  %v517 = vperm.slane %v285, %v502
  %v518 = vperm.slane %v288, %v502
  %v519 = vperm.slane %v291, %v502
  %v520 = vperm.slane %v294, %v502
  %v521 = vperm.slane %v297, %v502
  %v522 = vperm.slane %v300, %v502
  %v523 = vperm.slane %v303, %v502
  %v524 = vperm.slane %v306, %v502
  %v525 = vperm.slane %v309, %v502
  %v526 = vperm.slane %v312, %v502
  %v527 = vperm.slane %v315, %v502
  %v528 = vperm.slane %v318, %v502
  %v529 = vperm.slane %v321, %v502
  %v530 = vperm.slane %v324, %v502
  %v531 = vperm.slane %v327, %v502
  %v532 = vperm.slane %v330, %v502
  %v533 = vperm.slane %v333, %v502
  %v534 = vperm.slane %v336, %v502
  %v535 = vperm.slane %v339, %v502
  %v536 = vperm.slane %v342, %v502
  %v537 = vperm.slane %v345, %v502
  %v538 = vperm.slane %v348, %v502
  %v539 = vperm.slane %v351, %v502
  %v540 = vperm.slane %v354, %v502
  %v541 = vperm.slane %v357, %v502
  %v542 = vperm.slane %v360, %v502
  %v543 = vperm.slane %v363, %v502
  %v544 = vperm.slane %v366, %v502
  %v545 = vperm.slane %v369, %v502
  %v546 = vperm.slane %v372, %v502
  %v547 = vperm.slane %v375, %v502
  %v548 = vperm.slane %v378, %v502
  %v549 = vperm.slane %v381, %v502
  %v550 = vperm.slane %v384, %v502
  %v551 = vperm.slane %v387, %v502
  %v552 = vperm.slane %v390, %v502
  %v553 = vperm.slane %v393, %v502
  %v554 = vperm.slane %v396, %v502
  %v555 = vperm.slane %v399, %v502
  %v556 = vperm.slane %v402, %v502
  %v557 = vperm.slane %v405, %v502
  %v558 = vperm.slane %v408, %v502
  %v559 = vperm.slane %v411, %v502
  %v560 = vperm.slane %v414, %v502
  %v561 = vperm.slane %v417, %v502
  %v562 = vperm.slane %v420, %v502
  %v563 = vperm.slane %v423, %v502
  %v564 = vperm.slane %v426, %v502
  %v565 = vperm.slane %v429, %v502
  %v566 = vperm.slane %v432, %v502
  %vm567 = vcmask 1041409
  %v568 = vsel %vm567, %v504, %v503
  %vm569 = vcmask 1042434
  %v570 = vsel %vm569, %v505, %v568
  %vm571 = vcmask 1043459
  %v572 = vsel %vm571, %v506, %v570
  %vm573 = vcmask 1044484
  %v574 = vsel %vm573, %v507, %v572
  %vm575 = vcmask 1045509
  %v576 = vsel %vm575, %v508, %v574
  %vm577 = vcmask 1046534
  %v578 = vsel %vm577, %v509, %v576
  %vm579 = vcmask 1047559
  %v580 = vsel %vm579, %v510, %v578
  %v581 = vsel %vm567, %v512, %v511
  %v582 = vsel %vm569, %v513, %v581
  %v583 = vsel %vm571, %v514, %v582
  %v584 = vsel %vm573, %v515, %v583
  %v585 = vsel %vm575, %v516, %v584
  %v586 = vsel %vm577, %v517, %v585
  %v587 = vsel %vm579, %v518, %v586
  %v588 = vsel %vm567, %v520, %v519
  %v589 = vsel %vm569, %v521, %v588
  %v590 = vsel %vm571, %v522, %v589
  %v591 = vsel %vm573, %v523, %v590
  %v592 = vsel %vm575, %v524, %v591
  %v593 = vsel %vm577, %v525, %v592
  %v594 = vsel %vm579, %v526, %v593
  %v595 = vsel %vm567, %v528, %v527
  %v596 = vsel %vm569, %v529, %v595
  %v597 = vsel %vm571, %v530, %v596
  %v598 = vsel %vm573, %v531, %v597
  %v599 = vsel %vm575, %v532, %v598
  %v600 = vsel %vm577, %v533, %v599
  %v601 = vsel %vm579, %v534, %v600
  %v602 = vsel %vm567, %v536, %v535
  %v603 = vsel %vm569, %v537, %v602
  %v604 = vsel %vm571, %v538, %v603
  %v605 = vsel %vm573, %v539, %v604
  %v606 = vsel %vm575, %v540, %v605
  %v607 = vsel %vm577, %v541, %v606
  %v608 = vsel %vm579, %v542, %v607
  %v609 = vsel %vm567, %v544, %v543
  %v610 = vsel %vm569, %v545, %v609
  %v611 = vsel %vm571, %v546, %v610
  %v612 = vsel %vm573, %v547, %v611
  %v613 = vsel %vm575, %v548, %v612
  %v614 = vsel %vm577, %v549, %v613
  %v615 = vsel %vm579, %v550, %v614
  %v616 = vsel %vm567, %v552, %v551
  %v617 = vsel %vm569, %v553, %v616
  %v618 = vsel %vm571, %v554, %v617
  %v619 = vsel %vm573, %v555, %v618
  %v620 = vsel %vm575, %v556, %v619
  %v621 = vsel %vm577, %v557, %v620
  %v622 = vsel %vm579, %v558, %v621
  %v623 = vsel %vm567, %v560, %v559
  %v624 = vsel %vm569, %v561, %v623
  %v625 = vsel %vm571, %v562, %v624
  %v626 = vsel %vm573, %v563, %v625
  %v627 = vsel %vm575, %v564, %v626
  %v628 = vsel %vm577, %v565, %v627
  %v629 = vsel %vm579, %v566, %v628
  %v638 = vsel %vm436, %v580, -3.4028235e+38
  %v639 = vsel %vm436, %v587, -3.4028235e+38
  %v640 = vsel %vm436, %v594, -3.4028235e+38
  %v641 = vsel %vm436, %v601, -3.4028235e+38
  %v642 = vsel %vm436, %v608, -3.4028235e+38
  %v643 = vsel %vm436, %v615, -3.4028235e+38
  %v644 = vsel %vm436, %v622, -3.4028235e+38
  %v645 = vsel %vm436, %v629, -3.4028235e+38
  %vm646 = vcmask 15360
  %v647 = vsel %vm646, %v638, -inf
  %v648 = vrot.slane %v647, 4
  %v649 = vmax.f32 %v647, %v648
  %v650 = vrot.slane %v649, 2
  %v651 = vmax.f32 %v649, %v650
  %v652 = vrot.slane %v651, 1
  %v653 = vmax.f32 %v651, %v652
  %v654 = vsel %vm646, %v639, -inf
  %v655 = vrot.slane %v654, 4
  %v656 = vmax.f32 %v654, %v655
  %v657 = vrot.slane %v656, 2
  %v658 = vmax.f32 %v656, %v657
  %v659 = vrot.slane %v658, 1
  %v660 = vmax.f32 %v658, %v659
  %v661 = vsel %vm646, %v640, -inf
  %v662 = vrot.slane %v661, 4
  %v663 = vmax.f32 %v661, %v662
  %v664 = vrot.slane %v663, 2
  %v665 = vmax.f32 %v663, %v664
  %v666 = vrot.slane %v665, 1
  %v667 = vmax.f32 %v665, %v666
  %v668 = vsel %vm646, %v641, -inf
  %v669 = vrot.slane %v668, 4
  %v670 = vmax.f32 %v668, %v669
  %v671 = vrot.slane %v670, 2
  %v672 = vmax.f32 %v670, %v671
  %v673 = vrot.slane %v672, 1
  %v674 = vmax.f32 %v672, %v673
  %v675 = vsel %vm646, %v642, -inf
  %v676 = vrot.slane %v675, 4
  %v677 = vmax.f32 %v675, %v676
  %v678 = vrot.slane %v677, 2
  %v679 = vmax.f32 %v677, %v678
  %v680 = vrot.slane %v679, 1
  %v681 = vmax.f32 %v679, %v680
  %v682 = vsel %vm646, %v643, -inf
  %v683 = vrot.slane %v682, 4
  %v684 = vmax.f32 %v682, %v683
  %v685 = vrot.slane %v684, 2
  %v686 = vmax.f32 %v684, %v685
  %v687 = vrot.slane %v686, 1
  %v688 = vmax.f32 %v686, %v687
  %v689 = vsel %vm646, %v644, -inf
  %v690 = vrot.slane %v689, 4
  %v691 = vmax.f32 %v689, %v690
  %v692 = vrot.slane %v691, 2
  %v693 = vmax.f32 %v691, %v692
  %v694 = vrot.slane %v693, 1
  %v695 = vmax.f32 %v693, %v694
  %v696 = vsel %vm646, %v645, -inf
  %v697 = vrot.slane %v696, 4
  %v698 = vmax.f32 %v696, %v697
  %v699 = vrot.slane %v698, 2
  %v700 = vmax.f32 %v698, %v699
  %v701 = vrot.slane %v700, 1
  %v702 = vmax.f32 %v700, %v701
  %v703 = vsub.f32 %v638, %v653
  %v704 = vsub.f32 %v639, %v660
  %v705 = vsub.f32 %v640, %v667
  %v706 = vsub.f32 %v641, %v674
  %v707 = vsub.f32 %v642, %v681
  %v708 = vsub.f32 %v643, %v688
  %v709 = vsub.f32 %v644, %v695
  %v710 = vsub.f32 %v645, %v702
  %v711 = vmul.f32 %v703, 1.442695
  %v712 = vpow.pop %v711
  %v713 = vmul.f32 %v704, 1.442695
  %v714 = vpow.pop %v713
  %v715 = vmul.f32 %v705, 1.442695
  %v716 = vpow.pop %v715
  %v717 = vmul.f32 %v706, 1.442695
  %v718 = vpow.pop %v717
  %v719 = vmul.f32 %v707, 1.442695
  %v720 = vpow.pop %v719
  %v721 = vmul.f32 %v708, 1.442695
  %v722 = vpow.pop %v721
  %v723 = vmul.f32 %v709, 1.442695
  %v724 = vpow.pop %v723
  %v725 = vmul.f32 %v710, 1.442695
  %v726 = vpow.pop %v725
  %v727 = vsel %vm646, %v712, 0.0
  %v728 = vrot.slane %v727, 4
  %v729 = vadd.f32 %v727, %v728
  %v730 = vrot.slane %v729, 2
  %v731 = vadd.f32 %v729, %v730
  %v732 = vrot.slane %v731, 1
  %v733 = vadd.f32 %v731, %v732
  %v734 = vsel %vm646, %v714, 0.0
  %v735 = vrot.slane %v734, 4
  %v736 = vadd.f32 %v734, %v735
  %v737 = vrot.slane %v736, 2
  %v738 = vadd.f32 %v736, %v737
  %v739 = vrot.slane %v738, 1
  %v740 = vadd.f32 %v738, %v739
  %v741 = vsel %vm646, %v716, 0.0
  %v742 = vrot.slane %v741, 4
  %v743 = vadd.f32 %v741, %v742
  %v744 = vrot.slane %v743, 2
  %v745 = vadd.f32 %v743, %v744
  %v746 = vrot.slane %v745, 1
  %v747 = vadd.f32 %v745, %v746
  %v748 = vsel %vm646, %v718, 0.0
  %v749 = vrot.slane %v748, 4
  %v750 = vadd.f32 %v748, %v749
  %v751 = vrot.slane %v750, 2
  %v752 = vadd.f32 %v750, %v751
  %v753 = vrot.slane %v752, 1
  %v754 = vadd.f32 %v752, %v753
  %v755 = vsel %vm646, %v720, 0.0
  %v756 = vrot.slane %v755, 4
  %v757 = vadd.f32 %v755, %v756
  %v758 = vrot.slane %v757, 2
  %v759 = vadd.f32 %v757, %v758
  %v760 = vrot.slane %v759, 1
  %v761 = vadd.f32 %v759, %v760
  %v762 = vsel %vm646, %v722, 0.0
  %v763 = vrot.slane %v762, 4
  %v764 = vadd.f32 %v762, %v763
  %v765 = vrot.slane %v764, 2
  %v766 = vadd.f32 %v764, %v765
  %v767 = vrot.slane %v766, 1
  %v768 = vadd.f32 %v766, %v767
  %v769 = vsel %vm646, %v724, 0.0
  %v770 = vrot.slane %v769, 4
  %v771 = vadd.f32 %v769, %v770
  %v772 = vrot.slane %v771, 2
  %v773 = vadd.f32 %v771, %v772
  %v774 = vrot.slane %v773, 1
  %v775 = vadd.f32 %v773, %v774
  %v776 = vsel %vm646, %v726, 0.0
  %v777 = vrot.slane %v776, 4
  %v778 = vadd.f32 %v776, %v777
  %v779 = vrot.slane %v778, 2
  %v780 = vadd.f32 %v778, %v779
  %v781 = vrot.slane %v780, 1
  %v782 = vadd.f32 %v780, %v781
  %v783 = vrcp.pop %v733
  %v784 = vmul.f32 %v733, %v783
  %v785 = vsub.f32 1.0, %v784
  %v786 = vmul.f32 %v783, %v785
  %v787 = vadd.f32 %v783, %v786
  %vm788 = vweird.f32 %v733
  %vm789 = vweird.f32 %v783
  %vm790 = vmor %vm788, %vm789
  %v791 = vsel %vm790, %v783, %v787
  %v792 = vand.u32 2147483647, %v733
  %vm793 = vcmp.eq.f32.partialorder %v792, 8.507059e+37
  %v794 = vand.u32 %v733, 2147483648
  %v795 = vor.u32 1.1754944e-38, %v794
  %v796 = vsel %vm793, %v795, %v791
  %v797 = vmul.f32 %v712, %v796
  %v798 = vrcp.pop %v740
  %v799 = vmul.f32 %v740, %v798
  %v800 = vsub.f32 1.0, %v799
  %v801 = vmul.f32 %v798, %v800
  %v802 = vadd.f32 %v798, %v801
  %vm803 = vweird.f32 %v740
  %vm804 = vweird.f32 %v798
  %vm805 = vmor %vm803, %vm804
  %v806 = vsel %vm805, %v798, %v802
  %v807 = vand.u32 2147483647, %v740
  %vm808 = vcmp.eq.f32.partialorder %v807, 8.507059e+37
  %v809 = vand.u32 %v740, 2147483648
  %v810 = vor.u32 1.1754944e-38, %v809
  %v811 = vsel %vm808, %v810, %v806
  %v812 = vmul.f32 %v714, %v811
  %v813 = vrcp.pop %v747
  %v814 = vmul.f32 %v747, %v813
  %v815 = vsub.f32 1.0, %v814
  %v816 = vmul.f32 %v813, %v815
  %v817 = vadd.f32 %v813, %v816
  %vm818 = vweird.f32 %v747
  %vm819 = vweird.f32 %v813
  %vm820 = vmor %vm818, %vm819
  %v821 = vsel %vm820, %v813, %v817
  %v822 = vand.u32 2147483647, %v747
  %vm823 = vcmp.eq.f32.partialorder %v822, 8.507059e+37
  %v824 = vand.u32 %v747, 2147483648
  %v825 = vor.u32 1.1754944e-38, %v824
  %v826 = vsel %vm823, %v825, %v821
  %v827 = vmul.f32 %v716, %v826
  %v828 = vrcp.pop %v754
  %v829 = vmul.f32 %v754, %v828
  %v830 = vsub.f32 1.0, %v829
  %v831 = vmul.f32 %v828, %v830
  %v832 = vadd.f32 %v828, %v831
  %vm833 = vweird.f32 %v754
  %vm834 = vweird.f32 %v828
  %vm835 = vmor %vm833, %vm834
  %v836 = vsel %vm835, %v828, %v832
  %v837 = vand.u32 2147483647, %v754
  %vm838 = vcmp.eq.f32.partialorder %v837, 8.507059e+37
  %v839 = vand.u32 %v754, 2147483648
  %v840 = vor.u32 1.1754944e-38, %v839
  %v841 = vsel %vm838, %v840, %v836
  %v842 = vmul.f32 %v718, %v841
  %v843 = vrcp.pop %v761
  %v844 = vmul.f32 %v761, %v843
  %v845 = vsub.f32 1.0, %v844
  %v846 = vmul.f32 %v843, %v845
  %v847 = vadd.f32 %v843, %v846
  %vm848 = vweird.f32 %v761
  %vm849 = vweird.f32 %v843
  %vm850 = vmor %vm848, %vm849
  %v851 = vsel %vm850, %v843, %v847
  %v852 = vand.u32 2147483647, %v761
  %vm853 = vcmp.eq.f32.partialorder %v852, 8.507059e+37
  %v854 = vand.u32 %v761, 2147483648
  %v855 = vor.u32 1.1754944e-38, %v854
  %v856 = vsel %vm853, %v855, %v851
  %v857 = vmul.f32 %v720, %v856
  %v858 = vrcp.pop %v768
  %v859 = vmul.f32 %v768, %v858
  %v860 = vsub.f32 1.0, %v859
  %v861 = vmul.f32 %v858, %v860
  %v862 = vadd.f32 %v858, %v861
  %vm863 = vweird.f32 %v768
  %vm864 = vweird.f32 %v858
  %vm865 = vmor %vm863, %vm864
  %v866 = vsel %vm865, %v858, %v862
  %v867 = vand.u32 2147483647, %v768
  %vm868 = vcmp.eq.f32.partialorder %v867, 8.507059e+37
  %v869 = vand.u32 %v768, 2147483648
  %v870 = vor.u32 1.1754944e-38, %v869
  %v871 = vsel %vm868, %v870, %v866
  %v872 = vmul.f32 %v722, %v871
  %v873 = vrcp.pop %v775
  %v874 = vmul.f32 %v775, %v873
  %v875 = vsub.f32 1.0, %v874
  %v876 = vmul.f32 %v873, %v875
  %v877 = vadd.f32 %v873, %v876
  %vm878 = vweird.f32 %v775
  %vm879 = vweird.f32 %v873
  %vm880 = vmor %vm878, %vm879
  %v881 = vsel %vm880, %v873, %v877
  %v882 = vand.u32 2147483647, %v775
  %vm883 = vcmp.eq.f32.partialorder %v882, 8.507059e+37
  %v884 = vand.u32 %v775, 2147483648
  %v885 = vor.u32 1.1754944e-38, %v884
  %v886 = vsel %vm883, %v885, %v881
  %v887 = vmul.f32 %v724, %v886
  %v888 = vrcp.pop %v782
  %v889 = vmul.f32 %v782, %v888
  %v890 = vsub.f32 1.0, %v889
  %v891 = vmul.f32 %v888, %v890
  %v892 = vadd.f32 %v888, %v891
  %vm893 = vweird.f32 %v782
  %vm894 = vweird.f32 %v888
  %vm895 = vmor %vm893, %vm894
  %v896 = vsel %vm895, %v888, %v892
  %v897 = vand.u32 2147483647, %v782
  %vm898 = vcmp.eq.f32.partialorder %v897, 8.507059e+37
  %v899 = vand.u32 %v782, 2147483648
  %v900 = vor.u32 1.1754944e-38, %v899
  %v901 = vsel %vm898, %v900, %v896
  %v902 = vmul.f32 %v726, %v901
  %v903 = vperm.slane %v797, 0
  %v904 = vlaneseq
  %v905 = vshrl.u32 %v904, 7
  %907 = vset.pattern.permute.xlu0 %v905
  %908 = vperm.xlu0 %907, %v903
  %v909 = vpop.permute.xlu0 %908
  %v910 = vperm.slane %v797, 1
  %v911 = vlaneseq
  %v912 = vshrl.u32 %v911, 7
  %914 = vset.pattern.permute.xlu0 %v912
  %915 = vperm.xlu0 %914, %v910
  %v916 = vpop.permute.xlu0 %915
  %v917 = vperm.slane %v797, 2
  %v918 = vlaneseq
  %v919 = vshrl.u32 %v918, 7
  %921 = vset.pattern.permute.xlu0 %v919
  %922 = vperm.xlu0 %921, %v917
  %v923 = vpop.permute.xlu0 %922
  %v924 = vperm.slane %v797, 3
  %v925 = vlaneseq
  %v926 = vshrl.u32 %v925, 7
  %928 = vset.pattern.permute.xlu0 %v926
  %929 = vperm.xlu0 %928, %v924
  %v930 = vpop.permute.xlu0 %929
  %v931 = vperm.slane %v797, 4
  %v932 = vlaneseq
  %v933 = vshrl.u32 %v932, 7
  %935 = vset.pattern.permute.xlu0 %v933
  %936 = vperm.xlu0 %935, %v931
  %v937 = vpop.permute.xlu0 %936
  %v938 = vperm.slane %v797, 5
  %v939 = vlaneseq
  %v940 = vshrl.u32 %v939, 7
  %942 = vset.pattern.permute.xlu0 %v940
  %943 = vperm.xlu0 %942, %v938
  %v944 = vpop.permute.xlu0 %943
  %v945 = vperm.slane %v797, 6
  %v946 = vlaneseq
  %v947 = vshrl.u32 %v946, 7
  %949 = vset.pattern.permute.xlu0 %v947
  %950 = vperm.xlu0 %949, %v945
  %v951 = vpop.permute.xlu0 %950
  %v952 = vperm.slane %v797, 7
  %v953 = vlaneseq
  %v954 = vshrl.u32 %v953, 7
  %956 = vset.pattern.permute.xlu0 %v954
  %957 = vperm.xlu0 %956, %v952
  %v958 = vpop.permute.xlu0 %957
  %v959 = vperm.slane %v812, 0
  %v960 = vlaneseq
  %v961 = vshrl.u32 %v960, 7
  %963 = vset.pattern.permute.xlu0 %v961
  %964 = vperm.xlu0 %963, %v959
  %v965 = vpop.permute.xlu0 %964
  %v966 = vperm.slane %v812, 1
  %v967 = vlaneseq
  %v968 = vshrl.u32 %v967, 7
  %970 = vset.pattern.permute.xlu0 %v968
  %971 = vperm.xlu0 %970, %v966
  %v972 = vpop.permute.xlu0 %971
  %v973 = vperm.slane %v812, 2
  %v974 = vlaneseq
  %v975 = vshrl.u32 %v974, 7
  %977 = vset.pattern.permute.xlu0 %v975
  %978 = vperm.xlu0 %977, %v973
  %v979 = vpop.permute.xlu0 %978
  %v980 = vperm.slane %v812, 3
  %v981 = vlaneseq
  %v982 = vshrl.u32 %v981, 7
  %984 = vset.pattern.permute.xlu0 %v982
  %985 = vperm.xlu0 %984, %v980
  %v986 = vpop.permute.xlu0 %985
  %v987 = vperm.slane %v812, 4
  %v988 = vlaneseq
  %v989 = vshrl.u32 %v988, 7
  %991 = vset.pattern.permute.xlu0 %v989
  %992 = vperm.xlu0 %991, %v987
  %v993 = vpop.permute.xlu0 %992
  %v994 = vperm.slane %v812, 5
  %v995 = vlaneseq
  %v996 = vshrl.u32 %v995, 7
  %998 = vset.pattern.permute.xlu0 %v996
  %999 = vperm.xlu0 %998, %v994
  %v1000 = vpop.permute.xlu0 %999
  %v1001 = vperm.slane %v812, 6
  %v1002 = vlaneseq
  %v1003 = vshrl.u32 %v1002, 7
  %1005 = vset.pattern.permute.xlu0 %v1003
  %1006 = vperm.xlu0 %1005, %v1001
  %v1007 = vpop.permute.xlu0 %1006
  %v1008 = vperm.slane %v812, 7
  %v1009 = vlaneseq
  %v1010 = vshrl.u32 %v1009, 7
  %1012 = vset.pattern.permute.xlu0 %v1010
  %1013 = vperm.xlu0 %1012, %v1008
  %v1014 = vpop.permute.xlu0 %1013
  %v1015 = vperm.slane %v827, 0
  %v1016 = vlaneseq
  %v1017 = vshrl.u32 %v1016, 7
  %1019 = vset.pattern.permute.xlu0 %v1017
  %1020 = vperm.xlu0 %1019, %v1015
  %v1021 = vpop.permute.xlu0 %1020
  %v1022 = vperm.slane %v827, 1
  %v1023 = vlaneseq
  %v1024 = vshrl.u32 %v1023, 7
  %1026 = vset.pattern.permute.xlu0 %v1024
  %1027 = vperm.xlu0 %1026, %v1022
  %v1028 = vpop.permute.xlu0 %1027
  %v1029 = vperm.slane %v827, 2
  %v1030 = vlaneseq
  %v1031 = vshrl.u32 %v1030, 7
  %1033 = vset.pattern.permute.xlu0 %v1031
  %1034 = vperm.xlu0 %1033, %v1029
  %v1035 = vpop.permute.xlu0 %1034
  %v1036 = vperm.slane %v827, 3
  %v1037 = vlaneseq
  %v1038 = vshrl.u32 %v1037, 7
  %1040 = vset.pattern.permute.xlu0 %v1038
  %1041 = vperm.xlu0 %1040, %v1036
  %v1042 = vpop.permute.xlu0 %1041
  %v1043 = vperm.slane %v827, 4
  %v1044 = vlaneseq
  %v1045 = vshrl.u32 %v1044, 7
  %1047 = vset.pattern.permute.xlu0 %v1045
  %1048 = vperm.xlu0 %1047, %v1043
  %v1049 = vpop.permute.xlu0 %1048
  %v1050 = vperm.slane %v827, 5
  %v1051 = vlaneseq
  %v1052 = vshrl.u32 %v1051, 7
  %1054 = vset.pattern.permute.xlu0 %v1052
  %1055 = vperm.xlu0 %1054, %v1050
  %v1056 = vpop.permute.xlu0 %1055
  %v1057 = vperm.slane %v827, 6
  %v1058 = vlaneseq
  %v1059 = vshrl.u32 %v1058, 7
  %1061 = vset.pattern.permute.xlu0 %v1059
  %1062 = vperm.xlu0 %1061, %v1057
  %v1063 = vpop.permute.xlu0 %1062
  %v1064 = vperm.slane %v827, 7
  %v1065 = vlaneseq
  %v1066 = vshrl.u32 %v1065, 7
  %1068 = vset.pattern.permute.xlu0 %v1066
  %1069 = vperm.xlu0 %1068, %v1064
  %v1070 = vpop.permute.xlu0 %1069
  %v1071 = vperm.slane %v842, 0
  %v1072 = vlaneseq
  %v1073 = vshrl.u32 %v1072, 7
  %1075 = vset.pattern.permute.xlu0 %v1073
  %1076 = vperm.xlu0 %1075, %v1071
  %v1077 = vpop.permute.xlu0 %1076
  %v1078 = vperm.slane %v842, 1
  %v1079 = vlaneseq
  %v1080 = vshrl.u32 %v1079, 7
  %1082 = vset.pattern.permute.xlu0 %v1080
  %1083 = vperm.xlu0 %1082, %v1078
  %v1084 = vpop.permute.xlu0 %1083
  %v1085 = vperm.slane %v842, 2
  %v1086 = vlaneseq
  %v1087 = vshrl.u32 %v1086, 7
  %1089 = vset.pattern.permute.xlu0 %v1087
  %1090 = vperm.xlu0 %1089, %v1085
  %v1091 = vpop.permute.xlu0 %1090
  %v1092 = vperm.slane %v842, 3
  %v1093 = vlaneseq
  %v1094 = vshrl.u32 %v1093, 7
  %1096 = vset.pattern.permute.xlu0 %v1094
  %1097 = vperm.xlu0 %1096, %v1092
  %v1098 = vpop.permute.xlu0 %1097
  %v1099 = vperm.slane %v842, 4
  %v1100 = vlaneseq
  %v1101 = vshrl.u32 %v1100, 7
  %1103 = vset.pattern.permute.xlu0 %v1101
  %1104 = vperm.xlu0 %1103, %v1099
  %v1105 = vpop.permute.xlu0 %1104
  %v1106 = vperm.slane %v842, 5
  %v1107 = vlaneseq
  %v1108 = vshrl.u32 %v1107, 7
  %1110 = vset.pattern.permute.xlu0 %v1108
  %1111 = vperm.xlu0 %1110, %v1106
  %v1112 = vpop.permute.xlu0 %1111
  %v1113 = vperm.slane %v842, 6
  %v1114 = vlaneseq
  %v1115 = vshrl.u32 %v1114, 7
  %1117 = vset.pattern.permute.xlu0 %v1115
  %1118 = vperm.xlu0 %1117, %v1113
  %v1119 = vpop.permute.xlu0 %1118
  %v1120 = vperm.slane %v842, 7
  %v1121 = vlaneseq
  %v1122 = vshrl.u32 %v1121, 7
  %1124 = vset.pattern.permute.xlu0 %v1122
  %1125 = vperm.xlu0 %1124, %v1120
  %v1126 = vpop.permute.xlu0 %1125
  %v1127 = vperm.slane %v857, 0
  %v1128 = vlaneseq
  %v1129 = vshrl.u32 %v1128, 7
  %1131 = vset.pattern.permute.xlu0 %v1129
  %1132 = vperm.xlu0 %1131, %v1127
  %v1133 = vpop.permute.xlu0 %1132
  %v1134 = vperm.slane %v857, 1
  %v1135 = vlaneseq
  %v1136 = vshrl.u32 %v1135, 7
  %1138 = vset.pattern.permute.xlu0 %v1136
  %1139 = vperm.xlu0 %1138, %v1134
  %v1140 = vpop.permute.xlu0 %1139
  %v1141 = vperm.slane %v857, 2
  %v1142 = vlaneseq
  %v1143 = vshrl.u32 %v1142, 7
  %1145 = vset.pattern.permute.xlu0 %v1143
  %1146 = vperm.xlu0 %1145, %v1141
  %v1147 = vpop.permute.xlu0 %1146
  %v1148 = vperm.slane %v857, 3
  %v1149 = vlaneseq
  %v1150 = vshrl.u32 %v1149, 7
  %1152 = vset.pattern.permute.xlu0 %v1150
  %1153 = vperm.xlu0 %1152, %v1148
  %v1154 = vpop.permute.xlu0 %1153
  %v1155 = vperm.slane %v857, 4
  %v1156 = vlaneseq
  %v1157 = vshrl.u32 %v1156, 7
  %1159 = vset.pattern.permute.xlu0 %v1157
  %1160 = vperm.xlu0 %1159, %v1155
  %v1161 = vpop.permute.xlu0 %1160
  %v1162 = vperm.slane %v857, 5
  %v1163 = vlaneseq
  %v1164 = vshrl.u32 %v1163, 7
  %1166 = vset.pattern.permute.xlu0 %v1164
  %1167 = vperm.xlu0 %1166, %v1162
  %v1168 = vpop.permute.xlu0 %1167
  %v1169 = vperm.slane %v857, 6
  %v1170 = vlaneseq
  %v1171 = vshrl.u32 %v1170, 7
  %1173 = vset.pattern.permute.xlu0 %v1171
  %1174 = vperm.xlu0 %1173, %v1169
  %v1175 = vpop.permute.xlu0 %1174
  %v1176 = vperm.slane %v857, 7
  %v1177 = vlaneseq
  %v1178 = vshrl.u32 %v1177, 7
  %1180 = vset.pattern.permute.xlu0 %v1178
  %1181 = vperm.xlu0 %1180, %v1176
  %v1182 = vpop.permute.xlu0 %1181
  %v1183 = vperm.slane %v872, 0
  %v1184 = vlaneseq
  %v1185 = vshrl.u32 %v1184, 7
  %1187 = vset.pattern.permute.xlu0 %v1185
  %1188 = vperm.xlu0 %1187, %v1183
  %v1189 = vpop.permute.xlu0 %1188
  %v1190 = vperm.slane %v872, 1
  %v1191 = vlaneseq
  %v1192 = vshrl.u32 %v1191, 7
  %1194 = vset.pattern.permute.xlu0 %v1192
  %1195 = vperm.xlu0 %1194, %v1190
  %v1196 = vpop.permute.xlu0 %1195
  %v1197 = vperm.slane %v872, 2
  %v1198 = vlaneseq
  %v1199 = vshrl.u32 %v1198, 7
  %1201 = vset.pattern.permute.xlu0 %v1199
  %1202 = vperm.xlu0 %1201, %v1197
  %v1203 = vpop.permute.xlu0 %1202
  %v1204 = vperm.slane %v872, 3
  %v1205 = vlaneseq
  %v1206 = vshrl.u32 %v1205, 7
  %1208 = vset.pattern.permute.xlu0 %v1206
  %1209 = vperm.xlu0 %1208, %v1204
  %v1210 = vpop.permute.xlu0 %1209
  %v1211 = vperm.slane %v872, 4
  %v1212 = vlaneseq
  %v1213 = vshrl.u32 %v1212, 7
  %1215 = vset.pattern.permute.xlu0 %v1213
  %1216 = vperm.xlu0 %1215, %v1211
  %v1217 = vpop.permute.xlu0 %1216
  %v1218 = vperm.slane %v872, 5
  %v1219 = vlaneseq
  %v1220 = vshrl.u32 %v1219, 7
  %1222 = vset.pattern.permute.xlu0 %v1220
  %1223 = vperm.xlu0 %1222, %v1218
  %v1224 = vpop.permute.xlu0 %1223
  %v1225 = vperm.slane %v872, 6
  %v1226 = vlaneseq
  %v1227 = vshrl.u32 %v1226, 7
  %1229 = vset.pattern.permute.xlu0 %v1227
  %1230 = vperm.xlu0 %1229, %v1225
  %v1231 = vpop.permute.xlu0 %1230
  %v1232 = vperm.slane %v872, 7
  %v1233 = vlaneseq
  %v1234 = vshrl.u32 %v1233, 7
  %1236 = vset.pattern.permute.xlu0 %v1234
  %1237 = vperm.xlu0 %1236, %v1232
  %v1238 = vpop.permute.xlu0 %1237
  %v1239 = vperm.slane %v887, 0
  %v1240 = vlaneseq
  %v1241 = vshrl.u32 %v1240, 7
  %1243 = vset.pattern.permute.xlu0 %v1241
  %1244 = vperm.xlu0 %1243, %v1239
  %v1245 = vpop.permute.xlu0 %1244
  %v1246 = vperm.slane %v887, 1
  %v1247 = vlaneseq
  %v1248 = vshrl.u32 %v1247, 7
  %1250 = vset.pattern.permute.xlu0 %v1248
  %1251 = vperm.xlu0 %1250, %v1246
  %v1252 = vpop.permute.xlu0 %1251
  %v1253 = vperm.slane %v887, 2
  %v1254 = vlaneseq
  %v1255 = vshrl.u32 %v1254, 7
  %1257 = vset.pattern.permute.xlu0 %v1255
  %1258 = vperm.xlu0 %1257, %v1253
  %v1259 = vpop.permute.xlu0 %1258
  %v1260 = vperm.slane %v887, 3
  %v1261 = vlaneseq
  %v1262 = vshrl.u32 %v1261, 7
  %1264 = vset.pattern.permute.xlu0 %v1262
  %1265 = vperm.xlu0 %1264, %v1260
  %v1266 = vpop.permute.xlu0 %1265
  %v1267 = vperm.slane %v887, 4
  %v1268 = vlaneseq
  %v1269 = vshrl.u32 %v1268, 7
  %1271 = vset.pattern.permute.xlu0 %v1269
  %1272 = vperm.xlu0 %1271, %v1267
  %v1273 = vpop.permute.xlu0 %1272
  %v1274 = vperm.slane %v887, 5
  %v1275 = vlaneseq
  %v1276 = vshrl.u32 %v1275, 7
  %1278 = vset.pattern.permute.xlu0 %v1276
  %1279 = vperm.xlu0 %1278, %v1274
  %v1280 = vpop.permute.xlu0 %1279
  %v1281 = vperm.slane %v887, 6
  %v1282 = vlaneseq
  %v1283 = vshrl.u32 %v1282, 7
  %1285 = vset.pattern.permute.xlu0 %v1283
  %1286 = vperm.xlu0 %1285, %v1281
  %v1287 = vpop.permute.xlu0 %1286
  %v1288 = vperm.slane %v887, 7
  %v1289 = vlaneseq
  %v1290 = vshrl.u32 %v1289, 7
  %1292 = vset.pattern.permute.xlu0 %v1290
  %1293 = vperm.xlu0 %1292, %v1288
  %v1294 = vpop.permute.xlu0 %1293
  %v1295 = vperm.slane %v902, 0
  %v1296 = vlaneseq
  %v1297 = vshrl.u32 %v1296, 7
  %1299 = vset.pattern.permute.xlu0 %v1297
  %1300 = vperm.xlu0 %1299, %v1295
  %v1301 = vpop.permute.xlu0 %1300
  %v1302 = vperm.slane %v902, 1
  %v1303 = vlaneseq
  %v1304 = vshrl.u32 %v1303, 7
  %1306 = vset.pattern.permute.xlu0 %v1304
  %1307 = vperm.xlu0 %1306, %v1302
  %v1308 = vpop.permute.xlu0 %1307
  %v1309 = vperm.slane %v902, 2
  %v1310 = vlaneseq
  %v1311 = vshrl.u32 %v1310, 7
  %1313 = vset.pattern.permute.xlu0 %v1311
  %1314 = vperm.xlu0 %1313, %v1309
  %v1315 = vpop.permute.xlu0 %1314
  %v1316 = vperm.slane %v902, 3
  %v1317 = vlaneseq
  %v1318 = vshrl.u32 %v1317, 7
  %1320 = vset.pattern.permute.xlu0 %v1318
  %1321 = vperm.xlu0 %1320, %v1316
  %v1322 = vpop.permute.xlu0 %1321
  %v1323 = vperm.slane %v902, 4
  %v1324 = vlaneseq
  %v1325 = vshrl.u32 %v1324, 7
  %1327 = vset.pattern.permute.xlu0 %v1325
  %1328 = vperm.xlu0 %1327, %v1323
  %v1329 = vpop.permute.xlu0 %1328
  %v1330 = vperm.slane %v902, 5
  %v1331 = vlaneseq
  %v1332 = vshrl.u32 %v1331, 7
  %1334 = vset.pattern.permute.xlu0 %v1332
  %1335 = vperm.xlu0 %1334, %v1330
  %v1336 = vpop.permute.xlu0 %1335
  %v1337 = vperm.slane %v902, 6
  %v1338 = vlaneseq
  %v1339 = vshrl.u32 %v1338, 7
  %1341 = vset.pattern.permute.xlu0 %v1339
  %1342 = vperm.xlu0 %1341, %v1337
  %v1343 = vpop.permute.xlu0 %1342
  %v1344 = vperm.slane %v902, 7
  %v1345 = vlaneseq
  %v1346 = vshrl.u32 %v1345, 7
  %1348 = vset.pattern.permute.xlu0 %v1346
  %1349 = vperm.xlu0 %1348, %v1344
  %v1350 = vpop.permute.xlu0 %1349
  %v1351 = vmul.f32 %v909, %v36
  %v1352 = vmul.f32 %v916, %v37
  %v1353 = vmul.f32 %v923, %v38
  %v1354 = vmul.f32 %v930, %v39
  %v1355 = vmul.f32 %v937, %v40
  %v1356 = vmul.f32 %v944, %v41
  %v1357 = vmul.f32 %v951, %v42
  %v1358 = vmul.f32 %v958, %v43
  %v1359 = vmul.f32 %v965, %v36
  %v1360 = vmul.f32 %v972, %v37
  %v1361 = vmul.f32 %v979, %v38
  %v1362 = vmul.f32 %v986, %v39
  %v1363 = vmul.f32 %v993, %v40
  %v1364 = vmul.f32 %v1000, %v41
  %v1365 = vmul.f32 %v1007, %v42
  %v1366 = vmul.f32 %v1014, %v43
  %v1367 = vmul.f32 %v1021, %v36
  %v1368 = vmul.f32 %v1028, %v37
  %v1369 = vmul.f32 %v1035, %v38
  %v1370 = vmul.f32 %v1042, %v39
  %v1371 = vmul.f32 %v1049, %v40
  %v1372 = vmul.f32 %v1056, %v41
  %v1373 = vmul.f32 %v1063, %v42
  %v1374 = vmul.f32 %v1070, %v43
  %v1375 = vmul.f32 %v1077, %v36
  %v1376 = vmul.f32 %v1084, %v37
  %v1377 = vmul.f32 %v1091, %v38
  %v1378 = vmul.f32 %v1098, %v39
  %v1379 = vmul.f32 %v1105, %v40
  %v1380 = vmul.f32 %v1112, %v41
  %v1381 = vmul.f32 %v1119, %v42
  %v1382 = vmul.f32 %v1126, %v43
  %v1383 = vmul.f32 %v1133, %v36
  %v1384 = vmul.f32 %v1140, %v37
  %v1385 = vmul.f32 %v1147, %v38
  %v1386 = vmul.f32 %v1154, %v39
  %v1387 = vmul.f32 %v1161, %v40
  %v1388 = vmul.f32 %v1168, %v41
  %v1389 = vmul.f32 %v1175, %v42
  %v1390 = vmul.f32 %v1182, %v43
  %v1391 = vmul.f32 %v1189, %v36
  %v1392 = vmul.f32 %v1196, %v37
  %v1393 = vmul.f32 %v1203, %v38
  %v1394 = vmul.f32 %v1210, %v39
  %v1395 = vmul.f32 %v1217, %v40
  %v1396 = vmul.f32 %v1224, %v41
  %v1397 = vmul.f32 %v1231, %v42
  %v1398 = vmul.f32 %v1238, %v43
  %v1399 = vmul.f32 %v1245, %v36
  %v1400 = vmul.f32 %v1252, %v37
  %v1401 = vmul.f32 %v1259, %v38
  %v1402 = vmul.f32 %v1266, %v39
  %v1403 = vmul.f32 %v1273, %v40
  %v1404 = vmul.f32 %v1280, %v41
  %v1405 = vmul.f32 %v1287, %v42
  %v1406 = vmul.f32 %v1294, %v43
  %v1407 = vmul.f32 %v1301, %v36
  %v1408 = vmul.f32 %v1308, %v37
  %v1409 = vmul.f32 %v1315, %v38
  %v1410 = vmul.f32 %v1322, %v39
  %v1411 = vmul.f32 %v1329, %v40
  %v1412 = vmul.f32 %v1336, %v41
  %v1413 = vmul.f32 %v1343, %v42
  %v1414 = vmul.f32 %v1350, %v43
  %v1415 = vsel %vm240, %v1351, 0.0
  %v1416 = vsel %vm240, %v1352, 0.0
  %v1417 = vadd.f32 %v1415, %v1416
  %v1418 = vsel %vm240, %v1353, 0.0
  %v1419 = vadd.f32 %v1417, %v1418
  %v1420 = vsel %vm240, %v1354, 0.0
  %v1421 = vadd.f32 %v1419, %v1420
  %v1422 = vsel %vm240, %v1355, 0.0
  %v1423 = vadd.f32 %v1421, %v1422
  %v1424 = vsel %vm240, %v1356, 0.0
  %v1425 = vadd.f32 %v1423, %v1424
  %v1426 = vsel %vm240, %v1357, 0.0
  %v1427 = vadd.f32 %v1425, %v1426
  %v1428 = vsel %vm240, %v1358, 0.0
  %v1429 = vadd.f32 %v1427, %v1428
  %v1430 = vsel %vm240, %v1359, 0.0
  %v1431 = vsel %vm240, %v1360, 0.0
  %v1432 = vadd.f32 %v1430, %v1431
  %v1433 = vsel %vm240, %v1361, 0.0
  %v1434 = vadd.f32 %v1432, %v1433
  %v1435 = vsel %vm240, %v1362, 0.0
  %v1436 = vadd.f32 %v1434, %v1435
  %v1437 = vsel %vm240, %v1363, 0.0
  %v1438 = vadd.f32 %v1436, %v1437
  %v1439 = vsel %vm240, %v1364, 0.0
  %v1440 = vadd.f32 %v1438, %v1439
  %v1441 = vsel %vm240, %v1365, 0.0
  %v1442 = vadd.f32 %v1440, %v1441
  %v1443 = vsel %vm240, %v1366, 0.0
  %v1444 = vadd.f32 %v1442, %v1443
  %v1445 = vsel %vm240, %v1367, 0.0
  %v1446 = vsel %vm240, %v1368, 0.0
  %v1447 = vadd.f32 %v1445, %v1446
  %v1448 = vsel %vm240, %v1369, 0.0
  %v1449 = vadd.f32 %v1447, %v1448
  %v1450 = vsel %vm240, %v1370, 0.0
  %v1451 = vadd.f32 %v1449, %v1450
  %v1452 = vsel %vm240, %v1371, 0.0
  %v1453 = vadd.f32 %v1451, %v1452
  %v1454 = vsel %vm240, %v1372, 0.0
  %v1455 = vadd.f32 %v1453, %v1454
  %v1456 = vsel %vm240, %v1373, 0.0
  %v1457 = vadd.f32 %v1455, %v1456
  %v1458 = vsel %vm240, %v1374, 0.0
  %v1459 = vadd.f32 %v1457, %v1458
  %v1460 = vsel %vm240, %v1375, 0.0
  %v1461 = vsel %vm240, %v1376, 0.0
  %v1462 = vadd.f32 %v1460, %v1461
  %v1463 = vsel %vm240, %v1377, 0.0
  %v1464 = vadd.f32 %v1462, %v1463
  %v1465 = vsel %vm240, %v1378, 0.0
  %v1466 = vadd.f32 %v1464, %v1465
  %v1467 = vsel %vm240, %v1379, 0.0
  %v1468 = vadd.f32 %v1466, %v1467
  %v1469 = vsel %vm240, %v1380, 0.0
  %v1470 = vadd.f32 %v1468, %v1469
  %v1471 = vsel %vm240, %v1381, 0.0
  %v1472 = vadd.f32 %v1470, %v1471
  %v1473 = vsel %vm240, %v1382, 0.0
  %v1474 = vadd.f32 %v1472, %v1473
  %v1475 = vsel %vm240, %v1383, 0.0
  %v1476 = vsel %vm240, %v1384, 0.0
  %v1477 = vadd.f32 %v1475, %v1476
  %v1478 = vsel %vm240, %v1385, 0.0
  %v1479 = vadd.f32 %v1477, %v1478
  %v1480 = vsel %vm240, %v1386, 0.0
  %v1481 = vadd.f32 %v1479, %v1480
  %v1482 = vsel %vm240, %v1387, 0.0
  %v1483 = vadd.f32 %v1481, %v1482
  %v1484 = vsel %vm240, %v1388, 0.0
  %v1485 = vadd.f32 %v1483, %v1484
  %v1486 = vsel %vm240, %v1389, 0.0
  %v1487 = vadd.f32 %v1485, %v1486
  %v1488 = vsel %vm240, %v1390, 0.0
  %v1489 = vadd.f32 %v1487, %v1488
  %v1490 = vsel %vm240, %v1391, 0.0
  %v1491 = vsel %vm240, %v1392, 0.0
  %v1492 = vadd.f32 %v1490, %v1491
  %v1493 = vsel %vm240, %v1393, 0.0
  %v1494 = vadd.f32 %v1492, %v1493
  %v1495 = vsel %vm240, %v1394, 0.0
  %v1496 = vadd.f32 %v1494, %v1495
  %v1497 = vsel %vm240, %v1395, 0.0
  %v1498 = vadd.f32 %v1496, %v1497
  %v1499 = vsel %vm240, %v1396, 0.0
  %v1500 = vadd.f32 %v1498, %v1499
  %v1501 = vsel %vm240, %v1397, 0.0
  %v1502 = vadd.f32 %v1500, %v1501
  %v1503 = vsel %vm240, %v1398, 0.0
  %v1504 = vadd.f32 %v1502, %v1503
  %v1505 = vsel %vm240, %v1399, 0.0
  %v1506 = vsel %vm240, %v1400, 0.0
  %v1507 = vadd.f32 %v1505, %v1506
  %v1508 = vsel %vm240, %v1401, 0.0
  %v1509 = vadd.f32 %v1507, %v1508
  %v1510 = vsel %vm240, %v1402, 0.0
  %v1511 = vadd.f32 %v1509, %v1510
  %v1512 = vsel %vm240, %v1403, 0.0
  %v1513 = vadd.f32 %v1511, %v1512
  %v1514 = vsel %vm240, %v1404, 0.0
  %v1515 = vadd.f32 %v1513, %v1514
  %v1516 = vsel %vm240, %v1405, 0.0
  %v1517 = vadd.f32 %v1515, %v1516
  %v1518 = vsel %vm240, %v1406, 0.0
  %v1519 = vadd.f32 %v1517, %v1518
  %v1520 = vsel %vm240, %v1407, 0.0
  %v1521 = vsel %vm240, %v1408, 0.0
  %v1522 = vadd.f32 %v1520, %v1521
  %v1523 = vsel %vm240, %v1409, 0.0
  %v1524 = vadd.f32 %v1522, %v1523
  %v1525 = vsel %vm240, %v1410, 0.0
  %v1526 = vadd.f32 %v1524, %v1525
  %v1527 = vsel %vm240, %v1411, 0.0
  %v1528 = vadd.f32 %v1526, %v1527
  %v1529 = vsel %vm240, %v1412, 0.0
  %v1530 = vadd.f32 %v1528, %v1529
  %v1531 = vsel %vm240, %v1413, 0.0
  %v1532 = vadd.f32 %v1530, %v1531
  %v1533 = vsel %vm240, %v1414, 0.0
  %v1534 = vadd.f32 %v1532, %v1533
  %1535 = vst.msk [vmem:[%s5] sm:$0x3] %vm240, %v1429
  %1536 = vst.msk [vmem:[%s5 + $0x2] sm:$0x3] %vm240, %v1444
  %1537 = vst.msk [vmem:[%s5 + $0x4] sm:$0x3] %vm240, %v1459
  %1538 = vst.msk [vmem:[%s5 + $0x6] sm:$0x3] %vm240, %v1474
  %1539 = vst.msk [vmem:[%s5 + $0x8] sm:$0x3] %vm240, %v1489
  %1540 = vst.msk [vmem:[%s5 + $0xa] sm:$0x3] %vm240, %v1504
  %1541 = vst.msk [vmem:[%s5 + $0xc] sm:$0x3] %vm240, %v1519
  %1542 = vst.msk [vmem:[%s5 + $0xe] sm:$0x3] %vm240, %v1534
  // Predicated region
  $region22: #{gnmt_forward.32} parent=0 // pred_check
    _
  $region23: #{gnmt_forward.32} parent=0 // pred_check_branch
    %1544 = sbr.rel (0) target = $region25
  $region24: #{gnmt_forward.32} parent=0 // pred_region
    _
  $region25: #{gnmt_forward.32} parent=0 // pred_fallthru
    _
  // Predicated region
  $region26: #{gnmt_forward.32} parent=0 // pred_check
    _
  $region27: #{gnmt_forward.32} parent=0 // pred_check_branch
    %1546 = sbr.rel (0) target = $region29
  $region28: #{gnmt_forward.32} parent=0 // pred_region
    _
  $region29: #{gnmt_forward.32} parent=0 // pred_fallthru
    _

</llo_original>
